<compile_context>
chip_gen: v6e
topology: v6e:2x2x1
jax: 0.10.0
libtpu: 0.0.40
codegen_flags: <defaults>
</compile_context>

<pallas_src>
import functools

import jax
import jax.numpy as jnp
from jax import lax
from jax.experimental import pallas as pl
from jax.experimental.pallas import tpu as pltpu

BN_EPS = 1e-5
K = 7            # SpatialAttention kernel_size
PAD = K // 2


# ----------------------------------------------------------------------------
# Pallas kernel
# ----------------------------------------------------------------------------
def _spatial_attention_kernel(x_ref, w_ref, b_ref, o_ref,
                              sum_acc, max_acc, sh_buf,
                              *, C, C_TILE, H, W, BT):
    """One (batch-tile, channel-chunk) grid step.

    x_ref   : (BT, C_TILE, H*W)      VMEM  lane-dense input chunk
    w_ref   : (2*K*K,)               SMEM  BN-folded conv weights,
                                           layout [(kh*K + kw)*2 + cin] (0=avg, 1=max)
    b_ref   : (1,)                   SMEM  BN-folded bias
    o_ref   : (BT, 1, H*W)           VMEM  lane-dense sigmoid attention map
    sum_acc : (BT, H*W)              VMEM  running channel sum
    max_acc : (BT, H*W)              VMEM  running channel max
    sh_buf  : (2, K, BT, H+2P, W)    VMEM  hoisted kw-shifted (zero-filled) maps
    """
    k = pl.program_id(1)
    nk = pl.num_programs(1)
    HW = H * W
    Hp = H + 2 * PAD

    @pl.when(k == 0)
    def _init():
        sum_acc[...] = jnp.zeros_like(sum_acc)
        max_acc[...] = jnp.full_like(max_acc, -jnp.inf)

    # ---- single-pass running channel sum + max over this C chunk ------------
    s = sum_acc[...]
    m = max_acc[...]
    need_c_mask = (C % C_TILE) != 0            # trace-time constant
    c_sub = min(C_TILE, 8)                     # bound live vregs per sub-chunk
    for c0 in range(0, C_TILE, c_sub):
        c1 = min(C_TILE, c0 + c_sub)
        xs = x_ref[:, c0:c1, :].astype(jnp.float32)        # (BT, c1-c0, HW)
        if need_c_mask:
            cidx = lax.broadcasted_iota(jnp.int32, xs.shape, 1)
            valid = (k * C_TILE + c0 + cidx) < C
            x_sum = jnp.where(valid, xs, 0.0)
            x_max = jnp.where(valid, xs, -jnp.inf)
        else:
            x_sum = xs
            x_max = xs
        s = s + jnp.sum(x_sum, axis=1)
        m = jnp.maximum(m, jnp.max(x_max, axis=1))
    sum_acc[...] = s
    max_acc[...] = m

    # ---- finalize: 7x7 conv (VPU) + folded BN bias + sigmoid ----------------
    @pl.when(k == nk - 1)
    def _finalize():
        avg_flat = s * (1.0 / C)               # (BT, HW)  channel mean
        max_flat = m                           # (BT, HW)  channel max

        # Build the H-padded 2-D view of each map in the kw==PAD (unshifted)
        # slot of sh_buf: zero ONLY the 3-row halo, then per-row lane slices.
        halo = jnp.zeros((BT, PAD, W), jnp.float32)
        for c, flat in ((0, avg_flat), (1, max_flat)):
            sh_buf[c, PAD, :, 0:PAD, :] = halo
            sh_buf[c, PAD, :, PAD + H:Hp, :] = halo
            for h in range(H):
                sh_buf[c, PAD, :, PAD + h, :] = flat[:, h * W:(h + 1) * W]

        # Hoisted kw lane shifts: 7 zero-filled W-shifted copies per map
        # (14 lane shifts total instead of 98 unaligned window reads).
        def shift_w(a, dw):
            if dw == 0:
                return a
            zc = jnp.zeros((BT, Hp, abs(dw)), jnp.float32)
            if dw > 0:
                return jnp.concatenate([a[:, :, dw:], zc], axis=2)
            return jnp.concatenate([zc, a[:, :, :dw]], axis=2)

        for c in (0, 1):
            center = sh_buf[c, PAD, :, :, :]               # (BT, Hp, W)
            for kw in range(K):
                if kw != PAD:
                    sh_buf[c, kw, :, :, :] = shift_w(center, kw - PAD)

        # 98 VPU FMAs; inner-loop reads are lane-aligned (sublane offsets only).
        # 4 independent accumulators restore ILP in the tap chain.
        accs = [jnp.zeros((BT, H, W), jnp.float32) for _ in range(4)]
        t = 0
        for kh in range(K):
            for kw in range(K):
                wa = w_ref[(kh * K + kw) * 2 + 0]          # avg-channel weight
                wm = w_ref[(kh * K + kw) * 2 + 1]          # max-channel weight
                accs[t % 4] = (accs[t % 4]
                               + sh_buf[0, kw, :, kh:kh + H, :] * wa
                               + sh_buf[1, kw, :, kh:kh + H, :] * wm)
                t += 1
        conv = (accs[0] + accs[1]) + (accs[2] + accs[3])
        out2 = jax.nn.sigmoid(conv + b_ref[0])             # (BT, H, W)

        # Store into the lane-dense (BT, 1, H*W) output block.
        for h in range(H):
            o_ref[:, 0:1, h * W:(h + 1) * W] = out2[:, h:h + 1, :]


# ----------------------------------------------------------------------------
# Wrapper
# ----------------------------------------------------------------------------
def _pick_c_tile(C, BT, HW):
    """Channel chunk per grid step: ~512 KiB of f32 input per block (the
    pipeline double-buffers it); second-minor block dim kept 8-aligned."""
    target_elems = (512 * 1024) // 4
    ct = max(1, target_elems // (BT * HW))
    if ct >= C or C <= 8:
        return C
    ct = max(8, (ct // 8) * 8)
    return min(ct, C)


def spatial_attention_forward(x, w_flat, bias):
    """x: (N, C, H, W) float32 (NCHW, like the PyTorch reference).
    Returns the attention map of shape (N, 1, H, W)."""
    N, C, H, W = x.shape
    HW = H * W
    xf = x.reshape(N, C, HW)                 # lane-dense spatial axis (free in XLA)
    BT = N if N <= 8 else 8                  # batch rows packed per grid step
    C_TILE = _pick_c_tile(C, BT, HW)
    Hp = H + 2 * PAD
    grid = (pl.cdiv(N, BT), pl.cdiv(C, C_TILE))

    kernel = functools.partial(_spatial_attention_kernel,
                               C=C, C_TILE=C_TILE, H=H, W=W, BT=BT)
    out = pl.pallas_call(
        kernel,
        out_shape=jax.ShapeDtypeStruct((N, 1, HW), jnp.float32),
        grid=grid,
        in_specs=[
            pl.BlockSpec((BT, C_TILE, HW), lambda n, k: (n, k, 0)),
            pl.BlockSpec(memory_space=pltpu.MemorySpace.SMEM),   # folded conv weights
            pl.BlockSpec(memory_space=pltpu.MemorySpace.SMEM),   # folded BN bias
        ],
        out_specs=pl.BlockSpec((BT, 1, HW), lambda n, k: (n, 0, 0)),
        scratch_shapes=[
            pltpu.VMEM((BT, HW), jnp.float32),             # running channel sum
            pltpu.VMEM((BT, HW), jnp.float32),             # running channel max
            pltpu.VMEM((2, K, BT, Hp, W), jnp.float32),    # hoisted shifted maps
        ],
        compiler_params=pltpu.CompilerParams(
            dimension_semantics=("parallel", "arbitrary")),
    )(xf, w_flat, bias)
    return out.reshape(N, 1, H, W)


# ----------------------------------------------------------------------------
# Parameter construction (fold BN into the conv) and pure-JAX reference
# ----------------------------------------------------------------------------
def fold_bn_into_conv(w_oihw, gamma, beta, mean, var):
    """w_oihw: (1, 2, K, K) (PyTorch OIHW, conv has no bias).
    Returns (w_flat (2*K*K,), bias (1,)) with the eval-mode BN folded in."""
    scale = gamma / jnp.sqrt(var + BN_EPS)                 # (1,)
    w_fused = w_oihw * scale[:, None, None, None]
    bias = beta - mean * scale                             # (1,)
    # SMEM layout: [(kh*K + kw)*2 + cin], cin 0 = avg channel, 1 = max channel
    w_flat = jnp.transpose(w_fused[0], (1, 2, 0)).reshape(-1)
    return w_flat.astype(jnp.float32), bias.astype(jnp.float32)


def spatial_attention_ref(x, w_oihw, gamma, beta, mean, var):
    avg = jnp.mean(x, axis=1, keepdims=True)
    mx = jnp.max(x, axis=1, keepdims=True)
    cat = jnp.concatenate([avg, mx], axis=1)               # (N, 2, H, W)
    y = jax.lax.conv_general_dilated(
        cat, w_oihw, window_strides=(1, 1),
        padding=((PAD, PAD), (PAD, PAD)),
        dimension_numbers=("NCHW", "OIHW", "NCHW"),
        precision=jax.lax.Precision.HIGHEST)
    scale = gamma / jnp.sqrt(var + BN_EPS)
    y = (y - mean[None, :, None, None]) * scale[None, :, None, None] \
        + beta[None, :, None, None]
    return jax.nn.sigmoid(y)


# ----------------------------------------------------------------------------
if __name__ == "__main__":
    key = jax.random.PRNGKey(0)
    kx, kw_, kg, kb, km, kv = jax.random.split(key, 6)

    N, C, H, W = 2, 4, 16, 16
    x = jax.random.normal(kx, (N, C, H, W), jnp.float32)

    # Conv2d(2, 1, 7, padding=3, bias=False) weight (OIHW).
    w = jax.random.normal(kw_, (1, 2, K, K), jnp.float32) / jnp.sqrt(2.0 * K * K)
    # BatchNorm2d(1, affine=True) eval-mode parameters / running statistics.
    gamma = 1.0 + 0.1 * jax.random.normal(kg, (1,), jnp.float32)
    beta = 0.1 * jax.random.normal(kb, (1,), jnp.float32)
    running_mean = 0.1 * jax.random.normal(km, (1,), jnp.float32)
    running_var = jax.random.uniform(kv, (1,), jnp.float32, 0.5, 1.5)

    w_flat, bias = fold_bn_into_conv(w, gamma, beta, running_mean, running_var)

    out = spatial_attention_forward(x, w_flat, bias)
    jax.block_until_ready(out)
    assert out.shape == (N, 1, H, W)

    ref = spatial_attention_ref(x, w, gamma, beta, running_mean, running_var)
    max_err = float(jnp.max(jnp.abs(out - ref)))
    assert max_err < 2e-5, max_err

    print("KERNEL_OK")
</pallas_src>

<mosaic_0001>
module attributes {stable_mosaic.version = 11 : i64} {
  func.func @_spatial_attention_kernel(%arg0: i32, %arg1: i32, %arg2: memref<2x4x256xf32, #tpu.memory_space<vmem>>, %arg3: memref<98xf32, #tpu.memory_space<smem>>, %arg4: memref<1xf32, #tpu.memory_space<smem>>, %arg5: memref<2x1x256xf32, #tpu.memory_space<vmem>>, %arg6: memref<2x256xf32, #tpu.memory_space<vmem>>, %arg7: memref<2x256xf32, #tpu.memory_space<vmem>>, %arg8: memref<2x7x2x22x16xf32, #tpu.memory_space<vmem>>) attributes {dimension_semantics = [#tpu.dimension_semantics<parallel>, #tpu.dimension_semantics<arbitrary>], iteration_bounds = array<i64: 1, 1>, scalar_prefetch = 0 : i64, scratch_operands = 3 : i64, tpu.core_type = #tpu.core_type<tc>, window_params = [{transform_indices = @transform_0, window_bounds = array<i64: 2, 4, 256>}, {transform_indices = @transform_1, window_bounds = array<i64: 98>}, {transform_indices = @transform_2, window_bounds = array<i64: 1>}, {transform_indices = @transform_3, window_bounds = array<i64: 2, 1, 256>}]} {
    %c0_i32 = arith.constant 0 : i32
    %0 = arith.cmpi eq, %arg1, %c0_i32 : i32
    %1 = arith.extui %0 : i1 to i32
    %c0_i32_0 = arith.constant 0 : i32
    %2 = arith.cmpi ne, %1, %c0_i32_0 : i32
    scf.if %2 {
      %cst_14 = arith.constant 0.000000e+00 : f32
      %15 = vector.broadcast %cst_14 : f32 to vector<2x256xf32>
      %c0_15 = arith.constant 0 : index
      %c0_16 = arith.constant 0 : index
      %16 = vector.load %arg6[%c0_15, %c0_16] : memref<2x256xf32, #tpu.memory_space<vmem>>, vector<2x256xf32>
      tpu.vector_store %arg6[%c0_15, %c0_16], %15 {strides = array<i32>} : memref<2x256xf32, #tpu.memory_space<vmem>>, vector<2x256xf32>,
      %cst_17 = arith.constant 0xFF800000 : f32
      %17 = vector.broadcast %cst_17 : f32 to vector<2x256xf32>
      %c0_18 = arith.constant 0 : index
      %c0_19 = arith.constant 0 : index
      %18 = vector.load %arg7[%c0_18, %c0_19] : memref<2x256xf32, #tpu.memory_space<vmem>>, vector<2x256xf32>
      tpu.vector_store %arg7[%c0_18, %c0_19], %17 {strides = array<i32>} : memref<2x256xf32, #tpu.memory_space<vmem>>, vector<2x256xf32>,
    } else {
    }
    %c0 = arith.constant 0 : index
    %c0_1 = arith.constant 0 : index
    %3 = vector.load %arg6[%c0, %c0_1] : memref<2x256xf32, #tpu.memory_space<vmem>>, vector<2x256xf32>
    %c0_2 = arith.constant 0 : index
    %c0_3 = arith.constant 0 : index
    %4 = vector.load %arg7[%c0_2, %c0_3] : memref<2x256xf32, #tpu.memory_space<vmem>>, vector<2x256xf32>
    %c0_4 = arith.constant 0 : index
    %c0_5 = arith.constant 0 : index
    %c0_6 = arith.constant 0 : index
    %5 = vector.load %arg2[%c0_4, %c0_5, %c0_6] : memref<2x4x256xf32, #tpu.memory_space<vmem>>, vector<2x4x256xf32>
    %cst = arith.constant dense<0.000000e+00> : vector<2x256xf32>
    %6 = vector.multi_reduction <add>, %5, %cst [1] : vector<2x4x256xf32> to vector<2x256xf32>
    %7 = arith.addf %3, %6 : vector<2x256xf32>
    %cst_7 = arith.constant dense<0xFF800000> : vector<2x256xf32>
    %8 = vector.multi_reduction <maximumf>, %5, %cst_7 [1] : vector<2x4x256xf32> to vector<2x256xf32>
    %9 = arith.maximumf %4, %8 : vector<2x256xf32>
    %c0_8 = arith.constant 0 : index
    %c0_9 = arith.constant 0 : index
    %10 = vector.load %arg6[%c0_8, %c0_9] : memref<2x256xf32, #tpu.memory_space<vmem>>, vector<2x256xf32>
    tpu.vector_store %arg6[%c0_8, %c0_9], %7 {strides = array<i32>} : memref<2x256xf32, #tpu.memory_space<vmem>>, vector<2x256xf32>,
    %c0_10 = arith.constant 0 : index
    %c0_11 = arith.constant 0 : index
    %11 = vector.load %arg7[%c0_10, %c0_11] : memref<2x256xf32, #tpu.memory_space<vmem>>, vector<2x256xf32>
    tpu.vector_store %arg7[%c0_10, %c0_11], %9 {strides = array<i32>} : memref<2x256xf32, #tpu.memory_space<vmem>>, vector<2x256xf32>,
    %c0_i32_12 = arith.constant 0 : i32
    %12 = arith.cmpi eq, %arg1, %c0_i32_12 : i32
    %13 = arith.extui %12 : i1 to i32
    %c0_i32_13 = arith.constant 0 : i32
    %14 = arith.cmpi ne, %13, %c0_i32_13 : i32
    scf.if %14 {
      %cst_14 = arith.constant 2.500000e-01 : f32
      %15 = vector.broadcast %cst_14 : f32 to vector<2x256xf32>
      %16 = arith.mulf %7, %15 : vector<2x256xf32>
      %cst_15 = arith.constant 0.000000e+00 : f32
      %17 = vector.broadcast %cst_15 : f32 to vector<2x3x16xf32>
      %c0_16 = arith.constant 0 : index
      %c3 = arith.constant 3 : index
      %c0_17 = arith.constant 0 : index
      %c0_18 = arith.constant 0 : index
      %c0_19 = arith.constant 0 : index
      %18 = vector.load %arg8[%c0_16, %c3, %c0_17, %c0_18, %c0_19] : memref<2x7x2x22x16xf32, #tpu.memory_space<vmem>>, vector<1x1x2x3x16xf32>
      %19 = vector.shape_cast %18 : vector<1x1x2x3x16xf32> to vector<2x3x16xf32>
      %20 = vector.shape_cast %17 : vector<2x3x16xf32> to vector<1x1x2x3x16xf32>
      tpu.vector_store %arg8[%c0_16, %c3, %c0_17, %c0_18, %c0_19], %20 {strides = array<i32>} : memref<2x7x2x22x16xf32, #tpu.memory_space<vmem>>, vector<1x1x2x3x16xf32>,
      %c0_20 = arith.constant 0 : index
      %c3_21 = arith.constant 3 : index
      %c0_22 = arith.constant 0 : index
      %c19 = arith.constant 19 : index
      %c0_23 = arith.constant 0 : index
      %21 = vector.load %arg8[%c0_20, %c3_21, %c0_22, %c19, %c0_23] : memref<2x7x2x22x16xf32, #tpu.memory_space<vmem>>, vector<1x1x2x3x16xf32>
      %22 = vector.shape_cast %21 : vector<1x1x2x3x16xf32> to vector<2x3x16xf32>
      %23 = vector.shape_cast %17 : vector<2x3x16xf32> to vector<1x1x2x3x16xf32>
      tpu.vector_store %arg8[%c0_20, %c3_21, %c0_22, %c19, %c0_23], %23 {strides = array<i32>} : memref<2x7x2x22x16xf32, #tpu.memory_space<vmem>>, vector<1x1x2x3x16xf32>,
      %24 = vector.extract_strided_slice %16 {offsets = [0, 0], sizes = [2, 16], strides = [1, 1]} : vector<2x256xf32> to vector<2x16xf32>
      %c0_24 = arith.constant 0 : index
      %c3_25 = arith.constant 3 : index
      %c0_26 = arith.constant 0 : index
      %c3_27 = arith.constant 3 : index
      %c0_28 = arith.constant 0 : index
      %25 = vector.load %arg8[%c0_24, %c3_25, %c0_26, %c3_27, %c0_28] : memref<2x7x2x22x16xf32, #tpu.memory_space<vmem>>, vector<1x1x2x1x16xf32>
      %26 = vector.shape_cast %25 : vector<1x1x2x1x16xf32> to vector<2x16xf32>
      %27 = vector.shape_cast %24 : vector<2x16xf32> to vector<1x1x2x1x16xf32>
      tpu.vector_store %arg8[%c0_24, %c3_25, %c0_26, %c3_27, %c0_28], %27 {strides = array<i32>} : memref<2x7x2x22x16xf32, #tpu.memory_space<vmem>>, vector<1x1x2x1x16xf32>,
      %28 = vector.extract_strided_slice %16 {offsets = [0, 16], sizes = [2, 16], strides = [1, 1]} : vector<2x256xf32> to vector<2x16xf32>
      %c0_29 = arith.constant 0 : index
      %c3_30 = arith.constant 3 : index
      %c0_31 = arith.constant 0 : index
      %c4 = arith.constant 4 : index
      %c0_32 = arith.constant 0 : index
      %29 = vector.load %arg8[%c0_29, %c3_30, %c0_31, %c4, %c0_32] : memref<2x7x2x22x16xf32, #tpu.memory_space<vmem>>, vector<1x1x2x1x16xf32>
      %30 = vector.shape_cast %29 : vector<1x1x2x1x16xf32> to vector<2x16xf32>
      %31 = vector.shape_cast %28 : vector<2x16xf32> to vector<1x1x2x1x16xf32>
      tpu.vector_store %arg8[%c0_29, %c3_30, %c0_31, %c4, %c0_32], %31 {strides = array<i32>} : memref<2x7x2x22x16xf32, #tpu.memory_space<vmem>>, vector<1x1x2x1x16xf32>,
      %32 = vector.extract_strided_slice %16 {offsets = [0, 32], sizes = [2, 16], strides = [1, 1]} : vector<2x256xf32> to vector<2x16xf32>
      %c0_33 = arith.constant 0 : index
      %c3_34 = arith.constant 3 : index
      %c0_35 = arith.constant 0 : index
      %c5 = arith.constant 5 : index
      %c0_36 = arith.constant 0 : index
      %33 = vector.load %arg8[%c0_33, %c3_34, %c0_35, %c5, %c0_36] : memref<2x7x2x22x16xf32, #tpu.memory_space<vmem>>, vector<1x1x2x1x16xf32>
      %34 = vector.shape_cast %33 : vector<1x1x2x1x16xf32> to vector<2x16xf32>
      %35 = vector.shape_cast %32 : vector<2x16xf32> to vector<1x1x2x1x16xf32>
      tpu.vector_store %arg8[%c0_33, %c3_34, %c0_35, %c5, %c0_36], %35 {strides = array<i32>} : memref<2x7x2x22x16xf32, #tpu.memory_space<vmem>>, vector<1x1x2x1x16xf32>,
      %36 = vector.extract_strided_slice %16 {offsets = [0, 48], sizes = [2, 16], strides = [1, 1]} : vector<2x256xf32> to vector<2x16xf32>
      %c0_37 = arith.constant 0 : index
      %c3_38 = arith.constant 3 : index
      %c0_39 = arith.constant 0 : index
      %c6 = arith.constant 6 : index
      %c0_40 = arith.constant 0 : index
      %37 = vector.load %arg8[%c0_37, %c3_38, %c0_39, %c6, %c0_40] : memref<2x7x2x22x16xf32, #tpu.memory_space<vmem>>, vector<1x1x2x1x16xf32>
      %38 = vector.shape_cast %37 : vector<1x1x2x1x16xf32> to vector<2x16xf32>
      %39 = vector.shape_cast %36 : vector<2x16xf32> to vector<1x1x2x1x16xf32>
      tpu.vector_store %arg8[%c0_37, %c3_38, %c0_39, %c6, %c0_40], %39 {strides = array<i32>} : memref<2x7x2x22x16xf32, #tpu.memory_space<vmem>>, vector<1x1x2x1x16xf32>,
      %40 = vector.extract_strided_slice %16 {offsets = [0, 64], sizes = [2, 16], strides = [1, 1]} : vector<2x256xf32> to vector<2x16xf32>
      %c0_41 = arith.constant 0 : index
      %c3_42 = arith.constant 3 : index
      %c0_43 = arith.constant 0 : index
      %c7 = arith.constant 7 : index
      %c0_44 = arith.constant 0 : index
      %41 = vector.load %arg8[%c0_41, %c3_42, %c0_43, %c7, %c0_44] : memref<2x7x2x22x16xf32, #tpu.memory_space<vmem>>, vector<1x1x2x1x16xf32>
      %42 = vector.shape_cast %41 : vector<1x1x2x1x16xf32> to vector<2x16xf32>
      %43 = vector.shape_cast %40 : vector<2x16xf32> to vector<1x1x2x1x16xf32>
      tpu.vector_store %arg8[%c0_41, %c3_42, %c0_43, %c7, %c0_44], %43 {strides = array<i32>} : memref<2x7x2x22x16xf32, #tpu.memory_space<vmem>>, vector<1x1x2x1x16xf32>,
      %44 = vector.extract_strided_slice %16 {offsets = [0, 80], sizes = [2, 16], strides = [1, 1]} : vector<2x256xf32> to vector<2x16xf32>
      %c0_45 = arith.constant 0 : index
      %c3_46 = arith.constant 3 : index
      %c0_47 = arith.constant 0 : index
      %c8 = arith.constant 8 : index
      %c0_48 = arith.constant 0 : index
      %45 = vector.load %arg8[%c0_45, %c3_46, %c0_47, %c8, %c0_48] : memref<2x7x2x22x16xf32, #tpu.memory_space<vmem>>, vector<1x1x2x1x16xf32>
      %46 = vector.shape_cast %45 : vector<1x1x2x1x16xf32> to vector<2x16xf32>
      %47 = vector.shape_cast %44 : vector<2x16xf32> to vector<1x1x2x1x16xf32>
      tpu.vector_store %arg8[%c0_45, %c3_46, %c0_47, %c8, %c0_48], %47 {strides = array<i32>} : memref<2x7x2x22x16xf32, #tpu.memory_space<vmem>>, vector<1x1x2x1x16xf32>,
      %48 = vector.extract_strided_slice %16 {offsets = [0, 96], sizes = [2, 16], strides = [1, 1]} : vector<2x256xf32> to vector<2x16xf32>
      %c0_49 = arith.constant 0 : index
      %c3_50 = arith.constant 3 : index
      %c0_51 = arith.constant 0 : index
      %c9 = arith.constant 9 : index
      %c0_52 = arith.constant 0 : index
      %49 = vector.load %arg8[%c0_49, %c3_50, %c0_51, %c9, %c0_52] : memref<2x7x2x22x16xf32, #tpu.memory_space<vmem>>, vector<1x1x2x1x16xf32>
      %50 = vector.shape_cast %49 : vector<1x1x2x1x16xf32> to vector<2x16xf32>
      %51 = vector.shape_cast %48 : vector<2x16xf32> to vector<1x1x2x1x16xf32>
      tpu.vector_store %arg8[%c0_49, %c3_50, %c0_51, %c9, %c0_52], %51 {strides = array<i32>} : memref<2x7x2x22x16xf32, #tpu.memory_space<vmem>>, vector<1x1x2x1x16xf32>,
      %52 = vector.extract_strided_slice %16 {offsets = [0, 112], sizes = [2, 16], strides = [1, 1]} : vector<2x256xf32> to vector<2x16xf32>
      %c0_53 = arith.constant 0 : index
      %c3_54 = arith.constant 3 : index
      %c0_55 = arith.constant 0 : index
      %c10 = arith.constant 10 : index
      %c0_56 = arith.constant 0 : index
      %53 = vector.load %arg8[%c0_53, %c3_54, %c0_55, %c10, %c0_56] : memref<2x7x2x22x16xf32, #tpu.memory_space<vmem>>, vector<1x1x2x1x16xf32>
      %54 = vector.shape_cast %53 : vector<1x1x2x1x16xf32> to vector<2x16xf32>
      %55 = vector.shape_cast %52 : vector<2x16xf32> to vector<1x1x2x1x16xf32>
      tpu.vector_store %arg8[%c0_53, %c3_54, %c0_55, %c10, %c0_56], %55 {strides = array<i32>} : memref<2x7x2x22x16xf32, #tpu.memory_space<vmem>>, vector<1x1x2x1x16xf32>,
      %56 = vector.extract_strided_slice %16 {offsets = [0, 128], sizes = [2, 16], strides = [1, 1]} : vector<2x256xf32> to vector<2x16xf32>
      %c0_57 = arith.constant 0 : index
      %c3_58 = arith.constant 3 : index
      %c0_59 = arith.constant 0 : index
      %c11 = arith.constant 11 : index
      %c0_60 = arith.constant 0 : index
      %57 = vector.load %arg8[%c0_57, %c3_58, %c0_59, %c11, %c0_60] : memref<2x7x2x22x16xf32, #tpu.memory_space<vmem>>, vector<1x1x2x1x16xf32>
      %58 = vector.shape_cast %57 : vector<1x1x2x1x16xf32> to vector<2x16xf32>
      %59 = vector.shape_cast %56 : vector<2x16xf32> to vector<1x1x2x1x16xf32>
      tpu.vector_store %arg8[%c0_57, %c3_58, %c0_59, %c11, %c0_60], %59 {strides = array<i32>} : memref<2x7x2x22x16xf32, #tpu.memory_space<vmem>>, vector<1x1x2x1x16xf32>,
      %60 = vector.extract_strided_slice %16 {offsets = [0, 144], sizes = [2, 16], strides = [1, 1]} : vector<2x256xf32> to vector<2x16xf32>
      %c0_61 = arith.constant 0 : index
      %c3_62 = arith.constant 3 : index
      %c0_63 = arith.constant 0 : index
      %c12 = arith.constant 12 : index
      %c0_64 = arith.constant 0 : index
      %61 = vector.load %arg8[%c0_61, %c3_62, %c0_63, %c12, %c0_64] : memref<2x7x2x22x16xf32, #tpu.memory_space<vmem>>, vector<1x1x2x1x16xf32>
      %62 = vector.shape_cast %61 : vector<1x1x2x1x16xf32> to vector<2x16xf32>
      %63 = vector.shape_cast %60 : vector<2x16xf32> to vector<1x1x2x1x16xf32>
      tpu.vector_store %arg8[%c0_61, %c3_62, %c0_63, %c12, %c0_64], %63 {strides = array<i32>} : memref<2x7x2x22x16xf32, #tpu.memory_space<vmem>>, vector<1x1x2x1x16xf32>,
      %64 = vector.extract_strided_slice %16 {offsets = [0, 160], sizes = [2, 16], strides = [1, 1]} : vector<2x256xf32> to vector<2x16xf32>
      %c0_65 = arith.constant 0 : index
      %c3_66 = arith.constant 3 : index
      %c0_67 = arith.constant 0 : index
      %c13 = arith.constant 13 : index
      %c0_68 = arith.constant 0 : index
      %65 = vector.load %arg8[%c0_65, %c3_66, %c0_67, %c13, %c0_68] : memref<2x7x2x22x16xf32, #tpu.memory_space<vmem>>, vector<1x1x2x1x16xf32>
      %66 = vector.shape_cast %65 : vector<1x1x2x1x16xf32> to vector<2x16xf32>
      %67 = vector.shape_cast %64 : vector<2x16xf32> to vector<1x1x2x1x16xf32>
      tpu.vector_store %arg8[%c0_65, %c3_66, %c0_67, %c13, %c0_68], %67 {strides = array<i32>} : memref<2x7x2x22x16xf32, #tpu.memory_space<vmem>>, vector<1x1x2x1x16xf32>,
      %68 = vector.extract_strided_slice %16 {offsets = [0, 176], sizes = [2, 16], strides = [1, 1]} : vector<2x256xf32> to vector<2x16xf32>
      %c0_69 = arith.constant 0 : index
      %c3_70 = arith.constant 3 : index
      %c0_71 = arith.constant 0 : index
      %c14 = arith.constant 14 : index
      %c0_72 = arith.constant 0 : index
      %69 = vector.load %arg8[%c0_69, %c3_70, %c0_71, %c14, %c0_72] : memref<2x7x2x22x16xf32, #tpu.memory_space<vmem>>, vector<1x1x2x1x16xf32>
      %70 = vector.shape_cast %69 : vector<1x1x2x1x16xf32> to vector<2x16xf32>
      %71 = vector.shape_cast %68 : vector<2x16xf32> to vector<1x1x2x1x16xf32>
      tpu.vector_store %arg8[%c0_69, %c3_70, %c0_71, %c14, %c0_72], %71 {strides = array<i32>} : memref<2x7x2x22x16xf32, #tpu.memory_space<vmem>>, vector<1x1x2x1x16xf32>,
      %72 = vector.extract_strided_slice %16 {offsets = [0, 192], sizes = [2, 16], strides = [1, 1]} : vector<2x256xf32> to vector<2x16xf32>
      %c0_73 = arith.constant 0 : index
      %c3_74 = arith.constant 3 : index
      %c0_75 = arith.constant 0 : index
      %c15 = arith.constant 15 : index
      %c0_76 = arith.constant 0 : index
      %73 = vector.load %arg8[%c0_73, %c3_74, %c0_75, %c15, %c0_76] : memref<2x7x2x22x16xf32, #tpu.memory_space<vmem>>, vector<1x1x2x1x16xf32>
      %74 = vector.shape_cast %73 : vector<1x1x2x1x16xf32> to vector<2x16xf32>
      %75 = vector.shape_cast %72 : vector<2x16xf32> to vector<1x1x2x1x16xf32>
      tpu.vector_store %arg8[%c0_73, %c3_74, %c0_75, %c15, %c0_76], %75 {strides = array<i32>} : memref<2x7x2x22x16xf32, #tpu.memory_space<vmem>>, vector<1x1x2x1x16xf32>,
      %76 = vector.extract_strided_slice %16 {offsets = [0, 208], sizes = [2, 16], strides = [1, 1]} : vector<2x256xf32> to vector<2x16xf32>
      %c0_77 = arith.constant 0 : index
      %c3_78 = arith.constant 3 : index
      %c0_79 = arith.constant 0 : index
      %c16 = arith.constant 16 : index
      %c0_80 = arith.constant 0 : index
      %77 = vector.load %arg8[%c0_77, %c3_78, %c0_79, %c16, %c0_80] : memref<2x7x2x22x16xf32, #tpu.memory_space<vmem>>, vector<1x1x2x1x16xf32>
      %78 = vector.shape_cast %77 : vector<1x1x2x1x16xf32> to vector<2x16xf32>
      %79 = vector.shape_cast %76 : vector<2x16xf32> to vector<1x1x2x1x16xf32>
      tpu.vector_store %arg8[%c0_77, %c3_78, %c0_79, %c16, %c0_80], %79 {strides = array<i32>} : memref<2x7x2x22x16xf32, #tpu.memory_space<vmem>>, vector<1x1x2x1x16xf32>,
      %80 = vector.extract_strided_slice %16 {offsets = [0, 224], sizes = [2, 16], strides = [1, 1]} : vector<2x256xf32> to vector<2x16xf32>
      %c0_81 = arith.constant 0 : index
      %c3_82 = arith.constant 3 : index
      %c0_83 = arith.constant 0 : index
      %c17 = arith.constant 17 : index
      %c0_84 = arith.constant 0 : index
      %81 = vector.load %arg8[%c0_81, %c3_82, %c0_83, %c17, %c0_84] : memref<2x7x2x22x16xf32, #tpu.memory_space<vmem>>, vector<1x1x2x1x16xf32>
      %82 = vector.shape_cast %81 : vector<1x1x2x1x16xf32> to vector<2x16xf32>
      %83 = vector.shape_cast %80 : vector<2x16xf32> to vector<1x1x2x1x16xf32>
      tpu.vector_store %arg8[%c0_81, %c3_82, %c0_83, %c17, %c0_84], %83 {strides = array<i32>} : memref<2x7x2x22x16xf32, #tpu.memory_space<vmem>>, vector<1x1x2x1x16xf32>,
      %84 = vector.extract_strided_slice %16 {offsets = [0, 240], sizes = [2, 16], strides = [1, 1]} : vector<2x256xf32> to vector<2x16xf32>
      %c0_85 = arith.constant 0 : index
      %c3_86 = arith.constant 3 : index
      %c0_87 = arith.constant 0 : index
      %c18 = arith.constant 18 : index
      %c0_88 = arith.constant 0 : index
      %85 = vector.load %arg8[%c0_85, %c3_86, %c0_87, %c18, %c0_88] : memref<2x7x2x22x16xf32, #tpu.memory_space<vmem>>, vector<1x1x2x1x16xf32>
      %86 = vector.shape_cast %85 : vector<1x1x2x1x16xf32> to vector<2x16xf32>
      %87 = vector.shape_cast %84 : vector<2x16xf32> to vector<1x1x2x1x16xf32>
      tpu.vector_store %arg8[%c0_85, %c3_86, %c0_87, %c18, %c0_88], %87 {strides = array<i32>} : memref<2x7x2x22x16xf32, #tpu.memory_space<vmem>>, vector<1x1x2x1x16xf32>,
      %c1 = arith.constant 1 : index
      %c3_89 = arith.constant 3 : index
      %c0_90 = arith.constant 0 : index
      %c0_91 = arith.constant 0 : index
      %c0_92 = arith.constant 0 : index
      %88 = vector.load %arg8[%c1, %c3_89, %c0_90, %c0_91, %c0_92] : memref<2x7x2x22x16xf32, #tpu.memory_space<vmem>>, vector<1x1x2x3x16xf32>
      %89 = vector.shape_cast %88 : vector<1x1x2x3x16xf32> to vector<2x3x16xf32>
      %90 = vector.shape_cast %17 : vector<2x3x16xf32> to vector<1x1x2x3x16xf32>
      tpu.vector_store %arg8[%c1, %c3_89, %c0_90, %c0_91, %c0_92], %90 {strides = array<i32>} : memref<2x7x2x22x16xf32, #tpu.memory_space<vmem>>, vector<1x1x2x3x16xf32>,
      %c1_93 = arith.constant 1 : index
      %c3_94 = arith.constant 3 : index
      %c0_95 = arith.constant 0 : index
      %c19_96 = arith.constant 19 : index
      %c0_97 = arith.constant 0 : index
      %91 = vector.load %arg8[%c1_93, %c3_94, %c0_95, %c19_96, %c0_97] : memref<2x7x2x22x16xf32, #tpu.memory_space<vmem>>, vector<1x1x2x3x16xf32>
      %92 = vector.shape_cast %91 : vector<1x1x2x3x16xf32> to vector<2x3x16xf32>
      %93 = vector.shape_cast %17 : vector<2x3x16xf32> to vector<1x1x2x3x16xf32>
      tpu.vector_store %arg8[%c1_93, %c3_94, %c0_95, %c19_96, %c0_97], %93 {strides = array<i32>} : memref<2x7x2x22x16xf32, #tpu.memory_space<vmem>>, vector<1x1x2x3x16xf32>,
      %94 = vector.extract_strided_slice %9 {offsets = [0, 0], sizes = [2, 16], strides = [1, 1]} : vector<2x256xf32> to vector<2x16xf32>
      %c1_98 = arith.constant 1 : index
      %c3_99 = arith.constant 3 : index
      %c0_100 = arith.constant 0 : index
      %c3_101 = arith.constant 3 : index
      %c0_102 = arith.constant 0 : index
      %95 = vector.load %arg8[%c1_98, %c3_99, %c0_100, %c3_101, %c0_102] : memref<2x7x2x22x16xf32, #tpu.memory_space<vmem>>, vector<1x1x2x1x16xf32>
      %96 = vector.shape_cast %95 : vector<1x1x2x1x16xf32> to vector<2x16xf32>
      %97 = vector.shape_cast %94 : vector<2x16xf32> to vector<1x1x2x1x16xf32>
      tpu.vector_store %arg8[%c1_98, %c3_99, %c0_100, %c3_101, %c0_102], %97 {strides = array<i32>} : memref<2x7x2x22x16xf32, #tpu.memory_space<vmem>>, vector<1x1x2x1x16xf32>,
      %98 = vector.extract_strided_slice %9 {offsets = [0, 16], sizes = [2, 16], strides = [1, 1]} : vector<2x256xf32> to vector<2x16xf32>
      %c1_103 = arith.constant 1 : index
      %c3_104 = arith.constant 3 : index
      %c0_105 = arith.constant 0 : index
      %c4_106 = arith.constant 4 : index
      %c0_107 = arith.constant 0 : index
      %99 = vector.load %arg8[%c1_103, %c3_104, %c0_105, %c4_106, %c0_107] : memref<2x7x2x22x16xf32, #tpu.memory_space<vmem>>, vector<1x1x2x1x16xf32>
      %100 = vector.shape_cast %99 : vector<1x1x2x1x16xf32> to vector<2x16xf32>
      %101 = vector.shape_cast %98 : vector<2x16xf32> to vector<1x1x2x1x16xf32>
      tpu.vector_store %arg8[%c1_103, %c3_104, %c0_105, %c4_106, %c0_107], %101 {strides = array<i32>} : memref<2x7x2x22x16xf32, #tpu.memory_space<vmem>>, vector<1x1x2x1x16xf32>,
      %102 = vector.extract_strided_slice %9 {offsets = [0, 32], sizes = [2, 16], strides = [1, 1]} : vector<2x256xf32> to vector<2x16xf32>
      %c1_108 = arith.constant 1 : index
      %c3_109 = arith.constant 3 : index
      %c0_110 = arith.constant 0 : index
      %c5_111 = arith.constant 5 : index
      %c0_112 = arith.constant 0 : index
      %103 = vector.load %arg8[%c1_108, %c3_109, %c0_110, %c5_111, %c0_112] : memref<2x7x2x22x16xf32, #tpu.memory_space<vmem>>, vector<1x1x2x1x16xf32>
      %104 = vector.shape_cast %103 : vector<1x1x2x1x16xf32> to vector<2x16xf32>
      %105 = vector.shape_cast %102 : vector<2x16xf32> to vector<1x1x2x1x16xf32>
      tpu.vector_store %arg8[%c1_108, %c3_109, %c0_110, %c5_111, %c0_112], %105 {strides = array<i32>} : memref<2x7x2x22x16xf32, #tpu.memory_space<vmem>>, vector<1x1x2x1x16xf32>,
      %106 = vector.extract_strided_slice %9 {offsets = [0, 48], sizes = [2, 16], strides = [1, 1]} : vector<2x256xf32> to vector<2x16xf32>
      %c1_113 = arith.constant 1 : index
      %c3_114 = arith.constant 3 : index
      %c0_115 = arith.constant 0 : index
      %c6_116 = arith.constant 6 : index
      %c0_117 = arith.constant 0 : index
      %107 = vector.load %arg8[%c1_113, %c3_114, %c0_115, %c6_116, %c0_117] : memref<2x7x2x22x16xf32, #tpu.memory_space<vmem>>, vector<1x1x2x1x16xf32>
      %108 = vector.shape_cast %107 : vector<1x1x2x1x16xf32> to vector<2x16xf32>
      %109 = vector.shape_cast %106 : vector<2x16xf32> to vector<1x1x2x1x16xf32>
      tpu.vector_store %arg8[%c1_113, %c3_114, %c0_115, %c6_116, %c0_117], %109 {strides = array<i32>} : memref<2x7x2x22x16xf32, #tpu.memory_space<vmem>>, vector<1x1x2x1x16xf32>,
      %110 = vector.extract_strided_slice %9 {offsets = [0, 64], sizes = [2, 16], strides = [1, 1]} : vector<2x256xf32> to vector<2x16xf32>
      %c1_118 = arith.constant 1 : index
      %c3_119 = arith.constant 3 : index
      %c0_120 = arith.constant 0 : index
      %c7_121 = arith.constant 7 : index
      %c0_122 = arith.constant 0 : index
      %111 = vector.load %arg8[%c1_118, %c3_119, %c0_120, %c7_121, %c0_122] : memref<2x7x2x22x16xf32, #tpu.memory_space<vmem>>, vector<1x1x2x1x16xf32>
      %112 = vector.shape_cast %111 : vector<1x1x2x1x16xf32> to vector<2x16xf32>
      %113 = vector.shape_cast %110 : vector<2x16xf32> to vector<1x1x2x1x16xf32>
      tpu.vector_store %arg8[%c1_118, %c3_119, %c0_120, %c7_121, %c0_122], %113 {strides = array<i32>} : memref<2x7x2x22x16xf32, #tpu.memory_space<vmem>>, vector<1x1x2x1x16xf32>,
      %114 = vector.extract_strided_slice %9 {offsets = [0, 80], sizes = [2, 16], strides = [1, 1]} : vector<2x256xf32> to vector<2x16xf32>
      %c1_123 = arith.constant 1 : index
      %c3_124 = arith.constant 3 : index
      %c0_125 = arith.constant 0 : index
      %c8_126 = arith.constant 8 : index
      %c0_127 = arith.constant 0 : index
      %115 = vector.load %arg8[%c1_123, %c3_124, %c0_125, %c8_126, %c0_127] : memref<2x7x2x22x16xf32, #tpu.memory_space<vmem>>, vector<1x1x2x1x16xf32>
      %116 = vector.shape_cast %115 : vector<1x1x2x1x16xf32> to vector<2x16xf32>
      %117 = vector.shape_cast %114 : vector<2x16xf32> to vector<1x1x2x1x16xf32>
      tpu.vector_store %arg8[%c1_123, %c3_124, %c0_125, %c8_126, %c0_127], %117 {strides = array<i32>} : memref<2x7x2x22x16xf32, #tpu.memory_space<vmem>>, vector<1x1x2x1x16xf32>,
      %118 = vector.extract_strided_slice %9 {offsets = [0, 96], sizes = [2, 16], strides = [1, 1]} : vector<2x256xf32> to vector<2x16xf32>
      %c1_128 = arith.constant 1 : index
      %c3_129 = arith.constant 3 : index
      %c0_130 = arith.constant 0 : index
      %c9_131 = arith.constant 9 : index
      %c0_132 = arith.constant 0 : index
      %119 = vector.load %arg8[%c1_128, %c3_129, %c0_130, %c9_131, %c0_132] : memref<2x7x2x22x16xf32, #tpu.memory_space<vmem>>, vector<1x1x2x1x16xf32>
      %120 = vector.shape_cast %119 : vector<1x1x2x1x16xf32> to vector<2x16xf32>
      %121 = vector.shape_cast %118 : vector<2x16xf32> to vector<1x1x2x1x16xf32>
      tpu.vector_store %arg8[%c1_128, %c3_129, %c0_130, %c9_131, %c0_132], %121 {strides = array<i32>} : memref<2x7x2x22x16xf32, #tpu.memory_space<vmem>>, vector<1x1x2x1x16xf32>,
      %122 = vector.extract_strided_slice %9 {offsets = [0, 112], sizes = [2, 16], strides = [1, 1]} : vector<2x256xf32> to vector<2x16xf32>
      %c1_133 = arith.constant 1 : index
      %c3_134 = arith.constant 3 : index
      %c0_135 = arith.constant 0 : index
      %c10_136 = arith.constant 10 : index
      %c0_137 = arith.constant 0 : index
      %123 = vector.load %arg8[%c1_133, %c3_134, %c0_135, %c10_136, %c0_137] : memref<2x7x2x22x16xf32, #tpu.memory_space<vmem>>, vector<1x1x2x1x16xf32>
      %124 = vector.shape_cast %123 : vector<1x1x2x1x16xf32> to vector<2x16xf32>
      %125 = vector.shape_cast %122 : vector<2x16xf32> to vector<1x1x2x1x16xf32>
      tpu.vector_store %arg8[%c1_133, %c3_134, %c0_135, %c10_136, %c0_137], %125 {strides = array<i32>} : memref<2x7x2x22x16xf32, #tpu.memory_space<vmem>>, vector<1x1x2x1x16xf32>,
      %126 = vector.extract_strided_slice %9 {offsets = [0, 128], sizes = [2, 16], strides = [1, 1]} : vector<2x256xf32> to vector<2x16xf32>
      %c1_138 = arith.constant 1 : index
      %c3_139 = arith.constant 3 : index
      %c0_140 = arith.constant 0 : index
      %c11_141 = arith.constant 11 : index
      %c0_142 = arith.constant 0 : index
      %127 = vector.load %arg8[%c1_138, %c3_139, %c0_140, %c11_141, %c0_142] : memref<2x7x2x22x16xf32, #tpu.memory_space<vmem>>, vector<1x1x2x1x16xf32>
      %128 = vector.shape_cast %127 : vector<1x1x2x1x16xf32> to vector<2x16xf32>
      %129 = vector.shape_cast %126 : vector<2x16xf32> to vector<1x1x2x1x16xf32>
      tpu.vector_store %arg8[%c1_138, %c3_139, %c0_140, %c11_141, %c0_142], %129 {strides = array<i32>} : memref<2x7x2x22x16xf32, #tpu.memory_space<vmem>>, vector<1x1x2x1x16xf32>,
      %130 = vector.extract_strided_slice %9 {offsets = [0, 144], sizes = [2, 16], strides = [1, 1]} : vector<2x256xf32> to vector<2x16xf32>
      %c1_143 = arith.constant 1 : index
      %c3_144 = arith.constant 3 : index
      %c0_145 = arith.constant 0 : index
      %c12_146 = arith.constant 12 : index
      %c0_147 = arith.constant 0 : index
      %131 = vector.load %arg8[%c1_143, %c3_144, %c0_145, %c12_146, %c0_147] : memref<2x7x2x22x16xf32, #tpu.memory_space<vmem>>, vector<1x1x2x1x16xf32>
      %132 = vector.shape_cast %131 : vector<1x1x2x1x16xf32> to vector<2x16xf32>
      %133 = vector.shape_cast %130 : vector<2x16xf32> to vector<1x1x2x1x16xf32>
      tpu.vector_store %arg8[%c1_143, %c3_144, %c0_145, %c12_146, %c0_147], %133 {strides = array<i32>} : memref<2x7x2x22x16xf32, #tpu.memory_space<vmem>>, vector<1x1x2x1x16xf32>,
      %134 = vector.extract_strided_slice %9 {offsets = [0, 160], sizes = [2, 16], strides = [1, 1]} : vector<2x256xf32> to vector<2x16xf32>
      %c1_148 = arith.constant 1 : index
      %c3_149 = arith.constant 3 : index
      %c0_150 = arith.constant 0 : index
      %c13_151 = arith.constant 13 : index
      %c0_152 = arith.constant 0 : index
      %135 = vector.load %arg8[%c1_148, %c3_149, %c0_150, %c13_151, %c0_152] : memref<2x7x2x22x16xf32, #tpu.memory_space<vmem>>, vector<1x1x2x1x16xf32>
      %136 = vector.shape_cast %135 : vector<1x1x2x1x16xf32> to vector<2x16xf32>
      %137 = vector.shape_cast %134 : vector<2x16xf32> to vector<1x1x2x1x16xf32>
      tpu.vector_store %arg8[%c1_148, %c3_149, %c0_150, %c13_151, %c0_152], %137 {strides = array<i32>} : memref<2x7x2x22x16xf32, #tpu.memory_space<vmem>>, vector<1x1x2x1x16xf32>,
      %138 = vector.extract_strided_slice %9 {offsets = [0, 176], sizes = [2, 16], strides = [1, 1]} : vector<2x256xf32> to vector<2x16xf32>
      %c1_153 = arith.constant 1 : index
      %c3_154 = arith.constant 3 : index
      %c0_155 = arith.constant 0 : index
      %c14_156 = arith.constant 14 : index
      %c0_157 = arith.constant 0 : index
      %139 = vector.load %arg8[%c1_153, %c3_154, %c0_155, %c14_156, %c0_157] : memref<2x7x2x22x16xf32, #tpu.memory_space<vmem>>, vector<1x1x2x1x16xf32>
      %140 = vector.shape_cast %139 : vector<1x1x2x1x16xf32> to vector<2x16xf32>
      %141 = vector.shape_cast %138 : vector<2x16xf32> to vector<1x1x2x1x16xf32>
      tpu.vector_store %arg8[%c1_153, %c3_154, %c0_155, %c14_156, %c0_157], %141 {strides = array<i32>} : memref<2x7x2x22x16xf32, #tpu.memory_space<vmem>>, vector<1x1x2x1x16xf32>,
      %142 = vector.extract_strided_slice %9 {offsets = [0, 192], sizes = [2, 16], strides = [1, 1]} : vector<2x256xf32> to vector<2x16xf32>
      %c1_158 = arith.constant 1 : index
      %c3_159 = arith.constant 3 : index
      %c0_160 = arith.constant 0 : index
      %c15_161 = arith.constant 15 : index
      %c0_162 = arith.constant 0 : index
      %143 = vector.load %arg8[%c1_158, %c3_159, %c0_160, %c15_161, %c0_162] : memref<2x7x2x22x16xf32, #tpu.memory_space<vmem>>, vector<1x1x2x1x16xf32>
      %144 = vector.shape_cast %143 : vector<1x1x2x1x16xf32> to vector<2x16xf32>
      %145 = vector.shape_cast %142 : vector<2x16xf32> to vector<1x1x2x1x16xf32>
      tpu.vector_store %arg8[%c1_158, %c3_159, %c0_160, %c15_161, %c0_162], %145 {strides = array<i32>} : memref<2x7x2x22x16xf32, #tpu.memory_space<vmem>>, vector<1x1x2x1x16xf32>,
      %146 = vector.extract_strided_slice %9 {offsets = [0, 208], sizes = [2, 16], strides = [1, 1]} : vector<2x256xf32> to vector<2x16xf32>
      %c1_163 = arith.constant 1 : index
      %c3_164 = arith.constant 3 : index
      %c0_165 = arith.constant 0 : index
      %c16_166 = arith.constant 16 : index
      %c0_167 = arith.constant 0 : index
      %147 = vector.load %arg8[%c1_163, %c3_164, %c0_165, %c16_166, %c0_167] : memref<2x7x2x22x16xf32, #tpu.memory_space<vmem>>, vector<1x1x2x1x16xf32>
      %148 = vector.shape_cast %147 : vector<1x1x2x1x16xf32> to vector<2x16xf32>
      %149 = vector.shape_cast %146 : vector<2x16xf32> to vector<1x1x2x1x16xf32>
      tpu.vector_store %arg8[%c1_163, %c3_164, %c0_165, %c16_166, %c0_167], %149 {strides = array<i32>} : memref<2x7x2x22x16xf32, #tpu.memory_space<vmem>>, vector<1x1x2x1x16xf32>,
      %150 = vector.extract_strided_slice %9 {offsets = [0, 224], sizes = [2, 16], strides = [1, 1]} : vector<2x256xf32> to vector<2x16xf32>
      %c1_168 = arith.constant 1 : index
      %c3_169 = arith.constant 3 : index
      %c0_170 = arith.constant 0 : index
      %c17_171 = arith.constant 17 : index
      %c0_172 = arith.constant 0 : index
      %151 = vector.load %arg8[%c1_168, %c3_169, %c0_170, %c17_171, %c0_172] : memref<2x7x2x22x16xf32, #tpu.memory_space<vmem>>, vector<1x1x2x1x16xf32>
      %152 = vector.shape_cast %151 : vector<1x1x2x1x16xf32> to vector<2x16xf32>
      %153 = vector.shape_cast %150 : vector<2x16xf32> to vector<1x1x2x1x16xf32>
      tpu.vector_store %arg8[%c1_168, %c3_169, %c0_170, %c17_171, %c0_172], %153 {strides = array<i32>} : memref<2x7x2x22x16xf32, #tpu.memory_space<vmem>>, vector<1x1x2x1x16xf32>,
      %154 = vector.extract_strided_slice %9 {offsets = [0, 240], sizes = [2, 16], strides = [1, 1]} : vector<2x256xf32> to vector<2x16xf32>
      %c1_173 = arith.constant 1 : index
      %c3_174 = arith.constant 3 : index
      %c0_175 = arith.constant 0 : index
      %c18_176 = arith.constant 18 : index
      %c0_177 = arith.constant 0 : index
      %155 = vector.load %arg8[%c1_173, %c3_174, %c0_175, %c18_176, %c0_177] : memref<2x7x2x22x16xf32, #tpu.memory_space<vmem>>, vector<1x1x2x1x16xf32>
      %156 = vector.shape_cast %155 : vector<1x1x2x1x16xf32> to vector<2x16xf32>
      %157 = vector.shape_cast %154 : vector<2x16xf32> to vector<1x1x2x1x16xf32>
      tpu.vector_store %arg8[%c1_173, %c3_174, %c0_175, %c18_176, %c0_177], %157 {strides = array<i32>} : memref<2x7x2x22x16xf32, #tpu.memory_space<vmem>>, vector<1x1x2x1x16xf32>,
      %c0_178 = arith.constant 0 : index
      %c3_179 = arith.constant 3 : index
      %c0_180 = arith.constant 0 : index
      %c0_181 = arith.constant 0 : index
      %c0_182 = arith.constant 0 : index
      %158 = vector.load %arg8[%c0_178, %c3_179, %c0_180, %c0_181, %c0_182] : memref<2x7x2x22x16xf32, #tpu.memory_space<vmem>>, vector<1x1x2x22x16xf32>
      %159 = vector.shape_cast %158 : vector<1x1x2x22x16xf32> to vector<2x22x16xf32>
      %cst_183 = arith.constant 0.000000e+00 : f32
      %160 = vector.broadcast %cst_183 : f32 to vector<2x22x3xf32>
      %161 = vector.extract_strided_slice %159 {offsets = [0, 0, 0], sizes = [2, 22, 13], strides = [1, 1, 1]} : vector<2x22x16xf32> to vector<2x22x13xf32>
      %162 = tpu.concatenate %160, %161 in 2 : vector<2x22x3xf32>, vector<2x22x13xf32> -> vector<2x22x16xf32>
      %c0_184 = arith.constant 0 : index
      %c0_185 = arith.constant 0 : index
      %c0_186 = arith.constant 0 : index
      %c0_187 = arith.constant 0 : index
      %c0_188 = arith.constant 0 : index
      %163 = vector.load %arg8[%c0_184, %c0_185, %c0_186, %c0_187, %c0_188] : memref<2x7x2x22x16xf32, #tpu.memory_space<vmem>>, vector<1x1x2x22x16xf32>
      %164 = vector.shape_cast %163 : vector<1x1x2x22x16xf32> to vector<2x22x16xf32>
      %165 = vector.shape_cast %162 : vector<2x22x16xf32> to vector<1x1x2x22x16xf32>
      tpu.vector_store %arg8[%c0_184, %c0_185, %c0_186, %c0_187, %c0_188], %165 {strides = array<i32>} : memref<2x7x2x22x16xf32, #tpu.memory_space<vmem>>, vector<1x1x2x22x16xf32>,
      %cst_189 = arith.constant 0.000000e+00 : f32
      %166 = vector.broadcast %cst_189 : f32 to vector<2x22x2xf32>
      %167 = vector.extract_strided_slice %159 {offsets = [0, 0, 0], sizes = [2, 22, 14], strides = [1, 1, 1]} : vector<2x22x16xf32> to vector<2x22x14xf32>
      %168 = tpu.concatenate %166, %167 in 2 : vector<2x22x2xf32>, vector<2x22x14xf32> -> vector<2x22x16xf32>
      %c0_190 = arith.constant 0 : index
      %c1_191 = arith.constant 1 : index
      %c0_192 = arith.constant 0 : index
      %c0_193 = arith.constant 0 : index
      %c0_194 = arith.constant 0 : index
      %169 = vector.load %arg8[%c0_190, %c1_191, %c0_192, %c0_193, %c0_194] : memref<2x7x2x22x16xf32, #tpu.memory_space<vmem>>, vector<1x1x2x22x16xf32>
      %170 = vector.shape_cast %169 : vector<1x1x2x22x16xf32> to vector<2x22x16xf32>
      %171 = vector.shape_cast %168 : vector<2x22x16xf32> to vector<1x1x2x22x16xf32>
      tpu.vector_store %arg8[%c0_190, %c1_191, %c0_192, %c0_193, %c0_194], %171 {strides = array<i32>} : memref<2x7x2x22x16xf32, #tpu.memory_space<vmem>>, vector<1x1x2x22x16xf32>,
      %cst_195 = arith.constant 0.000000e+00 : f32
      %172 = vector.broadcast %cst_195 : f32 to vector<2x22x1xf32>
      %173 = vector.extract_strided_slice %159 {offsets = [0, 0, 0], sizes = [2, 22, 15], strides = [1, 1, 1]} : vector<2x22x16xf32> to vector<2x22x15xf32>
      %174 = tpu.concatenate %172, %173 in 2 : vector<2x22x1xf32>, vector<2x22x15xf32> -> vector<2x22x16xf32>
      %c0_196 = arith.constant 0 : index
      %c2 = arith.constant 2 : index
      %c0_197 = arith.constant 0 : index
      %c0_198 = arith.constant 0 : index
      %c0_199 = arith.constant 0 : index
      %175 = vector.load %arg8[%c0_196, %c2, %c0_197, %c0_198, %c0_199] : memref<2x7x2x22x16xf32, #tpu.memory_space<vmem>>, vector<1x1x2x22x16xf32>
      %176 = vector.shape_cast %175 : vector<1x1x2x22x16xf32> to vector<2x22x16xf32>
      %177 = vector.shape_cast %174 : vector<2x22x16xf32> to vector<1x1x2x22x16xf32>
      tpu.vector_store %arg8[%c0_196, %c2, %c0_197, %c0_198, %c0_199], %177 {strides = array<i32>} : memref<2x7x2x22x16xf32, #tpu.memory_space<vmem>>, vector<1x1x2x22x16xf32>,
      %cst_200 = arith.constant 0.000000e+00 : f32
      %178 = vector.broadcast %cst_200 : f32 to vector<2x22x1xf32>
      %179 = vector.extract_strided_slice %159 {offsets = [0, 0, 1], sizes = [2, 22, 15], strides = [1, 1, 1]} : vector<2x22x16xf32> to vector<2x22x15xf32>
      %180 = tpu.concatenate %179, %178 in 2 : vector<2x22x15xf32>, vector<2x22x1xf32> -> vector<2x22x16xf32>
      %c0_201 = arith.constant 0 : index
      %c4_202 = arith.constant 4 : index
      %c0_203 = arith.constant 0 : index
      %c0_204 = arith.constant 0 : index
      %c0_205 = arith.constant 0 : index
      %181 = vector.load %arg8[%c0_201, %c4_202, %c0_203, %c0_204, %c0_205] : memref<2x7x2x22x16xf32, #tpu.memory_space<vmem>>, vector<1x1x2x22x16xf32>
      %182 = vector.shape_cast %181 : vector<1x1x2x22x16xf32> to vector<2x22x16xf32>
      %183 = vector.shape_cast %180 : vector<2x22x16xf32> to vector<1x1x2x22x16xf32>
      tpu.vector_store %arg8[%c0_201, %c4_202, %c0_203, %c0_204, %c0_205], %183 {strides = array<i32>} : memref<2x7x2x22x16xf32, #tpu.memory_space<vmem>>, vector<1x1x2x22x16xf32>,
      %cst_206 = arith.constant 0.000000e+00 : f32
      %184 = vector.broadcast %cst_206 : f32 to vector<2x22x2xf32>
      %185 = vector.extract_strided_slice %159 {offsets = [0, 0, 2], sizes = [2, 22, 14], strides = [1, 1, 1]} : vector<2x22x16xf32> to vector<2x22x14xf32>
      %186 = tpu.concatenate %185, %184 in 2 : vector<2x22x14xf32>, vector<2x22x2xf32> -> vector<2x22x16xf32>
      %c0_207 = arith.constant 0 : index
      %c5_208 = arith.constant 5 : index
      %c0_209 = arith.constant 0 : index
      %c0_210 = arith.constant 0 : index
      %c0_211 = arith.constant 0 : index
      %187 = vector.load %arg8[%c0_207, %c5_208, %c0_209, %c0_210, %c0_211] : memref<2x7x2x22x16xf32, #tpu.memory_space<vmem>>, vector<1x1x2x22x16xf32>
      %188 = vector.shape_cast %187 : vector<1x1x2x22x16xf32> to vector<2x22x16xf32>
      %189 = vector.shape_cast %186 : vector<2x22x16xf32> to vector<1x1x2x22x16xf32>
      tpu.vector_store %arg8[%c0_207, %c5_208, %c0_209, %c0_210, %c0_211], %189 {strides = array<i32>} : memref<2x7x2x22x16xf32, #tpu.memory_space<vmem>>, vector<1x1x2x22x16xf32>,
      %cst_212 = arith.constant 0.000000e+00 : f32
      %190 = vector.broadcast %cst_212 : f32 to vector<2x22x3xf32>
      %191 = vector.extract_strided_slice %159 {offsets = [0, 0, 3], sizes = [2, 22, 13], strides = [1, 1, 1]} : vector<2x22x16xf32> to vector<2x22x13xf32>
      %192 = tpu.concatenate %191, %190 in 2 : vector<2x22x13xf32>, vector<2x22x3xf32> -> vector<2x22x16xf32>
      %c0_213 = arith.constant 0 : index
      %c6_214 = arith.constant 6 : index
      %c0_215 = arith.constant 0 : index
      %c0_216 = arith.constant 0 : index
      %c0_217 = arith.constant 0 : index
      %193 = vector.load %arg8[%c0_213, %c6_214, %c0_215, %c0_216, %c0_217] : memref<2x7x2x22x16xf32, #tpu.memory_space<vmem>>, vector<1x1x2x22x16xf32>
      %194 = vector.shape_cast %193 : vector<1x1x2x22x16xf32> to vector<2x22x16xf32>
      %195 = vector.shape_cast %192 : vector<2x22x16xf32> to vector<1x1x2x22x16xf32>
      tpu.vector_store %arg8[%c0_213, %c6_214, %c0_215, %c0_216, %c0_217], %195 {strides = array<i32>} : memref<2x7x2x22x16xf32, #tpu.memory_space<vmem>>, vector<1x1x2x22x16xf32>,
      %c1_218 = arith.constant 1 : index
      %c3_219 = arith.constant 3 : index
      %c0_220 = arith.constant 0 : index
      %c0_221 = arith.constant 0 : index
      %c0_222 = arith.constant 0 : index
      %196 = vector.load %arg8[%c1_218, %c3_219, %c0_220, %c0_221, %c0_222] : memref<2x7x2x22x16xf32, #tpu.memory_space<vmem>>, vector<1x1x2x22x16xf32>
      %197 = vector.shape_cast %196 : vector<1x1x2x22x16xf32> to vector<2x22x16xf32>
      %cst_223 = arith.constant 0.000000e+00 : f32
      %198 = vector.broadcast %cst_223 : f32 to vector<2x22x3xf32>
      %199 = vector.extract_strided_slice %197 {offsets = [0, 0, 0], sizes = [2, 22, 13], strides = [1, 1, 1]} : vector<2x22x16xf32> to vector<2x22x13xf32>
      %200 = tpu.concatenate %198, %199 in 2 : vector<2x22x3xf32>, vector<2x22x13xf32> -> vector<2x22x16xf32>
      %c1_224 = arith.constant 1 : index
      %c0_225 = arith.constant 0 : index
      %c0_226 = arith.constant 0 : index
      %c0_227 = arith.constant 0 : index
      %c0_228 = arith.constant 0 : index
      %201 = vector.load %arg8[%c1_224, %c0_225, %c0_226, %c0_227, %c0_228] : memref<2x7x2x22x16xf32, #tpu.memory_space<vmem>>, vector<1x1x2x22x16xf32>
      %202 = vector.shape_cast %201 : vector<1x1x2x22x16xf32> to vector<2x22x16xf32>
      %203 = vector.shape_cast %200 : vector<2x22x16xf32> to vector<1x1x2x22x16xf32>
      tpu.vector_store %arg8[%c1_224, %c0_225, %c0_226, %c0_227, %c0_228], %203 {strides = array<i32>} : memref<2x7x2x22x16xf32, #tpu.memory_space<vmem>>, vector<1x1x2x22x16xf32>,
      %cst_229 = arith.constant 0.000000e+00 : f32
      %204 = vector.broadcast %cst_229 : f32 to vector<2x22x2xf32>
      %205 = vector.extract_strided_slice %197 {offsets = [0, 0, 0], sizes = [2, 22, 14], strides = [1, 1, 1]} : vector<2x22x16xf32> to vector<2x22x14xf32>
      %206 = tpu.concatenate %204, %205 in 2 : vector<2x22x2xf32>, vector<2x22x14xf32> -> vector<2x22x16xf32>
      %c1_230 = arith.constant 1 : index
      %c1_231 = arith.constant 1 : index
      %c0_232 = arith.constant 0 : index
      %c0_233 = arith.constant 0 : index
      %c0_234 = arith.constant 0 : index
      %207 = vector.load %arg8[%c1_230, %c1_231, %c0_232, %c0_233, %c0_234] : memref<2x7x2x22x16xf32, #tpu.memory_space<vmem>>, vector<1x1x2x22x16xf32>
      %208 = vector.shape_cast %207 : vector<1x1x2x22x16xf32> to vector<2x22x16xf32>
      %209 = vector.shape_cast %206 : vector<2x22x16xf32> to vector<1x1x2x22x16xf32>
      tpu.vector_store %arg8[%c1_230, %c1_231, %c0_232, %c0_233, %c0_234], %209 {strides = array<i32>} : memref<2x7x2x22x16xf32, #tpu.memory_space<vmem>>, vector<1x1x2x22x16xf32>,
      %cst_235 = arith.constant 0.000000e+00 : f32
      %210 = vector.broadcast %cst_235 : f32 to vector<2x22x1xf32>
      %211 = vector.extract_strided_slice %197 {offsets = [0, 0, 0], sizes = [2, 22, 15], strides = [1, 1, 1]} : vector<2x22x16xf32> to vector<2x22x15xf32>
      %212 = tpu.concatenate %210, %211 in 2 : vector<2x22x1xf32>, vector<2x22x15xf32> -> vector<2x22x16xf32>
      %c1_236 = arith.constant 1 : index
      %c2_237 = arith.constant 2 : index
      %c0_238 = arith.constant 0 : index
      %c0_239 = arith.constant 0 : index
      %c0_240 = arith.constant 0 : index
      %213 = vector.load %arg8[%c1_236, %c2_237, %c0_238, %c0_239, %c0_240] : memref<2x7x2x22x16xf32, #tpu.memory_space<vmem>>, vector<1x1x2x22x16xf32>
      %214 = vector.shape_cast %213 : vector<1x1x2x22x16xf32> to vector<2x22x16xf32>
      %215 = vector.shape_cast %212 : vector<2x22x16xf32> to vector<1x1x2x22x16xf32>
      tpu.vector_store %arg8[%c1_236, %c2_237, %c0_238, %c0_239, %c0_240], %215 {strides = array<i32>} : memref<2x7x2x22x16xf32, #tpu.memory_space<vmem>>, vector<1x1x2x22x16xf32>,
      %cst_241 = arith.constant 0.000000e+00 : f32
      %216 = vector.broadcast %cst_241 : f32 to vector<2x22x1xf32>
      %217 = vector.extract_strided_slice %197 {offsets = [0, 0, 1], sizes = [2, 22, 15], strides = [1, 1, 1]} : vector<2x22x16xf32> to vector<2x22x15xf32>
      %218 = tpu.concatenate %217, %216 in 2 : vector<2x22x15xf32>, vector<2x22x1xf32> -> vector<2x22x16xf32>
      %c1_242 = arith.constant 1 : index
      %c4_243 = arith.constant 4 : index
      %c0_244 = arith.constant 0 : index
      %c0_245 = arith.constant 0 : index
      %c0_246 = arith.constant 0 : index
      %219 = vector.load %arg8[%c1_242, %c4_243, %c0_244, %c0_245, %c0_246] : memref<2x7x2x22x16xf32, #tpu.memory_space<vmem>>, vector<1x1x2x22x16xf32>
      %220 = vector.shape_cast %219 : vector<1x1x2x22x16xf32> to vector<2x22x16xf32>
      %221 = vector.shape_cast %218 : vector<2x22x16xf32> to vector<1x1x2x22x16xf32>
      tpu.vector_store %arg8[%c1_242, %c4_243, %c0_244, %c0_245, %c0_246], %221 {strides = array<i32>} : memref<2x7x2x22x16xf32, #tpu.memory_space<vmem>>, vector<1x1x2x22x16xf32>,
      %cst_247 = arith.constant 0.000000e+00 : f32
      %222 = vector.broadcast %cst_247 : f32 to vector<2x22x2xf32>
      %223 = vector.extract_strided_slice %197 {offsets = [0, 0, 2], sizes = [2, 22, 14], strides = [1, 1, 1]} : vector<2x22x16xf32> to vector<2x22x14xf32>
      %224 = tpu.concatenate %223, %222 in 2 : vector<2x22x14xf32>, vector<2x22x2xf32> -> vector<2x22x16xf32>
      %c1_248 = arith.constant 1 : index
      %c5_249 = arith.constant 5 : index
      %c0_250 = arith.constant 0 : index
      %c0_251 = arith.constant 0 : index
      %c0_252 = arith.constant 0 : index
      %225 = vector.load %arg8[%c1_248, %c5_249, %c0_250, %c0_251, %c0_252] : memref<2x7x2x22x16xf32, #tpu.memory_space<vmem>>, vector<1x1x2x22x16xf32>
      %226 = vector.shape_cast %225 : vector<1x1x2x22x16xf32> to vector<2x22x16xf32>
      %227 = vector.shape_cast %224 : vector<2x22x16xf32> to vector<1x1x2x22x16xf32>
      tpu.vector_store %arg8[%c1_248, %c5_249, %c0_250, %c0_251, %c0_252], %227 {strides = array<i32>} : memref<2x7x2x22x16xf32, #tpu.memory_space<vmem>>, vector<1x1x2x22x16xf32>,
      %cst_253 = arith.constant 0.000000e+00 : f32
      %228 = vector.broadcast %cst_253 : f32 to vector<2x22x3xf32>
      %229 = vector.extract_strided_slice %197 {offsets = [0, 0, 3], sizes = [2, 22, 13], strides = [1, 1, 1]} : vector<2x22x16xf32> to vector<2x22x13xf32>
      %230 = tpu.concatenate %229, %228 in 2 : vector<2x22x13xf32>, vector<2x22x3xf32> -> vector<2x22x16xf32>
      %c1_254 = arith.constant 1 : index
      %c6_255 = arith.constant 6 : index
      %c0_256 = arith.constant 0 : index
      %c0_257 = arith.constant 0 : index
      %c0_258 = arith.constant 0 : index
      %231 = vector.load %arg8[%c1_254, %c6_255, %c0_256, %c0_257, %c0_258] : memref<2x7x2x22x16xf32, #tpu.memory_space<vmem>>, vector<1x1x2x22x16xf32>
      %232 = vector.shape_cast %231 : vector<1x1x2x22x16xf32> to vector<2x22x16xf32>
      %233 = vector.shape_cast %230 : vector<2x22x16xf32> to vector<1x1x2x22x16xf32>
      tpu.vector_store %arg8[%c1_254, %c6_255, %c0_256, %c0_257, %c0_258], %233 {strides = array<i32>} : memref<2x7x2x22x16xf32, #tpu.memory_space<vmem>>, vector<1x1x2x22x16xf32>,
      %cst_259 = arith.constant 0.000000e+00 : f32
      %234 = vector.broadcast %cst_259 : f32 to vector<2x16x16xf32>
      %cst_260 = arith.constant 0.000000e+00 : f32
      %235 = vector.broadcast %cst_260 : f32 to vector<2x16x16xf32>
      %cst_261 = arith.constant 0.000000e+00 : f32
      %236 = vector.broadcast %cst_261 : f32 to vector<2x16x16xf32>
      %cst_262 = arith.constant 0.000000e+00 : f32
      %237 = vector.broadcast %cst_262 : f32 to vector<2x16x16xf32>
      %c0_263 = arith.constant 0 : index
      %238 = memref.load %arg3[%c0_263] : memref<98xf32, #tpu.memory_space<smem>>
      %c1_264 = arith.constant 1 : index
      %239 = memref.load %arg3[%c1_264] : memref<98xf32, #tpu.memory_space<smem>>
      %c0_265 = arith.constant 0 : index
      %c0_266 = arith.constant 0 : index
      %c0_267 = arith.constant 0 : index
      %c0_268 = arith.constant 0 : index
      %c0_269 = arith.constant 0 : index
      %240 = vector.load %arg8[%c0_265, %c0_266, %c0_267, %c0_268, %c0_269] : memref<2x7x2x22x16xf32, #tpu.memory_space<vmem>>, vector<1x1x2x16x16xf32>
      %241 = vector.shape_cast %240 : vector<1x1x2x16x16xf32> to vector<2x16x16xf32>
      %242 = vector.broadcast %238 : f32 to vector<2x16x16xf32>
      %243 = arith.mulf %241, %242 : vector<2x16x16xf32>
      %244 = arith.addf %234, %243 : vector<2x16x16xf32>
      %c1_270 = arith.constant 1 : index
      %c0_271 = arith.constant 0 : index
      %c0_272 = arith.constant 0 : index
      %c0_273 = arith.constant 0 : index
      %c0_274 = arith.constant 0 : index
      %245 = vector.load %arg8[%c1_270, %c0_271, %c0_272, %c0_273, %c0_274] : memref<2x7x2x22x16xf32, #tpu.memory_space<vmem>>, vector<1x1x2x16x16xf32>
      %246 = vector.shape_cast %245 : vector<1x1x2x16x16xf32> to vector<2x16x16xf32>
      %247 = vector.broadcast %239 : f32 to vector<2x16x16xf32>
      %248 = arith.mulf %246, %247 : vector<2x16x16xf32>
      %249 = arith.addf %244, %248 : vector<2x16x16xf32>
      %c2_275 = arith.constant 2 : index
      %250 = memref.load %arg3[%c2_275] : memref<98xf32, #tpu.memory_space<smem>>
      %c3_276 = arith.constant 3 : index
      %251 = memref.load %arg3[%c3_276] : memref<98xf32, #tpu.memory_space<smem>>
      %c0_277 = arith.constant 0 : index
      %c1_278 = arith.constant 1 : index
      %c0_279 = arith.constant 0 : index
      %c0_280 = arith.constant 0 : index
      %c0_281 = arith.constant 0 : index
      %252 = vector.load %arg8[%c0_277, %c1_278, %c0_279, %c0_280, %c0_281] : memref<2x7x2x22x16xf32, #tpu.memory_space<vmem>>, vector<1x1x2x16x16xf32>
      %253 = vector.shape_cast %252 : vector<1x1x2x16x16xf32> to vector<2x16x16xf32>
      %254 = vector.broadcast %250 : f32 to vector<2x16x16xf32>
      %255 = arith.mulf %253, %254 : vector<2x16x16xf32>
      %256 = arith.addf %235, %255 : vector<2x16x16xf32>
      %c1_282 = arith.constant 1 : index
      %c1_283 = arith.constant 1 : index
      %c0_284 = arith.constant 0 : index
      %c0_285 = arith.constant 0 : index
      %c0_286 = arith.constant 0 : index
      %257 = vector.load %arg8[%c1_282, %c1_283, %c0_284, %c0_285, %c0_286] : memref<2x7x2x22x16xf32, #tpu.memory_space<vmem>>, vector<1x1x2x16x16xf32>
      %258 = vector.shape_cast %257 : vector<1x1x2x16x16xf32> to vector<2x16x16xf32>
      %259 = vector.broadcast %251 : f32 to vector<2x16x16xf32>
      %260 = arith.mulf %258, %259 : vector<2x16x16xf32>
      %261 = arith.addf %256, %260 : vector<2x16x16xf32>
      %c4_287 = arith.constant 4 : index
      %262 = memref.load %arg3[%c4_287] : memref<98xf32, #tpu.memory_space<smem>>
      %c5_288 = arith.constant 5 : index
      %263 = memref.load %arg3[%c5_288] : memref<98xf32, #tpu.memory_space<smem>>
      %c0_289 = arith.constant 0 : index
      %c2_290 = arith.constant 2 : index
      %c0_291 = arith.constant 0 : index
      %c0_292 = arith.constant 0 : index
      %c0_293 = arith.constant 0 : index
      %264 = vector.load %arg8[%c0_289, %c2_290, %c0_291, %c0_292, %c0_293] : memref<2x7x2x22x16xf32, #tpu.memory_space<vmem>>, vector<1x1x2x16x16xf32>
      %265 = vector.shape_cast %264 : vector<1x1x2x16x16xf32> to vector<2x16x16xf32>
      %266 = vector.broadcast %262 : f32 to vector<2x16x16xf32>
      %267 = arith.mulf %265, %266 : vector<2x16x16xf32>
      %268 = arith.addf %236, %267 : vector<2x16x16xf32>
      %c1_294 = arith.constant 1 : index
      %c2_295 = arith.constant 2 : index
      %c0_296 = arith.constant 0 : index
      %c0_297 = arith.constant 0 : index
      %c0_298 = arith.constant 0 : index
      %269 = vector.load %arg8[%c1_294, %c2_295, %c0_296, %c0_297, %c0_298] : memref<2x7x2x22x16xf32, #tpu.memory_space<vmem>>, vector<1x1x2x16x16xf32>
      %270 = vector.shape_cast %269 : vector<1x1x2x16x16xf32> to vector<2x16x16xf32>
      %271 = vector.broadcast %263 : f32 to vector<2x16x16xf32>
      %272 = arith.mulf %270, %271 : vector<2x16x16xf32>
      %273 = arith.addf %268, %272 : vector<2x16x16xf32>
      %c6_299 = arith.constant 6 : index
      %274 = memref.load %arg3[%c6_299] : memref<98xf32, #tpu.memory_space<smem>>
      %c7_300 = arith.constant 7 : index
      %275 = memref.load %arg3[%c7_300] : memref<98xf32, #tpu.memory_space<smem>>
      %c0_301 = arith.constant 0 : index
      %c3_302 = arith.constant 3 : index
      %c0_303 = arith.constant 0 : index
      %c0_304 = arith.constant 0 : index
      %c0_305 = arith.constant 0 : index
      %276 = vector.load %arg8[%c0_301, %c3_302, %c0_303, %c0_304, %c0_305] : memref<2x7x2x22x16xf32, #tpu.memory_space<vmem>>, vector<1x1x2x16x16xf32>
      %277 = vector.shape_cast %276 : vector<1x1x2x16x16xf32> to vector<2x16x16xf32>
      %278 = vector.broadcast %274 : f32 to vector<2x16x16xf32>
      %279 = arith.mulf %277, %278 : vector<2x16x16xf32>
      %280 = arith.addf %237, %279 : vector<2x16x16xf32>
      %c1_306 = arith.constant 1 : index
      %c3_307 = arith.constant 3 : index
      %c0_308 = arith.constant 0 : index
      %c0_309 = arith.constant 0 : index
      %c0_310 = arith.constant 0 : index
      %281 = vector.load %arg8[%c1_306, %c3_307, %c0_308, %c0_309, %c0_310] : memref<2x7x2x22x16xf32, #tpu.memory_space<vmem>>, vector<1x1x2x16x16xf32>
      %282 = vector.shape_cast %281 : vector<1x1x2x16x16xf32> to vector<2x16x16xf32>
      %283 = vector.broadcast %275 : f32 to vector<2x16x16xf32>
      %284 = arith.mulf %282, %283 : vector<2x16x16xf32>
      %285 = arith.addf %280, %284 : vector<2x16x16xf32>
      %c8_311 = arith.constant 8 : index
      %286 = memref.load %arg3[%c8_311] : memref<98xf32, #tpu.memory_space<smem>>
      %c9_312 = arith.constant 9 : index
      %287 = memref.load %arg3[%c9_312] : memref<98xf32, #tpu.memory_space<smem>>
      %c0_313 = arith.constant 0 : index
      %c4_314 = arith.constant 4 : index
      %c0_315 = arith.constant 0 : index
      %c0_316 = arith.constant 0 : index
      %c0_317 = arith.constant 0 : index
      %288 = vector.load %arg8[%c0_313, %c4_314, %c0_315, %c0_316, %c0_317] : memref<2x7x2x22x16xf32, #tpu.memory_space<vmem>>, vector<1x1x2x16x16xf32>
      %289 = vector.shape_cast %288 : vector<1x1x2x16x16xf32> to vector<2x16x16xf32>
      %290 = vector.broadcast %286 : f32 to vector<2x16x16xf32>
      %291 = arith.mulf %289, %290 : vector<2x16x16xf32>
      %292 = arith.addf %249, %291 : vector<2x16x16xf32>
      %c1_318 = arith.constant 1 : index
      %c4_319 = arith.constant 4 : index
      %c0_320 = arith.constant 0 : index
      %c0_321 = arith.constant 0 : index
      %c0_322 = arith.constant 0 : index
      %293 = vector.load %arg8[%c1_318, %c4_319, %c0_320, %c0_321, %c0_322] : memref<2x7x2x22x16xf32, #tpu.memory_space<vmem>>, vector<1x1x2x16x16xf32>
      %294 = vector.shape_cast %293 : vector<1x1x2x16x16xf32> to vector<2x16x16xf32>
      %295 = vector.broadcast %287 : f32 to vector<2x16x16xf32>
      %296 = arith.mulf %294, %295 : vector<2x16x16xf32>
      %297 = arith.addf %292, %296 : vector<2x16x16xf32>
      %c10_323 = arith.constant 10 : index
      %298 = memref.load %arg3[%c10_323] : memref<98xf32, #tpu.memory_space<smem>>
      %c11_324 = arith.constant 11 : index
      %299 = memref.load %arg3[%c11_324] : memref<98xf32, #tpu.memory_space<smem>>
      %c0_325 = arith.constant 0 : index
      %c5_326 = arith.constant 5 : index
      %c0_327 = arith.constant 0 : index
      %c0_328 = arith.constant 0 : index
      %c0_329 = arith.constant 0 : index
      %300 = vector.load %arg8[%c0_325, %c5_326, %c0_327, %c0_328, %c0_329] : memref<2x7x2x22x16xf32, #tpu.memory_space<vmem>>, vector<1x1x2x16x16xf32>
      %301 = vector.shape_cast %300 : vector<1x1x2x16x16xf32> to vector<2x16x16xf32>
      %302 = vector.broadcast %298 : f32 to vector<2x16x16xf32>
      %303 = arith.mulf %301, %302 : vector<2x16x16xf32>
      %304 = arith.addf %261, %303 : vector<2x16x16xf32>
      %c1_330 = arith.constant 1 : index
      %c5_331 = arith.constant 5 : index
      %c0_332 = arith.constant 0 : index
      %c0_333 = arith.constant 0 : index
      %c0_334 = arith.constant 0 : index
      %305 = vector.load %arg8[%c1_330, %c5_331, %c0_332, %c0_333, %c0_334] : memref<2x7x2x22x16xf32, #tpu.memory_space<vmem>>, vector<1x1x2x16x16xf32>
      %306 = vector.shape_cast %305 : vector<1x1x2x16x16xf32> to vector<2x16x16xf32>
      %307 = vector.broadcast %299 : f32 to vector<2x16x16xf32>
      %308 = arith.mulf %306, %307 : vector<2x16x16xf32>
      %309 = arith.addf %304, %308 : vector<2x16x16xf32>
      %c12_335 = arith.constant 12 : index
      %310 = memref.load %arg3[%c12_335] : memref<98xf32, #tpu.memory_space<smem>>
      %c13_336 = arith.constant 13 : index
      %311 = memref.load %arg3[%c13_336] : memref<98xf32, #tpu.memory_space<smem>>
      %c0_337 = arith.constant 0 : index
      %c6_338 = arith.constant 6 : index
      %c0_339 = arith.constant 0 : index
      %c0_340 = arith.constant 0 : index
      %c0_341 = arith.constant 0 : index
      %312 = vector.load %arg8[%c0_337, %c6_338, %c0_339, %c0_340, %c0_341] : memref<2x7x2x22x16xf32, #tpu.memory_space<vmem>>, vector<1x1x2x16x16xf32>
      %313 = vector.shape_cast %312 : vector<1x1x2x16x16xf32> to vector<2x16x16xf32>
      %314 = vector.broadcast %310 : f32 to vector<2x16x16xf32>
      %315 = arith.mulf %313, %314 : vector<2x16x16xf32>
      %316 = arith.addf %273, %315 : vector<2x16x16xf32>
      %c1_342 = arith.constant 1 : index
      %c6_343 = arith.constant 6 : index
      %c0_344 = arith.constant 0 : index
      %c0_345 = arith.constant 0 : index
      %c0_346 = arith.constant 0 : index
      %317 = vector.load %arg8[%c1_342, %c6_343, %c0_344, %c0_345, %c0_346] : memref<2x7x2x22x16xf32, #tpu.memory_space<vmem>>, vector<1x1x2x16x16xf32>
      %318 = vector.shape_cast %317 : vector<1x1x2x16x16xf32> to vector<2x16x16xf32>
      %319 = vector.broadcast %311 : f32 to vector<2x16x16xf32>
      %320 = arith.mulf %318, %319 : vector<2x16x16xf32>
      %321 = arith.addf %316, %320 : vector<2x16x16xf32>
      %c14_347 = arith.constant 14 : index
      %322 = memref.load %arg3[%c14_347] : memref<98xf32, #tpu.memory_space<smem>>
      %c15_348 = arith.constant 15 : index
      %323 = memref.load %arg3[%c15_348] : memref<98xf32, #tpu.memory_space<smem>>
      %c0_349 = arith.constant 0 : index
      %c0_350 = arith.constant 0 : index
      %c0_351 = arith.constant 0 : index
      %c1_352 = arith.constant 1 : index
      %c0_353 = arith.constant 0 : index
      %324 = vector.load %arg8[%c0_349, %c0_350, %c0_351, %c1_352, %c0_353] : memref<2x7x2x22x16xf32, #tpu.memory_space<vmem>>, vector<1x1x2x16x16xf32>
      %325 = vector.shape_cast %324 : vector<1x1x2x16x16xf32> to vector<2x16x16xf32>
      %326 = vector.broadcast %322 : f32 to vector<2x16x16xf32>
      %327 = arith.mulf %325, %326 : vector<2x16x16xf32>
      %328 = arith.addf %285, %327 : vector<2x16x16xf32>
      %c1_354 = arith.constant 1 : index
      %c0_355 = arith.constant 0 : index
      %c0_356 = arith.constant 0 : index
      %c1_357 = arith.constant 1 : index
      %c0_358 = arith.constant 0 : index
      %329 = vector.load %arg8[%c1_354, %c0_355, %c0_356, %c1_357, %c0_358] : memref<2x7x2x22x16xf32, #tpu.memory_space<vmem>>, vector<1x1x2x16x16xf32>
      %330 = vector.shape_cast %329 : vector<1x1x2x16x16xf32> to vector<2x16x16xf32>
      %331 = vector.broadcast %323 : f32 to vector<2x16x16xf32>
      %332 = arith.mulf %330, %331 : vector<2x16x16xf32>
      %333 = arith.addf %328, %332 : vector<2x16x16xf32>
      %c16_359 = arith.constant 16 : index
      %334 = memref.load %arg3[%c16_359] : memref<98xf32, #tpu.memory_space<smem>>
      %c17_360 = arith.constant 17 : index
      %335 = memref.load %arg3[%c17_360] : memref<98xf32, #tpu.memory_space<smem>>
      %c0_361 = arith.constant 0 : index
      %c1_362 = arith.constant 1 : index
      %c0_363 = arith.constant 0 : index
      %c1_364 = arith.constant 1 : index
      %c0_365 = arith.constant 0 : index
      %336 = vector.load %arg8[%c0_361, %c1_362, %c0_363, %c1_364, %c0_365] : memref<2x7x2x22x16xf32, #tpu.memory_space<vmem>>, vector<1x1x2x16x16xf32>
      %337 = vector.shape_cast %336 : vector<1x1x2x16x16xf32> to vector<2x16x16xf32>
      %338 = vector.broadcast %334 : f32 to vector<2x16x16xf32>
      %339 = arith.mulf %337, %338 : vector<2x16x16xf32>
      %340 = arith.addf %297, %339 : vector<2x16x16xf32>
      %c1_366 = arith.constant 1 : index
      %c1_367 = arith.constant 1 : index
      %c0_368 = arith.constant 0 : index
      %c1_369 = arith.constant 1 : index
      %c0_370 = arith.constant 0 : index
      %341 = vector.load %arg8[%c1_366, %c1_367, %c0_368, %c1_369, %c0_370] : memref<2x7x2x22x16xf32, #tpu.memory_space<vmem>>, vector<1x1x2x16x16xf32>
      %342 = vector.shape_cast %341 : vector<1x1x2x16x16xf32> to vector<2x16x16xf32>
      %343 = vector.broadcast %335 : f32 to vector<2x16x16xf32>
      %344 = arith.mulf %342, %343 : vector<2x16x16xf32>
      %345 = arith.addf %340, %344 : vector<2x16x16xf32>
      %c18_371 = arith.constant 18 : index
      %346 = memref.load %arg3[%c18_371] : memref<98xf32, #tpu.memory_space<smem>>
      %c19_372 = arith.constant 19 : index
      %347 = memref.load %arg3[%c19_372] : memref<98xf32, #tpu.memory_space<smem>>
      %c0_373 = arith.constant 0 : index
      %c2_374 = arith.constant 2 : index
      %c0_375 = arith.constant 0 : index
      %c1_376 = arith.constant 1 : index
      %c0_377 = arith.constant 0 : index
      %348 = vector.load %arg8[%c0_373, %c2_374, %c0_375, %c1_376, %c0_377] : memref<2x7x2x22x16xf32, #tpu.memory_space<vmem>>, vector<1x1x2x16x16xf32>
      %349 = vector.shape_cast %348 : vector<1x1x2x16x16xf32> to vector<2x16x16xf32>
      %350 = vector.broadcast %346 : f32 to vector<2x16x16xf32>
      %351 = arith.mulf %349, %350 : vector<2x16x16xf32>
      %352 = arith.addf %309, %351 : vector<2x16x16xf32>
      %c1_378 = arith.constant 1 : index
      %c2_379 = arith.constant 2 : index
      %c0_380 = arith.constant 0 : index
      %c1_381 = arith.constant 1 : index
      %c0_382 = arith.constant 0 : index
      %353 = vector.load %arg8[%c1_378, %c2_379, %c0_380, %c1_381, %c0_382] : memref<2x7x2x22x16xf32, #tpu.memory_space<vmem>>, vector<1x1x2x16x16xf32>
      %354 = vector.shape_cast %353 : vector<1x1x2x16x16xf32> to vector<2x16x16xf32>
      %355 = vector.broadcast %347 : f32 to vector<2x16x16xf32>
      %356 = arith.mulf %354, %355 : vector<2x16x16xf32>
      %357 = arith.addf %352, %356 : vector<2x16x16xf32>
      %c20 = arith.constant 20 : index
      %358 = memref.load %arg3[%c20] : memref<98xf32, #tpu.memory_space<smem>>
      %c21 = arith.constant 21 : index
      %359 = memref.load %arg3[%c21] : memref<98xf32, #tpu.memory_space<smem>>
      %c0_383 = arith.constant 0 : index
      %c3_384 = arith.constant 3 : index
      %c0_385 = arith.constant 0 : index
      %c1_386 = arith.constant 1 : index
      %c0_387 = arith.constant 0 : index
      %360 = vector.load %arg8[%c0_383, %c3_384, %c0_385, %c1_386, %c0_387] : memref<2x7x2x22x16xf32, #tpu.memory_space<vmem>>, vector<1x1x2x16x16xf32>
      %361 = vector.shape_cast %360 : vector<1x1x2x16x16xf32> to vector<2x16x16xf32>
      %362 = vector.broadcast %358 : f32 to vector<2x16x16xf32>
      %363 = arith.mulf %361, %362 : vector<2x16x16xf32>
      %364 = arith.addf %321, %363 : vector<2x16x16xf32>
      %c1_388 = arith.constant 1 : index
      %c3_389 = arith.constant 3 : index
      %c0_390 = arith.constant 0 : index
      %c1_391 = arith.constant 1 : index
      %c0_392 = arith.constant 0 : index
      %365 = vector.load %arg8[%c1_388, %c3_389, %c0_390, %c1_391, %c0_392] : memref<2x7x2x22x16xf32, #tpu.memory_space<vmem>>, vector<1x1x2x16x16xf32>
      %366 = vector.shape_cast %365 : vector<1x1x2x16x16xf32> to vector<2x16x16xf32>
      %367 = vector.broadcast %359 : f32 to vector<2x16x16xf32>
      %368 = arith.mulf %366, %367 : vector<2x16x16xf32>
      %369 = arith.addf %364, %368 : vector<2x16x16xf32>
      %c22 = arith.constant 22 : index
      %370 = memref.load %arg3[%c22] : memref<98xf32, #tpu.memory_space<smem>>
      %c23 = arith.constant 23 : index
      %371 = memref.load %arg3[%c23] : memref<98xf32, #tpu.memory_space<smem>>
      %c0_393 = arith.constant 0 : index
      %c4_394 = arith.constant 4 : index
      %c0_395 = arith.constant 0 : index
      %c1_396 = arith.constant 1 : index
      %c0_397 = arith.constant 0 : index
      %372 = vector.load %arg8[%c0_393, %c4_394, %c0_395, %c1_396, %c0_397] : memref<2x7x2x22x16xf32, #tpu.memory_space<vmem>>, vector<1x1x2x16x16xf32>
      %373 = vector.shape_cast %372 : vector<1x1x2x16x16xf32> to vector<2x16x16xf32>
      %374 = vector.broadcast %370 : f32 to vector<2x16x16xf32>
      %375 = arith.mulf %373, %374 : vector<2x16x16xf32>
      %376 = arith.addf %333, %375 : vector<2x16x16xf32>
      %c1_398 = arith.constant 1 : index
      %c4_399 = arith.constant 4 : index
      %c0_400 = arith.constant 0 : index
      %c1_401 = arith.constant 1 : index
      %c0_402 = arith.constant 0 : index
      %377 = vector.load %arg8[%c1_398, %c4_399, %c0_400, %c1_401, %c0_402] : memref<2x7x2x22x16xf32, #tpu.memory_space<vmem>>, vector<1x1x2x16x16xf32>
      %378 = vector.shape_cast %377 : vector<1x1x2x16x16xf32> to vector<2x16x16xf32>
      %379 = vector.broadcast %371 : f32 to vector<2x16x16xf32>
      %380 = arith.mulf %378, %379 : vector<2x16x16xf32>
      %381 = arith.addf %376, %380 : vector<2x16x16xf32>
      %c24 = arith.constant 24 : index
      %382 = memref.load %arg3[%c24] : memref<98xf32, #tpu.memory_space<smem>>
      %c25 = arith.constant 25 : index
      %383 = memref.load %arg3[%c25] : memref<98xf32, #tpu.memory_space<smem>>
      %c0_403 = arith.constant 0 : index
      %c5_404 = arith.constant 5 : index
      %c0_405 = arith.constant 0 : index
      %c1_406 = arith.constant 1 : index
      %c0_407 = arith.constant 0 : index
      %384 = vector.load %arg8[%c0_403, %c5_404, %c0_405, %c1_406, %c0_407] : memref<2x7x2x22x16xf32, #tpu.memory_space<vmem>>, vector<1x1x2x16x16xf32>
      %385 = vector.shape_cast %384 : vector<1x1x2x16x16xf32> to vector<2x16x16xf32>
      %386 = vector.broadcast %382 : f32 to vector<2x16x16xf32>
      %387 = arith.mulf %385, %386 : vector<2x16x16xf32>
      %388 = arith.addf %345, %387 : vector<2x16x16xf32>
      %c1_408 = arith.constant 1 : index
      %c5_409 = arith.constant 5 : index
      %c0_410 = arith.constant 0 : index
      %c1_411 = arith.constant 1 : index
      %c0_412 = arith.constant 0 : index
      %389 = vector.load %arg8[%c1_408, %c5_409, %c0_410, %c1_411, %c0_412] : memref<2x7x2x22x16xf32, #tpu.memory_space<vmem>>, vector<1x1x2x16x16xf32>
      %390 = vector.shape_cast %389 : vector<1x1x2x16x16xf32> to vector<2x16x16xf32>
      %391 = vector.broadcast %383 : f32 to vector<2x16x16xf32>
      %392 = arith.mulf %390, %391 : vector<2x16x16xf32>
      %393 = arith.addf %388, %392 : vector<2x16x16xf32>
      %c26 = arith.constant 26 : index
      %394 = memref.load %arg3[%c26] : memref<98xf32, #tpu.memory_space<smem>>
      %c27 = arith.constant 27 : index
      %395 = memref.load %arg3[%c27] : memref<98xf32, #tpu.memory_space<smem>>
      %c0_413 = arith.constant 0 : index
      %c6_414 = arith.constant 6 : index
      %c0_415 = arith.constant 0 : index
      %c1_416 = arith.constant 1 : index
      %c0_417 = arith.constant 0 : index
      %396 = vector.load %arg8[%c0_413, %c6_414, %c0_415, %c1_416, %c0_417] : memref<2x7x2x22x16xf32, #tpu.memory_space<vmem>>, vector<1x1x2x16x16xf32>
      %397 = vector.shape_cast %396 : vector<1x1x2x16x16xf32> to vector<2x16x16xf32>
      %398 = vector.broadcast %394 : f32 to vector<2x16x16xf32>
      %399 = arith.mulf %397, %398 : vector<2x16x16xf32>
      %400 = arith.addf %357, %399 : vector<2x16x16xf32>
      %c1_418 = arith.constant 1 : index
      %c6_419 = arith.constant 6 : index
      %c0_420 = arith.constant 0 : index
      %c1_421 = arith.constant 1 : index
      %c0_422 = arith.constant 0 : index
      %401 = vector.load %arg8[%c1_418, %c6_419, %c0_420, %c1_421, %c0_422] : memref<2x7x2x22x16xf32, #tpu.memory_space<vmem>>, vector<1x1x2x16x16xf32>
      %402 = vector.shape_cast %401 : vector<1x1x2x16x16xf32> to vector<2x16x16xf32>
      %403 = vector.broadcast %395 : f32 to vector<2x16x16xf32>
      %404 = arith.mulf %402, %403 : vector<2x16x16xf32>
      %405 = arith.addf %400, %404 : vector<2x16x16xf32>
      %c28 = arith.constant 28 : index
      %406 = memref.load %arg3[%c28] : memref<98xf32, #tpu.memory_space<smem>>
      %c29 = arith.constant 29 : index
      %407 = memref.load %arg3[%c29] : memref<98xf32, #tpu.memory_space<smem>>
      %c0_423 = arith.constant 0 : index
      %c0_424 = arith.constant 0 : index
      %c0_425 = arith.constant 0 : index
      %c2_426 = arith.constant 2 : index
      %c0_427 = arith.constant 0 : index
      %408 = vector.load %arg8[%c0_423, %c0_424, %c0_425, %c2_426, %c0_427] : memref<2x7x2x22x16xf32, #tpu.memory_space<vmem>>, vector<1x1x2x16x16xf32>
      %409 = vector.shape_cast %408 : vector<1x1x2x16x16xf32> to vector<2x16x16xf32>
      %410 = vector.broadcast %406 : f32 to vector<2x16x16xf32>
      %411 = arith.mulf %409, %410 : vector<2x16x16xf32>
      %412 = arith.addf %369, %411 : vector<2x16x16xf32>
      %c1_428 = arith.constant 1 : index
      %c0_429 = arith.constant 0 : index
      %c0_430 = arith.constant 0 : index
      %c2_431 = arith.constant 2 : index
      %c0_432 = arith.constant 0 : index
      %413 = vector.load %arg8[%c1_428, %c0_429, %c0_430, %c2_431, %c0_432] : memref<2x7x2x22x16xf32, #tpu.memory_space<vmem>>, vector<1x1x2x16x16xf32>
      %414 = vector.shape_cast %413 : vector<1x1x2x16x16xf32> to vector<2x16x16xf32>
      %415 = vector.broadcast %407 : f32 to vector<2x16x16xf32>
      %416 = arith.mulf %414, %415 : vector<2x16x16xf32>
      %417 = arith.addf %412, %416 : vector<2x16x16xf32>
      %c30 = arith.constant 30 : index
      %418 = memref.load %arg3[%c30] : memref<98xf32, #tpu.memory_space<smem>>
      %c31 = arith.constant 31 : index
      %419 = memref.load %arg3[%c31] : memref<98xf32, #tpu.memory_space<smem>>
      %c0_433 = arith.constant 0 : index
      %c1_434 = arith.constant 1 : index
      %c0_435 = arith.constant 0 : index
      %c2_436 = arith.constant 2 : index
      %c0_437 = arith.constant 0 : index
      %420 = vector.load %arg8[%c0_433, %c1_434, %c0_435, %c2_436, %c0_437] : memref<2x7x2x22x16xf32, #tpu.memory_space<vmem>>, vector<1x1x2x16x16xf32>
      %421 = vector.shape_cast %420 : vector<1x1x2x16x16xf32> to vector<2x16x16xf32>
      %422 = vector.broadcast %418 : f32 to vector<2x16x16xf32>
      %423 = arith.mulf %421, %422 : vector<2x16x16xf32>
      %424 = arith.addf %381, %423 : vector<2x16x16xf32>
      %c1_438 = arith.constant 1 : index
      %c1_439 = arith.constant 1 : index
      %c0_440 = arith.constant 0 : index
      %c2_441 = arith.constant 2 : index
      %c0_442 = arith.constant 0 : index
      %425 = vector.load %arg8[%c1_438, %c1_439, %c0_440, %c2_441, %c0_442] : memref<2x7x2x22x16xf32, #tpu.memory_space<vmem>>, vector<1x1x2x16x16xf32>
      %426 = vector.shape_cast %425 : vector<1x1x2x16x16xf32> to vector<2x16x16xf32>
      %427 = vector.broadcast %419 : f32 to vector<2x16x16xf32>
      %428 = arith.mulf %426, %427 : vector<2x16x16xf32>
      %429 = arith.addf %424, %428 : vector<2x16x16xf32>
      %c32 = arith.constant 32 : index
      %430 = memref.load %arg3[%c32] : memref<98xf32, #tpu.memory_space<smem>>
      %c33 = arith.constant 33 : index
      %431 = memref.load %arg3[%c33] : memref<98xf32, #tpu.memory_space<smem>>
      %c0_443 = arith.constant 0 : index
      %c2_444 = arith.constant 2 : index
      %c0_445 = arith.constant 0 : index
      %c2_446 = arith.constant 2 : index
      %c0_447 = arith.constant 0 : index
      %432 = vector.load %arg8[%c0_443, %c2_444, %c0_445, %c2_446, %c0_447] : memref<2x7x2x22x16xf32, #tpu.memory_space<vmem>>, vector<1x1x2x16x16xf32>
      %433 = vector.shape_cast %432 : vector<1x1x2x16x16xf32> to vector<2x16x16xf32>
      %434 = vector.broadcast %430 : f32 to vector<2x16x16xf32>
      %435 = arith.mulf %433, %434 : vector<2x16x16xf32>
      %436 = arith.addf %393, %435 : vector<2x16x16xf32>
      %c1_448 = arith.constant 1 : index
      %c2_449 = arith.constant 2 : index
      %c0_450 = arith.constant 0 : index
      %c2_451 = arith.constant 2 : index
      %c0_452 = arith.constant 0 : index
      %437 = vector.load %arg8[%c1_448, %c2_449, %c0_450, %c2_451, %c0_452] : memref<2x7x2x22x16xf32, #tpu.memory_space<vmem>>, vector<1x1x2x16x16xf32>
      %438 = vector.shape_cast %437 : vector<1x1x2x16x16xf32> to vector<2x16x16xf32>
      %439 = vector.broadcast %431 : f32 to vector<2x16x16xf32>
      %440 = arith.mulf %438, %439 : vector<2x16x16xf32>
      %441 = arith.addf %436, %440 : vector<2x16x16xf32>
      %c34 = arith.constant 34 : index
      %442 = memref.load %arg3[%c34] : memref<98xf32, #tpu.memory_space<smem>>
      %c35 = arith.constant 35 : index
      %443 = memref.load %arg3[%c35] : memref<98xf32, #tpu.memory_space<smem>>
      %c0_453 = arith.constant 0 : index
      %c3_454 = arith.constant 3 : index
      %c0_455 = arith.constant 0 : index
      %c2_456 = arith.constant 2 : index
      %c0_457 = arith.constant 0 : index
      %444 = vector.load %arg8[%c0_453, %c3_454, %c0_455, %c2_456, %c0_457] : memref<2x7x2x22x16xf32, #tpu.memory_space<vmem>>, vector<1x1x2x16x16xf32>
      %445 = vector.shape_cast %444 : vector<1x1x2x16x16xf32> to vector<2x16x16xf32>
      %446 = vector.broadcast %442 : f32 to vector<2x16x16xf32>
      %447 = arith.mulf %445, %446 : vector<2x16x16xf32>
      %448 = arith.addf %405, %447 : vector<2x16x16xf32>
      %c1_458 = arith.constant 1 : index
      %c3_459 = arith.constant 3 : index
      %c0_460 = arith.constant 0 : index
      %c2_461 = arith.constant 2 : index
      %c0_462 = arith.constant 0 : index
      %449 = vector.load %arg8[%c1_458, %c3_459, %c0_460, %c2_461, %c0_462] : memref<2x7x2x22x16xf32, #tpu.memory_space<vmem>>, vector<1x1x2x16x16xf32>
      %450 = vector.shape_cast %449 : vector<1x1x2x16x16xf32> to vector<2x16x16xf32>
      %451 = vector.broadcast %443 : f32 to vector<2x16x16xf32>
      %452 = arith.mulf %450, %451 : vector<2x16x16xf32>
      %453 = arith.addf %448, %452 : vector<2x16x16xf32>
      %c36 = arith.constant 36 : index
      %454 = memref.load %arg3[%c36] : memref<98xf32, #tpu.memory_space<smem>>
      %c37 = arith.constant 37 : index
      %455 = memref.load %arg3[%c37] : memref<98xf32, #tpu.memory_space<smem>>
      %c0_463 = arith.constant 0 : index
      %c4_464 = arith.constant 4 : index
      %c0_465 = arith.constant 0 : index
      %c2_466 = arith.constant 2 : index
      %c0_467 = arith.constant 0 : index
      %456 = vector.load %arg8[%c0_463, %c4_464, %c0_465, %c2_466, %c0_467] : memref<2x7x2x22x16xf32, #tpu.memory_space<vmem>>, vector<1x1x2x16x16xf32>
      %457 = vector.shape_cast %456 : vector<1x1x2x16x16xf32> to vector<2x16x16xf32>
      %458 = vector.broadcast %454 : f32 to vector<2x16x16xf32>
      %459 = arith.mulf %457, %458 : vector<2x16x16xf32>
      %460 = arith.addf %417, %459 : vector<2x16x16xf32>
      %c1_468 = arith.constant 1 : index
      %c4_469 = arith.constant 4 : index
      %c0_470 = arith.constant 0 : index
      %c2_471 = arith.constant 2 : index
      %c0_472 = arith.constant 0 : index
      %461 = vector.load %arg8[%c1_468, %c4_469, %c0_470, %c2_471, %c0_472] : memref<2x7x2x22x16xf32, #tpu.memory_space<vmem>>, vector<1x1x2x16x16xf32>
      %462 = vector.shape_cast %461 : vector<1x1x2x16x16xf32> to vector<2x16x16xf32>
      %463 = vector.broadcast %455 : f32 to vector<2x16x16xf32>
      %464 = arith.mulf %462, %463 : vector<2x16x16xf32>
      %465 = arith.addf %460, %464 : vector<2x16x16xf32>
      %c38 = arith.constant 38 : index
      %466 = memref.load %arg3[%c38] : memref<98xf32, #tpu.memory_space<smem>>
      %c39 = arith.constant 39 : index
      %467 = memref.load %arg3[%c39] : memref<98xf32, #tpu.memory_space<smem>>
      %c0_473 = arith.constant 0 : index
      %c5_474 = arith.constant 5 : index
      %c0_475 = arith.constant 0 : index
      %c2_476 = arith.constant 2 : index
      %c0_477 = arith.constant 0 : index
      %468 = vector.load %arg8[%c0_473, %c5_474, %c0_475, %c2_476, %c0_477] : memref<2x7x2x22x16xf32, #tpu.memory_space<vmem>>, vector<1x1x2x16x16xf32>
      %469 = vector.shape_cast %468 : vector<1x1x2x16x16xf32> to vector<2x16x16xf32>
      %470 = vector.broadcast %466 : f32 to vector<2x16x16xf32>
      %471 = arith.mulf %469, %470 : vector<2x16x16xf32>
      %472 = arith.addf %429, %471 : vector<2x16x16xf32>
      %c1_478 = arith.constant 1 : index
      %c5_479 = arith.constant 5 : index
      %c0_480 = arith.constant 0 : index
      %c2_481 = arith.constant 2 : index
      %c0_482 = arith.constant 0 : index
      %473 = vector.load %arg8[%c1_478, %c5_479, %c0_480, %c2_481, %c0_482] : memref<2x7x2x22x16xf32, #tpu.memory_space<vmem>>, vector<1x1x2x16x16xf32>
      %474 = vector.shape_cast %473 : vector<1x1x2x16x16xf32> to vector<2x16x16xf32>
      %475 = vector.broadcast %467 : f32 to vector<2x16x16xf32>
      %476 = arith.mulf %474, %475 : vector<2x16x16xf32>
      %477 = arith.addf %472, %476 : vector<2x16x16xf32>
      %c40 = arith.constant 40 : index
      %478 = memref.load %arg3[%c40] : memref<98xf32, #tpu.memory_space<smem>>
      %c41 = arith.constant 41 : index
      %479 = memref.load %arg3[%c41] : memref<98xf32, #tpu.memory_space<smem>>
      %c0_483 = arith.constant 0 : index
      %c6_484 = arith.constant 6 : index
      %c0_485 = arith.constant 0 : index
      %c2_486 = arith.constant 2 : index
      %c0_487 = arith.constant 0 : index
      %480 = vector.load %arg8[%c0_483, %c6_484, %c0_485, %c2_486, %c0_487] : memref<2x7x2x22x16xf32, #tpu.memory_space<vmem>>, vector<1x1x2x16x16xf32>
      %481 = vector.shape_cast %480 : vector<1x1x2x16x16xf32> to vector<2x16x16xf32>
      %482 = vector.broadcast %478 : f32 to vector<2x16x16xf32>
      %483 = arith.mulf %481, %482 : vector<2x16x16xf32>
      %484 = arith.addf %441, %483 : vector<2x16x16xf32>
      %c1_488 = arith.constant 1 : index
      %c6_489 = arith.constant 6 : index
      %c0_490 = arith.constant 0 : index
      %c2_491 = arith.constant 2 : index
      %c0_492 = arith.constant 0 : index
      %485 = vector.load %arg8[%c1_488, %c6_489, %c0_490, %c2_491, %c0_492] : memref<2x7x2x22x16xf32, #tpu.memory_space<vmem>>, vector<1x1x2x16x16xf32>
      %486 = vector.shape_cast %485 : vector<1x1x2x16x16xf32> to vector<2x16x16xf32>
      %487 = vector.broadcast %479 : f32 to vector<2x16x16xf32>
      %488 = arith.mulf %486, %487 : vector<2x16x16xf32>
      %489 = arith.addf %484, %488 : vector<2x16x16xf32>
      %c42 = arith.constant 42 : index
      %490 = memref.load %arg3[%c42] : memref<98xf32, #tpu.memory_space<smem>>
      %c43 = arith.constant 43 : index
      %491 = memref.load %arg3[%c43] : memref<98xf32, #tpu.memory_space<smem>>
      %c0_493 = arith.constant 0 : index
      %c0_494 = arith.constant 0 : index
      %c0_495 = arith.constant 0 : index
      %c3_496 = arith.constant 3 : index
      %c0_497 = arith.constant 0 : index
      %492 = vector.load %arg8[%c0_493, %c0_494, %c0_495, %c3_496, %c0_497] : memref<2x7x2x22x16xf32, #tpu.memory_space<vmem>>, vector<1x1x2x16x16xf32>
      %493 = vector.shape_cast %492 : vector<1x1x2x16x16xf32> to vector<2x16x16xf32>
      %494 = vector.broadcast %490 : f32 to vector<2x16x16xf32>
      %495 = arith.mulf %493, %494 : vector<2x16x16xf32>
      %496 = arith.addf %453, %495 : vector<2x16x16xf32>
      %c1_498 = arith.constant 1 : index
      %c0_499 = arith.constant 0 : index
      %c0_500 = arith.constant 0 : index
      %c3_501 = arith.constant 3 : index
      %c0_502 = arith.constant 0 : index
      %497 = vector.load %arg8[%c1_498, %c0_499, %c0_500, %c3_501, %c0_502] : memref<2x7x2x22x16xf32, #tpu.memory_space<vmem>>, vector<1x1x2x16x16xf32>
      %498 = vector.shape_cast %497 : vector<1x1x2x16x16xf32> to vector<2x16x16xf32>
      %499 = vector.broadcast %491 : f32 to vector<2x16x16xf32>
      %500 = arith.mulf %498, %499 : vector<2x16x16xf32>
      %501 = arith.addf %496, %500 : vector<2x16x16xf32>
      %c44 = arith.constant 44 : index
      %502 = memref.load %arg3[%c44] : memref<98xf32, #tpu.memory_space<smem>>
      %c45 = arith.constant 45 : index
      %503 = memref.load %arg3[%c45] : memref<98xf32, #tpu.memory_space<smem>>
      %c0_503 = arith.constant 0 : index
      %c1_504 = arith.constant 1 : index
      %c0_505 = arith.constant 0 : index
      %c3_506 = arith.constant 3 : index
      %c0_507 = arith.constant 0 : index
      %504 = vector.load %arg8[%c0_503, %c1_504, %c0_505, %c3_506, %c0_507] : memref<2x7x2x22x16xf32, #tpu.memory_space<vmem>>, vector<1x1x2x16x16xf32>
      %505 = vector.shape_cast %504 : vector<1x1x2x16x16xf32> to vector<2x16x16xf32>
      %506 = vector.broadcast %502 : f32 to vector<2x16x16xf32>
      %507 = arith.mulf %505, %506 : vector<2x16x16xf32>
      %508 = arith.addf %465, %507 : vector<2x16x16xf32>
      %c1_508 = arith.constant 1 : index
      %c1_509 = arith.constant 1 : index
      %c0_510 = arith.constant 0 : index
      %c3_511 = arith.constant 3 : index
      %c0_512 = arith.constant 0 : index
      %509 = vector.load %arg8[%c1_508, %c1_509, %c0_510, %c3_511, %c0_512] : memref<2x7x2x22x16xf32, #tpu.memory_space<vmem>>, vector<1x1x2x16x16xf32>
      %510 = vector.shape_cast %509 : vector<1x1x2x16x16xf32> to vector<2x16x16xf32>
      %511 = vector.broadcast %503 : f32 to vector<2x16x16xf32>
      %512 = arith.mulf %510, %511 : vector<2x16x16xf32>
      %513 = arith.addf %508, %512 : vector<2x16x16xf32>
      %c46 = arith.constant 46 : index
      %514 = memref.load %arg3[%c46] : memref<98xf32, #tpu.memory_space<smem>>
      %c47 = arith.constant 47 : index
      %515 = memref.load %arg3[%c47] : memref<98xf32, #tpu.memory_space<smem>>
      %c0_513 = arith.constant 0 : index
      %c2_514 = arith.constant 2 : index
      %c0_515 = arith.constant 0 : index
      %c3_516 = arith.constant 3 : index
      %c0_517 = arith.constant 0 : index
      %516 = vector.load %arg8[%c0_513, %c2_514, %c0_515, %c3_516, %c0_517] : memref<2x7x2x22x16xf32, #tpu.memory_space<vmem>>, vector<1x1x2x16x16xf32>
      %517 = vector.shape_cast %516 : vector<1x1x2x16x16xf32> to vector<2x16x16xf32>
      %518 = vector.broadcast %514 : f32 to vector<2x16x16xf32>
      %519 = arith.mulf %517, %518 : vector<2x16x16xf32>
      %520 = arith.addf %477, %519 : vector<2x16x16xf32>
      %c1_518 = arith.constant 1 : index
      %c2_519 = arith.constant 2 : index
      %c0_520 = arith.constant 0 : index
      %c3_521 = arith.constant 3 : index
      %c0_522 = arith.constant 0 : index
      %521 = vector.load %arg8[%c1_518, %c2_519, %c0_520, %c3_521, %c0_522] : memref<2x7x2x22x16xf32, #tpu.memory_space<vmem>>, vector<1x1x2x16x16xf32>
      %522 = vector.shape_cast %521 : vector<1x1x2x16x16xf32> to vector<2x16x16xf32>
      %523 = vector.broadcast %515 : f32 to vector<2x16x16xf32>
      %524 = arith.mulf %522, %523 : vector<2x16x16xf32>
      %525 = arith.addf %520, %524 : vector<2x16x16xf32>
      %c48 = arith.constant 48 : index
      %526 = memref.load %arg3[%c48] : memref<98xf32, #tpu.memory_space<smem>>
      %c49 = arith.constant 49 : index
      %527 = memref.load %arg3[%c49] : memref<98xf32, #tpu.memory_space<smem>>
      %c0_523 = arith.constant 0 : index
      %c3_524 = arith.constant 3 : index
      %c0_525 = arith.constant 0 : index
      %c3_526 = arith.constant 3 : index
      %c0_527 = arith.constant 0 : index
      %528 = vector.load %arg8[%c0_523, %c3_524, %c0_525, %c3_526, %c0_527] : memref<2x7x2x22x16xf32, #tpu.memory_space<vmem>>, vector<1x1x2x16x16xf32>
      %529 = vector.shape_cast %528 : vector<1x1x2x16x16xf32> to vector<2x16x16xf32>
      %530 = vector.broadcast %526 : f32 to vector<2x16x16xf32>
      %531 = arith.mulf %529, %530 : vector<2x16x16xf32>
      %532 = arith.addf %489, %531 : vector<2x16x16xf32>
      %c1_528 = arith.constant 1 : index
      %c3_529 = arith.constant 3 : index
      %c0_530 = arith.constant 0 : index
      %c3_531 = arith.constant 3 : index
      %c0_532 = arith.constant 0 : index
      %533 = vector.load %arg8[%c1_528, %c3_529, %c0_530, %c3_531, %c0_532] : memref<2x7x2x22x16xf32, #tpu.memory_space<vmem>>, vector<1x1x2x16x16xf32>
      %534 = vector.shape_cast %533 : vector<1x1x2x16x16xf32> to vector<2x16x16xf32>
      %535 = vector.broadcast %527 : f32 to vector<2x16x16xf32>
      %536 = arith.mulf %534, %535 : vector<2x16x16xf32>
      %537 = arith.addf %532, %536 : vector<2x16x16xf32>
      %c50 = arith.constant 50 : index
      %538 = memref.load %arg3[%c50] : memref<98xf32, #tpu.memory_space<smem>>
      %c51 = arith.constant 51 : index
      %539 = memref.load %arg3[%c51] : memref<98xf32, #tpu.memory_space<smem>>
      %c0_533 = arith.constant 0 : index
      %c4_534 = arith.constant 4 : index
      %c0_535 = arith.constant 0 : index
      %c3_536 = arith.constant 3 : index
      %c0_537 = arith.constant 0 : index
      %540 = vector.load %arg8[%c0_533, %c4_534, %c0_535, %c3_536, %c0_537] : memref<2x7x2x22x16xf32, #tpu.memory_space<vmem>>, vector<1x1x2x16x16xf32>
      %541 = vector.shape_cast %540 : vector<1x1x2x16x16xf32> to vector<2x16x16xf32>
      %542 = vector.broadcast %538 : f32 to vector<2x16x16xf32>
      %543 = arith.mulf %541, %542 : vector<2x16x16xf32>
      %544 = arith.addf %501, %543 : vector<2x16x16xf32>
      %c1_538 = arith.constant 1 : index
      %c4_539 = arith.constant 4 : index
      %c0_540 = arith.constant 0 : index
      %c3_541 = arith.constant 3 : index
      %c0_542 = arith.constant 0 : index
      %545 = vector.load %arg8[%c1_538, %c4_539, %c0_540, %c3_541, %c0_542] : memref<2x7x2x22x16xf32, #tpu.memory_space<vmem>>, vector<1x1x2x16x16xf32>
      %546 = vector.shape_cast %545 : vector<1x1x2x16x16xf32> to vector<2x16x16xf32>
      %547 = vector.broadcast %539 : f32 to vector<2x16x16xf32>
      %548 = arith.mulf %546, %547 : vector<2x16x16xf32>
      %549 = arith.addf %544, %548 : vector<2x16x16xf32>
      %c52 = arith.constant 52 : index
      %550 = memref.load %arg3[%c52] : memref<98xf32, #tpu.memory_space<smem>>
      %c53 = arith.constant 53 : index
      %551 = memref.load %arg3[%c53] : memref<98xf32, #tpu.memory_space<smem>>
      %c0_543 = arith.constant 0 : index
      %c5_544 = arith.constant 5 : index
      %c0_545 = arith.constant 0 : index
      %c3_546 = arith.constant 3 : index
      %c0_547 = arith.constant 0 : index
      %552 = vector.load %arg8[%c0_543, %c5_544, %c0_545, %c3_546, %c0_547] : memref<2x7x2x22x16xf32, #tpu.memory_space<vmem>>, vector<1x1x2x16x16xf32>
      %553 = vector.shape_cast %552 : vector<1x1x2x16x16xf32> to vector<2x16x16xf32>
      %554 = vector.broadcast %550 : f32 to vector<2x16x16xf32>
      %555 = arith.mulf %553, %554 : vector<2x16x16xf32>
      %556 = arith.addf %513, %555 : vector<2x16x16xf32>
      %c1_548 = arith.constant 1 : index
      %c5_549 = arith.constant 5 : index
      %c0_550 = arith.constant 0 : index
      %c3_551 = arith.constant 3 : index
      %c0_552 = arith.constant 0 : index
      %557 = vector.load %arg8[%c1_548, %c5_549, %c0_550, %c3_551, %c0_552] : memref<2x7x2x22x16xf32, #tpu.memory_space<vmem>>, vector<1x1x2x16x16xf32>
      %558 = vector.shape_cast %557 : vector<1x1x2x16x16xf32> to vector<2x16x16xf32>
      %559 = vector.broadcast %551 : f32 to vector<2x16x16xf32>
      %560 = arith.mulf %558, %559 : vector<2x16x16xf32>
      %561 = arith.addf %556, %560 : vector<2x16x16xf32>
      %c54 = arith.constant 54 : index
      %562 = memref.load %arg3[%c54] : memref<98xf32, #tpu.memory_space<smem>>
      %c55 = arith.constant 55 : index
      %563 = memref.load %arg3[%c55] : memref<98xf32, #tpu.memory_space<smem>>
      %c0_553 = arith.constant 0 : index
      %c6_554 = arith.constant 6 : index
      %c0_555 = arith.constant 0 : index
      %c3_556 = arith.constant 3 : index
      %c0_557 = arith.constant 0 : index
      %564 = vector.load %arg8[%c0_553, %c6_554, %c0_555, %c3_556, %c0_557] : memref<2x7x2x22x16xf32, #tpu.memory_space<vmem>>, vector<1x1x2x16x16xf32>
      %565 = vector.shape_cast %564 : vector<1x1x2x16x16xf32> to vector<2x16x16xf32>
      %566 = vector.broadcast %562 : f32 to vector<2x16x16xf32>
      %567 = arith.mulf %565, %566 : vector<2x16x16xf32>
      %568 = arith.addf %525, %567 : vector<2x16x16xf32>
      %c1_558 = arith.constant 1 : index
      %c6_559 = arith.constant 6 : index
      %c0_560 = arith.constant 0 : index
      %c3_561 = arith.constant 3 : index
      %c0_562 = arith.constant 0 : index
      %569 = vector.load %arg8[%c1_558, %c6_559, %c0_560, %c3_561, %c0_562] : memref<2x7x2x22x16xf32, #tpu.memory_space<vmem>>, vector<1x1x2x16x16xf32>
      %570 = vector.shape_cast %569 : vector<1x1x2x16x16xf32> to vector<2x16x16xf32>
      %571 = vector.broadcast %563 : f32 to vector<2x16x16xf32>
      %572 = arith.mulf %570, %571 : vector<2x16x16xf32>
      %573 = arith.addf %568, %572 : vector<2x16x16xf32>
      %c56 = arith.constant 56 : index
      %574 = memref.load %arg3[%c56] : memref<98xf32, #tpu.memory_space<smem>>
      %c57 = arith.constant 57 : index
      %575 = memref.load %arg3[%c57] : memref<98xf32, #tpu.memory_space<smem>>
      %c0_563 = arith.constant 0 : index
      %c0_564 = arith.constant 0 : index
      %c0_565 = arith.constant 0 : index
      %c4_566 = arith.constant 4 : index
      %c0_567 = arith.constant 0 : index
      %576 = vector.load %arg8[%c0_563, %c0_564, %c0_565, %c4_566, %c0_567] : memref<2x7x2x22x16xf32, #tpu.memory_space<vmem>>, vector<1x1x2x16x16xf32>
      %577 = vector.shape_cast %576 : vector<1x1x2x16x16xf32> to vector<2x16x16xf32>
      %578 = vector.broadcast %574 : f32 to vector<2x16x16xf32>
      %579 = arith.mulf %577, %578 : vector<2x16x16xf32>
      %580 = arith.addf %537, %579 : vector<2x16x16xf32>
      %c1_568 = arith.constant 1 : index
      %c0_569 = arith.constant 0 : index
      %c0_570 = arith.constant 0 : index
      %c4_571 = arith.constant 4 : index
      %c0_572 = arith.constant 0 : index
      %581 = vector.load %arg8[%c1_568, %c0_569, %c0_570, %c4_571, %c0_572] : memref<2x7x2x22x16xf32, #tpu.memory_space<vmem>>, vector<1x1x2x16x16xf32>
      %582 = vector.shape_cast %581 : vector<1x1x2x16x16xf32> to vector<2x16x16xf32>
      %583 = vector.broadcast %575 : f32 to vector<2x16x16xf32>
      %584 = arith.mulf %582, %583 : vector<2x16x16xf32>
      %585 = arith.addf %580, %584 : vector<2x16x16xf32>
      %c58 = arith.constant 58 : index
      %586 = memref.load %arg3[%c58] : memref<98xf32, #tpu.memory_space<smem>>
      %c59 = arith.constant 59 : index
      %587 = memref.load %arg3[%c59] : memref<98xf32, #tpu.memory_space<smem>>
      %c0_573 = arith.constant 0 : index
      %c1_574 = arith.constant 1 : index
      %c0_575 = arith.constant 0 : index
      %c4_576 = arith.constant 4 : index
      %c0_577 = arith.constant 0 : index
      %588 = vector.load %arg8[%c0_573, %c1_574, %c0_575, %c4_576, %c0_577] : memref<2x7x2x22x16xf32, #tpu.memory_space<vmem>>, vector<1x1x2x16x16xf32>
      %589 = vector.shape_cast %588 : vector<1x1x2x16x16xf32> to vector<2x16x16xf32>
      %590 = vector.broadcast %586 : f32 to vector<2x16x16xf32>
      %591 = arith.mulf %589, %590 : vector<2x16x16xf32>
      %592 = arith.addf %549, %591 : vector<2x16x16xf32>
      %c1_578 = arith.constant 1 : index
      %c1_579 = arith.constant 1 : index
      %c0_580 = arith.constant 0 : index
      %c4_581 = arith.constant 4 : index
      %c0_582 = arith.constant 0 : index
      %593 = vector.load %arg8[%c1_578, %c1_579, %c0_580, %c4_581, %c0_582] : memref<2x7x2x22x16xf32, #tpu.memory_space<vmem>>, vector<1x1x2x16x16xf32>
      %594 = vector.shape_cast %593 : vector<1x1x2x16x16xf32> to vector<2x16x16xf32>
      %595 = vector.broadcast %587 : f32 to vector<2x16x16xf32>
      %596 = arith.mulf %594, %595 : vector<2x16x16xf32>
      %597 = arith.addf %592, %596 : vector<2x16x16xf32>
      %c60 = arith.constant 60 : index
      %598 = memref.load %arg3[%c60] : memref<98xf32, #tpu.memory_space<smem>>
      %c61 = arith.constant 61 : index
      %599 = memref.load %arg3[%c61] : memref<98xf32, #tpu.memory_space<smem>>
      %c0_583 = arith.constant 0 : index
      %c2_584 = arith.constant 2 : index
      %c0_585 = arith.constant 0 : index
      %c4_586 = arith.constant 4 : index
      %c0_587 = arith.constant 0 : index
      %600 = vector.load %arg8[%c0_583, %c2_584, %c0_585, %c4_586, %c0_587] : memref<2x7x2x22x16xf32, #tpu.memory_space<vmem>>, vector<1x1x2x16x16xf32>
      %601 = vector.shape_cast %600 : vector<1x1x2x16x16xf32> to vector<2x16x16xf32>
      %602 = vector.broadcast %598 : f32 to vector<2x16x16xf32>
      %603 = arith.mulf %601, %602 : vector<2x16x16xf32>
      %604 = arith.addf %561, %603 : vector<2x16x16xf32>
      %c1_588 = arith.constant 1 : index
      %c2_589 = arith.constant 2 : index
      %c0_590 = arith.constant 0 : index
      %c4_591 = arith.constant 4 : index
      %c0_592 = arith.constant 0 : index
      %605 = vector.load %arg8[%c1_588, %c2_589, %c0_590, %c4_591, %c0_592] : memref<2x7x2x22x16xf32, #tpu.memory_space<vmem>>, vector<1x1x2x16x16xf32>
      %606 = vector.shape_cast %605 : vector<1x1x2x16x16xf32> to vector<2x16x16xf32>
      %607 = vector.broadcast %599 : f32 to vector<2x16x16xf32>
      %608 = arith.mulf %606, %607 : vector<2x16x16xf32>
      %609 = arith.addf %604, %608 : vector<2x16x16xf32>
      %c62 = arith.constant 62 : index
      %610 = memref.load %arg3[%c62] : memref<98xf32, #tpu.memory_space<smem>>
      %c63 = arith.constant 63 : index
      %611 = memref.load %arg3[%c63] : memref<98xf32, #tpu.memory_space<smem>>
      %c0_593 = arith.constant 0 : index
      %c3_594 = arith.constant 3 : index
      %c0_595 = arith.constant 0 : index
      %c4_596 = arith.constant 4 : index
      %c0_597 = arith.constant 0 : index
      %612 = vector.load %arg8[%c0_593, %c3_594, %c0_595, %c4_596, %c0_597] : memref<2x7x2x22x16xf32, #tpu.memory_space<vmem>>, vector<1x1x2x16x16xf32>
      %613 = vector.shape_cast %612 : vector<1x1x2x16x16xf32> to vector<2x16x16xf32>
      %614 = vector.broadcast %610 : f32 to vector<2x16x16xf32>
      %615 = arith.mulf %613, %614 : vector<2x16x16xf32>
      %616 = arith.addf %573, %615 : vector<2x16x16xf32>
      %c1_598 = arith.constant 1 : index
      %c3_599 = arith.constant 3 : index
      %c0_600 = arith.constant 0 : index
      %c4_601 = arith.constant 4 : index
      %c0_602 = arith.constant 0 : index
      %617 = vector.load %arg8[%c1_598, %c3_599, %c0_600, %c4_601, %c0_602] : memref<2x7x2x22x16xf32, #tpu.memory_space<vmem>>, vector<1x1x2x16x16xf32>
      %618 = vector.shape_cast %617 : vector<1x1x2x16x16xf32> to vector<2x16x16xf32>
      %619 = vector.broadcast %611 : f32 to vector<2x16x16xf32>
      %620 = arith.mulf %618, %619 : vector<2x16x16xf32>
      %621 = arith.addf %616, %620 : vector<2x16x16xf32>
      %c64 = arith.constant 64 : index
      %622 = memref.load %arg3[%c64] : memref<98xf32, #tpu.memory_space<smem>>
      %c65 = arith.constant 65 : index
      %623 = memref.load %arg3[%c65] : memref<98xf32, #tpu.memory_space<smem>>
      %c0_603 = arith.constant 0 : index
      %c4_604 = arith.constant 4 : index
      %c0_605 = arith.constant 0 : index
      %c4_606 = arith.constant 4 : index
      %c0_607 = arith.constant 0 : index
      %624 = vector.load %arg8[%c0_603, %c4_604, %c0_605, %c4_606, %c0_607] : memref<2x7x2x22x16xf32, #tpu.memory_space<vmem>>, vector<1x1x2x16x16xf32>
      %625 = vector.shape_cast %624 : vector<1x1x2x16x16xf32> to vector<2x16x16xf32>
      %626 = vector.broadcast %622 : f32 to vector<2x16x16xf32>
      %627 = arith.mulf %625, %626 : vector<2x16x16xf32>
      %628 = arith.addf %585, %627 : vector<2x16x16xf32>
      %c1_608 = arith.constant 1 : index
      %c4_609 = arith.constant 4 : index
      %c0_610 = arith.constant 0 : index
      %c4_611 = arith.constant 4 : index
      %c0_612 = arith.constant 0 : index
      %629 = vector.load %arg8[%c1_608, %c4_609, %c0_610, %c4_611, %c0_612] : memref<2x7x2x22x16xf32, #tpu.memory_space<vmem>>, vector<1x1x2x16x16xf32>
      %630 = vector.shape_cast %629 : vector<1x1x2x16x16xf32> to vector<2x16x16xf32>
      %631 = vector.broadcast %623 : f32 to vector<2x16x16xf32>
      %632 = arith.mulf %630, %631 : vector<2x16x16xf32>
      %633 = arith.addf %628, %632 : vector<2x16x16xf32>
      %c66 = arith.constant 66 : index
      %634 = memref.load %arg3[%c66] : memref<98xf32, #tpu.memory_space<smem>>
      %c67 = arith.constant 67 : index
      %635 = memref.load %arg3[%c67] : memref<98xf32, #tpu.memory_space<smem>>
      %c0_613 = arith.constant 0 : index
      %c5_614 = arith.constant 5 : index
      %c0_615 = arith.constant 0 : index
      %c4_616 = arith.constant 4 : index
      %c0_617 = arith.constant 0 : index
      %636 = vector.load %arg8[%c0_613, %c5_614, %c0_615, %c4_616, %c0_617] : memref<2x7x2x22x16xf32, #tpu.memory_space<vmem>>, vector<1x1x2x16x16xf32>
      %637 = vector.shape_cast %636 : vector<1x1x2x16x16xf32> to vector<2x16x16xf32>
      %638 = vector.broadcast %634 : f32 to vector<2x16x16xf32>
      %639 = arith.mulf %637, %638 : vector<2x16x16xf32>
      %640 = arith.addf %597, %639 : vector<2x16x16xf32>
      %c1_618 = arith.constant 1 : index
      %c5_619 = arith.constant 5 : index
      %c0_620 = arith.constant 0 : index
      %c4_621 = arith.constant 4 : index
      %c0_622 = arith.constant 0 : index
      %641 = vector.load %arg8[%c1_618, %c5_619, %c0_620, %c4_621, %c0_622] : memref<2x7x2x22x16xf32, #tpu.memory_space<vmem>>, vector<1x1x2x16x16xf32>
      %642 = vector.shape_cast %641 : vector<1x1x2x16x16xf32> to vector<2x16x16xf32>
      %643 = vector.broadcast %635 : f32 to vector<2x16x16xf32>
      %644 = arith.mulf %642, %643 : vector<2x16x16xf32>
      %645 = arith.addf %640, %644 : vector<2x16x16xf32>
      %c68 = arith.constant 68 : index
      %646 = memref.load %arg3[%c68] : memref<98xf32, #tpu.memory_space<smem>>
      %c69 = arith.constant 69 : index
      %647 = memref.load %arg3[%c69] : memref<98xf32, #tpu.memory_space<smem>>
      %c0_623 = arith.constant 0 : index
      %c6_624 = arith.constant 6 : index
      %c0_625 = arith.constant 0 : index
      %c4_626 = arith.constant 4 : index
      %c0_627 = arith.constant 0 : index
      %648 = vector.load %arg8[%c0_623, %c6_624, %c0_625, %c4_626, %c0_627] : memref<2x7x2x22x16xf32, #tpu.memory_space<vmem>>, vector<1x1x2x16x16xf32>
      %649 = vector.shape_cast %648 : vector<1x1x2x16x16xf32> to vector<2x16x16xf32>
      %650 = vector.broadcast %646 : f32 to vector<2x16x16xf32>
      %651 = arith.mulf %649, %650 : vector<2x16x16xf32>
      %652 = arith.addf %609, %651 : vector<2x16x16xf32>
      %c1_628 = arith.constant 1 : index
      %c6_629 = arith.constant 6 : index
      %c0_630 = arith.constant 0 : index
      %c4_631 = arith.constant 4 : index
      %c0_632 = arith.constant 0 : index
      %653 = vector.load %arg8[%c1_628, %c6_629, %c0_630, %c4_631, %c0_632] : memref<2x7x2x22x16xf32, #tpu.memory_space<vmem>>, vector<1x1x2x16x16xf32>
      %654 = vector.shape_cast %653 : vector<1x1x2x16x16xf32> to vector<2x16x16xf32>
      %655 = vector.broadcast %647 : f32 to vector<2x16x16xf32>
      %656 = arith.mulf %654, %655 : vector<2x16x16xf32>
      %657 = arith.addf %652, %656 : vector<2x16x16xf32>
      %c70 = arith.constant 70 : index
      %658 = memref.load %arg3[%c70] : memref<98xf32, #tpu.memory_space<smem>>
      %c71 = arith.constant 71 : index
      %659 = memref.load %arg3[%c71] : memref<98xf32, #tpu.memory_space<smem>>
      %c0_633 = arith.constant 0 : index
      %c0_634 = arith.constant 0 : index
      %c0_635 = arith.constant 0 : index
      %c5_636 = arith.constant 5 : index
      %c0_637 = arith.constant 0 : index
      %660 = vector.load %arg8[%c0_633, %c0_634, %c0_635, %c5_636, %c0_637] : memref<2x7x2x22x16xf32, #tpu.memory_space<vmem>>, vector<1x1x2x16x16xf32>
      %661 = vector.shape_cast %660 : vector<1x1x2x16x16xf32> to vector<2x16x16xf32>
      %662 = vector.broadcast %658 : f32 to vector<2x16x16xf32>
      %663 = arith.mulf %661, %662 : vector<2x16x16xf32>
      %664 = arith.addf %621, %663 : vector<2x16x16xf32>
      %c1_638 = arith.constant 1 : index
      %c0_639 = arith.constant 0 : index
      %c0_640 = arith.constant 0 : index
      %c5_641 = arith.constant 5 : index
      %c0_642 = arith.constant 0 : index
      %665 = vector.load %arg8[%c1_638, %c0_639, %c0_640, %c5_641, %c0_642] : memref<2x7x2x22x16xf32, #tpu.memory_space<vmem>>, vector<1x1x2x16x16xf32>
      %666 = vector.shape_cast %665 : vector<1x1x2x16x16xf32> to vector<2x16x16xf32>
      %667 = vector.broadcast %659 : f32 to vector<2x16x16xf32>
      %668 = arith.mulf %666, %667 : vector<2x16x16xf32>
      %669 = arith.addf %664, %668 : vector<2x16x16xf32>
      %c72 = arith.constant 72 : index
      %670 = memref.load %arg3[%c72] : memref<98xf32, #tpu.memory_space<smem>>
      %c73 = arith.constant 73 : index
      %671 = memref.load %arg3[%c73] : memref<98xf32, #tpu.memory_space<smem>>
      %c0_643 = arith.constant 0 : index
      %c1_644 = arith.constant 1 : index
      %c0_645 = arith.constant 0 : index
      %c5_646 = arith.constant 5 : index
      %c0_647 = arith.constant 0 : index
      %672 = vector.load %arg8[%c0_643, %c1_644, %c0_645, %c5_646, %c0_647] : memref<2x7x2x22x16xf32, #tpu.memory_space<vmem>>, vector<1x1x2x16x16xf32>
      %673 = vector.shape_cast %672 : vector<1x1x2x16x16xf32> to vector<2x16x16xf32>
      %674 = vector.broadcast %670 : f32 to vector<2x16x16xf32>
      %675 = arith.mulf %673, %674 : vector<2x16x16xf32>
      %676 = arith.addf %633, %675 : vector<2x16x16xf32>
      %c1_648 = arith.constant 1 : index
      %c1_649 = arith.constant 1 : index
      %c0_650 = arith.constant 0 : index
      %c5_651 = arith.constant 5 : index
      %c0_652 = arith.constant 0 : index
      %677 = vector.load %arg8[%c1_648, %c1_649, %c0_650, %c5_651, %c0_652] : memref<2x7x2x22x16xf32, #tpu.memory_space<vmem>>, vector<1x1x2x16x16xf32>
      %678 = vector.shape_cast %677 : vector<1x1x2x16x16xf32> to vector<2x16x16xf32>
      %679 = vector.broadcast %671 : f32 to vector<2x16x16xf32>
      %680 = arith.mulf %678, %679 : vector<2x16x16xf32>
      %681 = arith.addf %676, %680 : vector<2x16x16xf32>
      %c74 = arith.constant 74 : index
      %682 = memref.load %arg3[%c74] : memref<98xf32, #tpu.memory_space<smem>>
      %c75 = arith.constant 75 : index
      %683 = memref.load %arg3[%c75] : memref<98xf32, #tpu.memory_space<smem>>
      %c0_653 = arith.constant 0 : index
      %c2_654 = arith.constant 2 : index
      %c0_655 = arith.constant 0 : index
      %c5_656 = arith.constant 5 : index
      %c0_657 = arith.constant 0 : index
      %684 = vector.load %arg8[%c0_653, %c2_654, %c0_655, %c5_656, %c0_657] : memref<2x7x2x22x16xf32, #tpu.memory_space<vmem>>, vector<1x1x2x16x16xf32>
      %685 = vector.shape_cast %684 : vector<1x1x2x16x16xf32> to vector<2x16x16xf32>
      %686 = vector.broadcast %682 : f32 to vector<2x16x16xf32>
      %687 = arith.mulf %685, %686 : vector<2x16x16xf32>
      %688 = arith.addf %645, %687 : vector<2x16x16xf32>
      %c1_658 = arith.constant 1 : index
      %c2_659 = arith.constant 2 : index
      %c0_660 = arith.constant 0 : index
      %c5_661 = arith.constant 5 : index
      %c0_662 = arith.constant 0 : index
      %689 = vector.load %arg8[%c1_658, %c2_659, %c0_660, %c5_661, %c0_662] : memref<2x7x2x22x16xf32, #tpu.memory_space<vmem>>, vector<1x1x2x16x16xf32>
      %690 = vector.shape_cast %689 : vector<1x1x2x16x16xf32> to vector<2x16x16xf32>
      %691 = vector.broadcast %683 : f32 to vector<2x16x16xf32>
      %692 = arith.mulf %690, %691 : vector<2x16x16xf32>
      %693 = arith.addf %688, %692 : vector<2x16x16xf32>
      %c76 = arith.constant 76 : index
      %694 = memref.load %arg3[%c76] : memref<98xf32, #tpu.memory_space<smem>>
      %c77 = arith.constant 77 : index
      %695 = memref.load %arg3[%c77] : memref<98xf32, #tpu.memory_space<smem>>
      %c0_663 = arith.constant 0 : index
      %c3_664 = arith.constant 3 : index
      %c0_665 = arith.constant 0 : index
      %c5_666 = arith.constant 5 : index
      %c0_667 = arith.constant 0 : index
      %696 = vector.load %arg8[%c0_663, %c3_664, %c0_665, %c5_666, %c0_667] : memref<2x7x2x22x16xf32, #tpu.memory_space<vmem>>, vector<1x1x2x16x16xf32>
      %697 = vector.shape_cast %696 : vector<1x1x2x16x16xf32> to vector<2x16x16xf32>
      %698 = vector.broadcast %694 : f32 to vector<2x16x16xf32>
      %699 = arith.mulf %697, %698 : vector<2x16x16xf32>
      %700 = arith.addf %657, %699 : vector<2x16x16xf32>
      %c1_668 = arith.constant 1 : index
      %c3_669 = arith.constant 3 : index
      %c0_670 = arith.constant 0 : index
      %c5_671 = arith.constant 5 : index
      %c0_672 = arith.constant 0 : index
      %701 = vector.load %arg8[%c1_668, %c3_669, %c0_670, %c5_671, %c0_672] : memref<2x7x2x22x16xf32, #tpu.memory_space<vmem>>, vector<1x1x2x16x16xf32>
      %702 = vector.shape_cast %701 : vector<1x1x2x16x16xf32> to vector<2x16x16xf32>
      %703 = vector.broadcast %695 : f32 to vector<2x16x16xf32>
      %704 = arith.mulf %702, %703 : vector<2x16x16xf32>
      %705 = arith.addf %700, %704 : vector<2x16x16xf32>
      %c78 = arith.constant 78 : index
      %706 = memref.load %arg3[%c78] : memref<98xf32, #tpu.memory_space<smem>>
      %c79 = arith.constant 79 : index
      %707 = memref.load %arg3[%c79] : memref<98xf32, #tpu.memory_space<smem>>
      %c0_673 = arith.constant 0 : index
      %c4_674 = arith.constant 4 : index
      %c0_675 = arith.constant 0 : index
      %c5_676 = arith.constant 5 : index
      %c0_677 = arith.constant 0 : index
      %708 = vector.load %arg8[%c0_673, %c4_674, %c0_675, %c5_676, %c0_677] : memref<2x7x2x22x16xf32, #tpu.memory_space<vmem>>, vector<1x1x2x16x16xf32>
      %709 = vector.shape_cast %708 : vector<1x1x2x16x16xf32> to vector<2x16x16xf32>
      %710 = vector.broadcast %706 : f32 to vector<2x16x16xf32>
      %711 = arith.mulf %709, %710 : vector<2x16x16xf32>
      %712 = arith.addf %669, %711 : vector<2x16x16xf32>
      %c1_678 = arith.constant 1 : index
      %c4_679 = arith.constant 4 : index
      %c0_680 = arith.constant 0 : index
      %c5_681 = arith.constant 5 : index
      %c0_682 = arith.constant 0 : index
      %713 = vector.load %arg8[%c1_678, %c4_679, %c0_680, %c5_681, %c0_682] : memref<2x7x2x22x16xf32, #tpu.memory_space<vmem>>, vector<1x1x2x16x16xf32>
      %714 = vector.shape_cast %713 : vector<1x1x2x16x16xf32> to vector<2x16x16xf32>
      %715 = vector.broadcast %707 : f32 to vector<2x16x16xf32>
      %716 = arith.mulf %714, %715 : vector<2x16x16xf32>
      %717 = arith.addf %712, %716 : vector<2x16x16xf32>
      %c80 = arith.constant 80 : index
      %718 = memref.load %arg3[%c80] : memref<98xf32, #tpu.memory_space<smem>>
      %c81 = arith.constant 81 : index
      %719 = memref.load %arg3[%c81] : memref<98xf32, #tpu.memory_space<smem>>
      %c0_683 = arith.constant 0 : index
      %c5_684 = arith.constant 5 : index
      %c0_685 = arith.constant 0 : index
      %c5_686 = arith.constant 5 : index
      %c0_687 = arith.constant 0 : index
      %720 = vector.load %arg8[%c0_683, %c5_684, %c0_685, %c5_686, %c0_687] : memref<2x7x2x22x16xf32, #tpu.memory_space<vmem>>, vector<1x1x2x16x16xf32>
      %721 = vector.shape_cast %720 : vector<1x1x2x16x16xf32> to vector<2x16x16xf32>
      %722 = vector.broadcast %718 : f32 to vector<2x16x16xf32>
      %723 = arith.mulf %721, %722 : vector<2x16x16xf32>
      %724 = arith.addf %681, %723 : vector<2x16x16xf32>
      %c1_688 = arith.constant 1 : index
      %c5_689 = arith.constant 5 : index
      %c0_690 = arith.constant 0 : index
      %c5_691 = arith.constant 5 : index
      %c0_692 = arith.constant 0 : index
      %725 = vector.load %arg8[%c1_688, %c5_689, %c0_690, %c5_691, %c0_692] : memref<2x7x2x22x16xf32, #tpu.memory_space<vmem>>, vector<1x1x2x16x16xf32>
      %726 = vector.shape_cast %725 : vector<1x1x2x16x16xf32> to vector<2x16x16xf32>
      %727 = vector.broadcast %719 : f32 to vector<2x16x16xf32>
      %728 = arith.mulf %726, %727 : vector<2x16x16xf32>
      %729 = arith.addf %724, %728 : vector<2x16x16xf32>
      %c82 = arith.constant 82 : index
      %730 = memref.load %arg3[%c82] : memref<98xf32, #tpu.memory_space<smem>>
      %c83 = arith.constant 83 : index
      %731 = memref.load %arg3[%c83] : memref<98xf32, #tpu.memory_space<smem>>
      %c0_693 = arith.constant 0 : index
      %c6_694 = arith.constant 6 : index
      %c0_695 = arith.constant 0 : index
      %c5_696 = arith.constant 5 : index
      %c0_697 = arith.constant 0 : index
      %732 = vector.load %arg8[%c0_693, %c6_694, %c0_695, %c5_696, %c0_697] : memref<2x7x2x22x16xf32, #tpu.memory_space<vmem>>, vector<1x1x2x16x16xf32>
      %733 = vector.shape_cast %732 : vector<1x1x2x16x16xf32> to vector<2x16x16xf32>
      %734 = vector.broadcast %730 : f32 to vector<2x16x16xf32>
      %735 = arith.mulf %733, %734 : vector<2x16x16xf32>
      %736 = arith.addf %693, %735 : vector<2x16x16xf32>
      %c1_698 = arith.constant 1 : index
      %c6_699 = arith.constant 6 : index
      %c0_700 = arith.constant 0 : index
      %c5_701 = arith.constant 5 : index
      %c0_702 = arith.constant 0 : index
      %737 = vector.load %arg8[%c1_698, %c6_699, %c0_700, %c5_701, %c0_702] : memref<2x7x2x22x16xf32, #tpu.memory_space<vmem>>, vector<1x1x2x16x16xf32>
      %738 = vector.shape_cast %737 : vector<1x1x2x16x16xf32> to vector<2x16x16xf32>
      %739 = vector.broadcast %731 : f32 to vector<2x16x16xf32>
      %740 = arith.mulf %738, %739 : vector<2x16x16xf32>
      %741 = arith.addf %736, %740 : vector<2x16x16xf32>
      %c84 = arith.constant 84 : index
      %742 = memref.load %arg3[%c84] : memref<98xf32, #tpu.memory_space<smem>>
      %c85 = arith.constant 85 : index
      %743 = memref.load %arg3[%c85] : memref<98xf32, #tpu.memory_space<smem>>
      %c0_703 = arith.constant 0 : index
      %c0_704 = arith.constant 0 : index
      %c0_705 = arith.constant 0 : index
      %c6_706 = arith.constant 6 : index
      %c0_707 = arith.constant 0 : index
      %744 = vector.load %arg8[%c0_703, %c0_704, %c0_705, %c6_706, %c0_707] : memref<2x7x2x22x16xf32, #tpu.memory_space<vmem>>, vector<1x1x2x16x16xf32>
      %745 = vector.shape_cast %744 : vector<1x1x2x16x16xf32> to vector<2x16x16xf32>
      %746 = vector.broadcast %742 : f32 to vector<2x16x16xf32>
      %747 = arith.mulf %745, %746 : vector<2x16x16xf32>
      %748 = arith.addf %705, %747 : vector<2x16x16xf32>
      %c1_708 = arith.constant 1 : index
      %c0_709 = arith.constant 0 : index
      %c0_710 = arith.constant 0 : index
      %c6_711 = arith.constant 6 : index
      %c0_712 = arith.constant 0 : index
      %749 = vector.load %arg8[%c1_708, %c0_709, %c0_710, %c6_711, %c0_712] : memref<2x7x2x22x16xf32, #tpu.memory_space<vmem>>, vector<1x1x2x16x16xf32>
      %750 = vector.shape_cast %749 : vector<1x1x2x16x16xf32> to vector<2x16x16xf32>
      %751 = vector.broadcast %743 : f32 to vector<2x16x16xf32>
      %752 = arith.mulf %750, %751 : vector<2x16x16xf32>
      %753 = arith.addf %748, %752 : vector<2x16x16xf32>
      %c86 = arith.constant 86 : index
      %754 = memref.load %arg3[%c86] : memref<98xf32, #tpu.memory_space<smem>>
      %c87 = arith.constant 87 : index
      %755 = memref.load %arg3[%c87] : memref<98xf32, #tpu.memory_space<smem>>
      %c0_713 = arith.constant 0 : index
      %c1_714 = arith.constant 1 : index
      %c0_715 = arith.constant 0 : index
      %c6_716 = arith.constant 6 : index
      %c0_717 = arith.constant 0 : index
      %756 = vector.load %arg8[%c0_713, %c1_714, %c0_715, %c6_716, %c0_717] : memref<2x7x2x22x16xf32, #tpu.memory_space<vmem>>, vector<1x1x2x16x16xf32>
      %757 = vector.shape_cast %756 : vector<1x1x2x16x16xf32> to vector<2x16x16xf32>
      %758 = vector.broadcast %754 : f32 to vector<2x16x16xf32>
      %759 = arith.mulf %757, %758 : vector<2x16x16xf32>
      %760 = arith.addf %717, %759 : vector<2x16x16xf32>
      %c1_718 = arith.constant 1 : index
      %c1_719 = arith.constant 1 : index
      %c0_720 = arith.constant 0 : index
      %c6_721 = arith.constant 6 : index
      %c0_722 = arith.constant 0 : index
      %761 = vector.load %arg8[%c1_718, %c1_719, %c0_720, %c6_721, %c0_722] : memref<2x7x2x22x16xf32, #tpu.memory_space<vmem>>, vector<1x1x2x16x16xf32>
      %762 = vector.shape_cast %761 : vector<1x1x2x16x16xf32> to vector<2x16x16xf32>
      %763 = vector.broadcast %755 : f32 to vector<2x16x16xf32>
      %764 = arith.mulf %762, %763 : vector<2x16x16xf32>
      %765 = arith.addf %760, %764 : vector<2x16x16xf32>
      %c88 = arith.constant 88 : index
      %766 = memref.load %arg3[%c88] : memref<98xf32, #tpu.memory_space<smem>>
      %c89 = arith.constant 89 : index
      %767 = memref.load %arg3[%c89] : memref<98xf32, #tpu.memory_space<smem>>
      %c0_723 = arith.constant 0 : index
      %c2_724 = arith.constant 2 : index
      %c0_725 = arith.constant 0 : index
      %c6_726 = arith.constant 6 : index
      %c0_727 = arith.constant 0 : index
      %768 = vector.load %arg8[%c0_723, %c2_724, %c0_725, %c6_726, %c0_727] : memref<2x7x2x22x16xf32, #tpu.memory_space<vmem>>, vector<1x1x2x16x16xf32>
      %769 = vector.shape_cast %768 : vector<1x1x2x16x16xf32> to vector<2x16x16xf32>
      %770 = vector.broadcast %766 : f32 to vector<2x16x16xf32>
      %771 = arith.mulf %769, %770 : vector<2x16x16xf32>
      %772 = arith.addf %729, %771 : vector<2x16x16xf32>
      %c1_728 = arith.constant 1 : index
      %c2_729 = arith.constant 2 : index
      %c0_730 = arith.constant 0 : index
      %c6_731 = arith.constant 6 : index
      %c0_732 = arith.constant 0 : index
      %773 = vector.load %arg8[%c1_728, %c2_729, %c0_730, %c6_731, %c0_732] : memref<2x7x2x22x16xf32, #tpu.memory_space<vmem>>, vector<1x1x2x16x16xf32>
      %774 = vector.shape_cast %773 : vector<1x1x2x16x16xf32> to vector<2x16x16xf32>
      %775 = vector.broadcast %767 : f32 to vector<2x16x16xf32>
      %776 = arith.mulf %774, %775 : vector<2x16x16xf32>
      %777 = arith.addf %772, %776 : vector<2x16x16xf32>
      %c90 = arith.constant 90 : index
      %778 = memref.load %arg3[%c90] : memref<98xf32, #tpu.memory_space<smem>>
      %c91 = arith.constant 91 : index
      %779 = memref.load %arg3[%c91] : memref<98xf32, #tpu.memory_space<smem>>
      %c0_733 = arith.constant 0 : index
      %c3_734 = arith.constant 3 : index
      %c0_735 = arith.constant 0 : index
      %c6_736 = arith.constant 6 : index
      %c0_737 = arith.constant 0 : index
      %780 = vector.load %arg8[%c0_733, %c3_734, %c0_735, %c6_736, %c0_737] : memref<2x7x2x22x16xf32, #tpu.memory_space<vmem>>, vector<1x1x2x16x16xf32>
      %781 = vector.shape_cast %780 : vector<1x1x2x16x16xf32> to vector<2x16x16xf32>
      %782 = vector.broadcast %778 : f32 to vector<2x16x16xf32>
      %783 = arith.mulf %781, %782 : vector<2x16x16xf32>
      %784 = arith.addf %741, %783 : vector<2x16x16xf32>
      %c1_738 = arith.constant 1 : index
      %c3_739 = arith.constant 3 : index
      %c0_740 = arith.constant 0 : index
      %c6_741 = arith.constant 6 : index
      %c0_742 = arith.constant 0 : index
      %785 = vector.load %arg8[%c1_738, %c3_739, %c0_740, %c6_741, %c0_742] : memref<2x7x2x22x16xf32, #tpu.memory_space<vmem>>, vector<1x1x2x16x16xf32>
      %786 = vector.shape_cast %785 : vector<1x1x2x16x16xf32> to vector<2x16x16xf32>
      %787 = vector.broadcast %779 : f32 to vector<2x16x16xf32>
      %788 = arith.mulf %786, %787 : vector<2x16x16xf32>
      %789 = arith.addf %784, %788 : vector<2x16x16xf32>
      %c92 = arith.constant 92 : index
      %790 = memref.load %arg3[%c92] : memref<98xf32, #tpu.memory_space<smem>>
      %c93 = arith.constant 93 : index
      %791 = memref.load %arg3[%c93] : memref<98xf32, #tpu.memory_space<smem>>
      %c0_743 = arith.constant 0 : index
      %c4_744 = arith.constant 4 : index
      %c0_745 = arith.constant 0 : index
      %c6_746 = arith.constant 6 : index
      %c0_747 = arith.constant 0 : index
      %792 = vector.load %arg8[%c0_743, %c4_744, %c0_745, %c6_746, %c0_747] : memref<2x7x2x22x16xf32, #tpu.memory_space<vmem>>, vector<1x1x2x16x16xf32>
      %793 = vector.shape_cast %792 : vector<1x1x2x16x16xf32> to vector<2x16x16xf32>
      %794 = vector.broadcast %790 : f32 to vector<2x16x16xf32>
      %795 = arith.mulf %793, %794 : vector<2x16x16xf32>
      %796 = arith.addf %753, %795 : vector<2x16x16xf32>
      %c1_748 = arith.constant 1 : index
      %c4_749 = arith.constant 4 : index
      %c0_750 = arith.constant 0 : index
      %c6_751 = arith.constant 6 : index
      %c0_752 = arith.constant 0 : index
      %797 = vector.load %arg8[%c1_748, %c4_749, %c0_750, %c6_751, %c0_752] : memref<2x7x2x22x16xf32, #tpu.memory_space<vmem>>, vector<1x1x2x16x16xf32>
      %798 = vector.shape_cast %797 : vector<1x1x2x16x16xf32> to vector<2x16x16xf32>
      %799 = vector.broadcast %791 : f32 to vector<2x16x16xf32>
      %800 = arith.mulf %798, %799 : vector<2x16x16xf32>
      %801 = arith.addf %796, %800 : vector<2x16x16xf32>
      %c94 = arith.constant 94 : index
      %802 = memref.load %arg3[%c94] : memref<98xf32, #tpu.memory_space<smem>>
      %c95 = arith.constant 95 : index
      %803 = memref.load %arg3[%c95] : memref<98xf32, #tpu.memory_space<smem>>
      %c0_753 = arith.constant 0 : index
      %c5_754 = arith.constant 5 : index
      %c0_755 = arith.constant 0 : index
      %c6_756 = arith.constant 6 : index
      %c0_757 = arith.constant 0 : index
      %804 = vector.load %arg8[%c0_753, %c5_754, %c0_755, %c6_756, %c0_757] : memref<2x7x2x22x16xf32, #tpu.memory_space<vmem>>, vector<1x1x2x16x16xf32>
      %805 = vector.shape_cast %804 : vector<1x1x2x16x16xf32> to vector<2x16x16xf32>
      %806 = vector.broadcast %802 : f32 to vector<2x16x16xf32>
      %807 = arith.mulf %805, %806 : vector<2x16x16xf32>
      %808 = arith.addf %765, %807 : vector<2x16x16xf32>
      %c1_758 = arith.constant 1 : index
      %c5_759 = arith.constant 5 : index
      %c0_760 = arith.constant 0 : index
      %c6_761 = arith.constant 6 : index
      %c0_762 = arith.constant 0 : index
      %809 = vector.load %arg8[%c1_758, %c5_759, %c0_760, %c6_761, %c0_762] : memref<2x7x2x22x16xf32, #tpu.memory_space<vmem>>, vector<1x1x2x16x16xf32>
      %810 = vector.shape_cast %809 : vector<1x1x2x16x16xf32> to vector<2x16x16xf32>
      %811 = vector.broadcast %803 : f32 to vector<2x16x16xf32>
      %812 = arith.mulf %810, %811 : vector<2x16x16xf32>
      %813 = arith.addf %808, %812 : vector<2x16x16xf32>
      %c96 = arith.constant 96 : index
      %814 = memref.load %arg3[%c96] : memref<98xf32, #tpu.memory_space<smem>>
      %c97 = arith.constant 97 : index
      %815 = memref.load %arg3[%c97] : memref<98xf32, #tpu.memory_space<smem>>
      %c0_763 = arith.constant 0 : index
      %c6_764 = arith.constant 6 : index
      %c0_765 = arith.constant 0 : index
      %c6_766 = arith.constant 6 : index
      %c0_767 = arith.constant 0 : index
      %816 = vector.load %arg8[%c0_763, %c6_764, %c0_765, %c6_766, %c0_767] : memref<2x7x2x22x16xf32, #tpu.memory_space<vmem>>, vector<1x1x2x16x16xf32>
      %817 = vector.shape_cast %816 : vector<1x1x2x16x16xf32> to vector<2x16x16xf32>
      %818 = vector.broadcast %814 : f32 to vector<2x16x16xf32>
      %819 = arith.mulf %817, %818 : vector<2x16x16xf32>
      %820 = arith.addf %777, %819 : vector<2x16x16xf32>
      %c1_768 = arith.constant 1 : index
      %c6_769 = arith.constant 6 : index
      %c0_770 = arith.constant 0 : index
      %c6_771 = arith.constant 6 : index
      %c0_772 = arith.constant 0 : index
      %821 = vector.load %arg8[%c1_768, %c6_769, %c0_770, %c6_771, %c0_772] : memref<2x7x2x22x16xf32, #tpu.memory_space<vmem>>, vector<1x1x2x16x16xf32>
      %822 = vector.shape_cast %821 : vector<1x1x2x16x16xf32> to vector<2x16x16xf32>
      %823 = vector.broadcast %815 : f32 to vector<2x16x16xf32>
      %824 = arith.mulf %822, %823 : vector<2x16x16xf32>
      %825 = arith.addf %820, %824 : vector<2x16x16xf32>
      %826 = arith.addf %825, %789 : vector<2x16x16xf32>
      %827 = arith.addf %801, %813 : vector<2x16x16xf32>
      %828 = arith.addf %826, %827 : vector<2x16x16xf32>
      %c0_773 = arith.constant 0 : index
      %829 = memref.load %arg4[%c0_773] : memref<1xf32, #tpu.memory_space<smem>>
      %830 = vector.broadcast %829 : f32 to vector<2x16x16xf32>
      %831 = arith.addf %828, %830 : vector<2x16x16xf32>
      %832 = arith.negf %831 : vector<2x16x16xf32>
      %833 = math.exp %832 : vector<2x16x16xf32>
      %cst_774 = arith.constant 1.000000e+00 : f32
      %834 = vector.broadcast %cst_774 : f32 to vector<2x16x16xf32>
      %835 = arith.addf %834, %833 : vector<2x16x16xf32>
      %836 = arith.divf %834, %835 : vector<2x16x16xf32>
      %837 = vector.extract_strided_slice %836 {offsets = [0, 0, 0], sizes = [2, 1, 16], strides = [1, 1, 1]} : vector<2x16x16xf32> to vector<2x1x16xf32>
      %c0_775 = arith.constant 0 : index
      %c0_776 = arith.constant 0 : index
      %c0_777 = arith.constant 0 : index
      %838 = vector.load %arg5[%c0_775, %c0_776, %c0_777] : memref<2x1x256xf32, #tpu.memory_space<vmem>>, vector<2x1x16xf32>
      tpu.vector_store %arg5[%c0_775, %c0_776, %c0_777], %837 {strides = array<i32>} : memref<2x1x256xf32, #tpu.memory_space<vmem>>, vector<2x1x16xf32>,
      %839 = vector.extract_strided_slice %836 {offsets = [0, 1, 0], sizes = [2, 1, 16], strides = [1, 1, 1]} : vector<2x16x16xf32> to vector<2x1x16xf32>
      %c0_778 = arith.constant 0 : index
      %c0_779 = arith.constant 0 : index
      %c16_780 = arith.constant 16 : index
      %840 = vector.load %arg5[%c0_778, %c0_779, %c16_780] : memref<2x1x256xf32, #tpu.memory_space<vmem>>, vector<2x1x16xf32>
      tpu.vector_store %arg5[%c0_778, %c0_779, %c16_780], %839 {strides = array<i32>} : memref<2x1x256xf32, #tpu.memory_space<vmem>>, vector<2x1x16xf32>,
      %841 = vector.extract_strided_slice %836 {offsets = [0, 2, 0], sizes = [2, 1, 16], strides = [1, 1, 1]} : vector<2x16x16xf32> to vector<2x1x16xf32>
      %c0_781 = arith.constant 0 : index
      %c0_782 = arith.constant 0 : index
      %c32_783 = arith.constant 32 : index
      %842 = vector.load %arg5[%c0_781, %c0_782, %c32_783] : memref<2x1x256xf32, #tpu.memory_space<vmem>>, vector<2x1x16xf32>
      tpu.vector_store %arg5[%c0_781, %c0_782, %c32_783], %841 {strides = array<i32>} : memref<2x1x256xf32, #tpu.memory_space<vmem>>, vector<2x1x16xf32>,
      %843 = vector.extract_strided_slice %836 {offsets = [0, 3, 0], sizes = [2, 1, 16], strides = [1, 1, 1]} : vector<2x16x16xf32> to vector<2x1x16xf32>
      %c0_784 = arith.constant 0 : index
      %c0_785 = arith.constant 0 : index
      %c48_786 = arith.constant 48 : index
      %844 = vector.load %arg5[%c0_784, %c0_785, %c48_786] : memref<2x1x256xf32, #tpu.memory_space<vmem>>, vector<2x1x16xf32>
      tpu.vector_store %arg5[%c0_784, %c0_785, %c48_786], %843 {strides = array<i32>} : memref<2x1x256xf32, #tpu.memory_space<vmem>>, vector<2x1x16xf32>,
      %845 = vector.extract_strided_slice %836 {offsets = [0, 4, 0], sizes = [2, 1, 16], strides = [1, 1, 1]} : vector<2x16x16xf32> to vector<2x1x16xf32>
      %c0_787 = arith.constant 0 : index
      %c0_788 = arith.constant 0 : index
      %c64_789 = arith.constant 64 : index
      %846 = vector.load %arg5[%c0_787, %c0_788, %c64_789] : memref<2x1x256xf32, #tpu.memory_space<vmem>>, vector<2x1x16xf32>
      tpu.vector_store %arg5[%c0_787, %c0_788, %c64_789], %845 {strides = array<i32>} : memref<2x1x256xf32, #tpu.memory_space<vmem>>, vector<2x1x16xf32>,
      %847 = vector.extract_strided_slice %836 {offsets = [0, 5, 0], sizes = [2, 1, 16], strides = [1, 1, 1]} : vector<2x16x16xf32> to vector<2x1x16xf32>
      %c0_790 = arith.constant 0 : index
      %c0_791 = arith.constant 0 : index
      %c80_792 = arith.constant 80 : index
      %848 = vector.load %arg5[%c0_790, %c0_791, %c80_792] : memref<2x1x256xf32, #tpu.memory_space<vmem>>, vector<2x1x16xf32>
      tpu.vector_store %arg5[%c0_790, %c0_791, %c80_792], %847 {strides = array<i32>} : memref<2x1x256xf32, #tpu.memory_space<vmem>>, vector<2x1x16xf32>,
      %849 = vector.extract_strided_slice %836 {offsets = [0, 6, 0], sizes = [2, 1, 16], strides = [1, 1, 1]} : vector<2x16x16xf32> to vector<2x1x16xf32>
      %c0_793 = arith.constant 0 : index
      %c0_794 = arith.constant 0 : index
      %c96_795 = arith.constant 96 : index
      %850 = vector.load %arg5[%c0_793, %c0_794, %c96_795] : memref<2x1x256xf32, #tpu.memory_space<vmem>>, vector<2x1x16xf32>
      tpu.vector_store %arg5[%c0_793, %c0_794, %c96_795], %849 {strides = array<i32>} : memref<2x1x256xf32, #tpu.memory_space<vmem>>, vector<2x1x16xf32>,
      %851 = vector.extract_strided_slice %836 {offsets = [0, 7, 0], sizes = [2, 1, 16], strides = [1, 1, 1]} : vector<2x16x16xf32> to vector<2x1x16xf32>
      %c0_796 = arith.constant 0 : index
      %c0_797 = arith.constant 0 : index
      %c112 = arith.constant 112 : index
      %852 = vector.load %arg5[%c0_796, %c0_797, %c112] : memref<2x1x256xf32, #tpu.memory_space<vmem>>, vector<2x1x16xf32>
      tpu.vector_store %arg5[%c0_796, %c0_797, %c112], %851 {strides = array<i32>} : memref<2x1x256xf32, #tpu.memory_space<vmem>>, vector<2x1x16xf32>,
      %853 = vector.extract_strided_slice %836 {offsets = [0, 8, 0], sizes = [2, 1, 16], strides = [1, 1, 1]} : vector<2x16x16xf32> to vector<2x1x16xf32>
      %c0_798 = arith.constant 0 : index
      %c0_799 = arith.constant 0 : index
      %c128 = arith.constant 128 : index
      %854 = vector.load %arg5[%c0_798, %c0_799, %c128] : memref<2x1x256xf32, #tpu.memory_space<vmem>>, vector<2x1x16xf32>
      tpu.vector_store %arg5[%c0_798, %c0_799, %c128], %853 {strides = array<i32>} : memref<2x1x256xf32, #tpu.memory_space<vmem>>, vector<2x1x16xf32>,
      %855 = vector.extract_strided_slice %836 {offsets = [0, 9, 0], sizes = [2, 1, 16], strides = [1, 1, 1]} : vector<2x16x16xf32> to vector<2x1x16xf32>
      %c0_800 = arith.constant 0 : index
      %c0_801 = arith.constant 0 : index
      %c144 = arith.constant 144 : index
      %856 = vector.load %arg5[%c0_800, %c0_801, %c144] : memref<2x1x256xf32, #tpu.memory_space<vmem>>, vector<2x1x16xf32>
      tpu.vector_store %arg5[%c0_800, %c0_801, %c144], %855 {strides = array<i32>} : memref<2x1x256xf32, #tpu.memory_space<vmem>>, vector<2x1x16xf32>,
      %857 = vector.extract_strided_slice %836 {offsets = [0, 10, 0], sizes = [2, 1, 16], strides = [1, 1, 1]} : vector<2x16x16xf32> to vector<2x1x16xf32>
      %c0_802 = arith.constant 0 : index
      %c0_803 = arith.constant 0 : index
      %c160 = arith.constant 160 : index
      %858 = vector.load %arg5[%c0_802, %c0_803, %c160] : memref<2x1x256xf32, #tpu.memory_space<vmem>>, vector<2x1x16xf32>
      tpu.vector_store %arg5[%c0_802, %c0_803, %c160], %857 {strides = array<i32>} : memref<2x1x256xf32, #tpu.memory_space<vmem>>, vector<2x1x16xf32>,
      %859 = vector.extract_strided_slice %836 {offsets = [0, 11, 0], sizes = [2, 1, 16], strides = [1, 1, 1]} : vector<2x16x16xf32> to vector<2x1x16xf32>
      %c0_804 = arith.constant 0 : index
      %c0_805 = arith.constant 0 : index
      %c176 = arith.constant 176 : index
      %860 = vector.load %arg5[%c0_804, %c0_805, %c176] : memref<2x1x256xf32, #tpu.memory_space<vmem>>, vector<2x1x16xf32>
      tpu.vector_store %arg5[%c0_804, %c0_805, %c176], %859 {strides = array<i32>} : memref<2x1x256xf32, #tpu.memory_space<vmem>>, vector<2x1x16xf32>,
      %861 = vector.extract_strided_slice %836 {offsets = [0, 12, 0], sizes = [2, 1, 16], strides = [1, 1, 1]} : vector<2x16x16xf32> to vector<2x1x16xf32>
      %c0_806 = arith.constant 0 : index
      %c0_807 = arith.constant 0 : index
      %c192 = arith.constant 192 : index
      %862 = vector.load %arg5[%c0_806, %c0_807, %c192] : memref<2x1x256xf32, #tpu.memory_space<vmem>>, vector<2x1x16xf32>
      tpu.vector_store %arg5[%c0_806, %c0_807, %c192], %861 {strides = array<i32>} : memref<2x1x256xf32, #tpu.memory_space<vmem>>, vector<2x1x16xf32>,
      %863 = vector.extract_strided_slice %836 {offsets = [0, 13, 0], sizes = [2, 1, 16], strides = [1, 1, 1]} : vector<2x16x16xf32> to vector<2x1x16xf32>
      %c0_808 = arith.constant 0 : index
      %c0_809 = arith.constant 0 : index
      %c208 = arith.constant 208 : index
      %864 = vector.load %arg5[%c0_808, %c0_809, %c208] : memref<2x1x256xf32, #tpu.memory_space<vmem>>, vector<2x1x16xf32>
      tpu.vector_store %arg5[%c0_808, %c0_809, %c208], %863 {strides = array<i32>} : memref<2x1x256xf32, #tpu.memory_space<vmem>>, vector<2x1x16xf32>,
      %865 = vector.extract_strided_slice %836 {offsets = [0, 14, 0], sizes = [2, 1, 16], strides = [1, 1, 1]} : vector<2x16x16xf32> to vector<2x1x16xf32>
      %c0_810 = arith.constant 0 : index
      %c0_811 = arith.constant 0 : index
      %c224 = arith.constant 224 : index
      %866 = vector.load %arg5[%c0_810, %c0_811, %c224] : memref<2x1x256xf32, #tpu.memory_space<vmem>>, vector<2x1x16xf32>
      tpu.vector_store %arg5[%c0_810, %c0_811, %c224], %865 {strides = array<i32>} : memref<2x1x256xf32, #tpu.memory_space<vmem>>, vector<2x1x16xf32>,
      %867 = vector.extract_strided_slice %836 {offsets = [0, 15, 0], sizes = [2, 1, 16], strides = [1, 1, 1]} : vector<2x16x16xf32> to vector<2x1x16xf32>
      %c0_812 = arith.constant 0 : index
      %c0_813 = arith.constant 0 : index
      %c240 = arith.constant 240 : index
      %868 = vector.load %arg5[%c0_812, %c0_813, %c240] : memref<2x1x256xf32, #tpu.memory_space<vmem>>, vector<2x1x16xf32>
      tpu.vector_store %arg5[%c0_812, %c0_813, %c240], %867 {strides = array<i32>} : memref<2x1x256xf32, #tpu.memory_space<vmem>>, vector<2x1x16xf32>,
    } else {
    }
    return
  }
  func.func @transform_0(%arg0: i32, %arg1: i32) -> (i32, i32, i32) {
    %c0_i32 = arith.constant 0 : i32
    %c0_i32_0 = arith.constant 0 : i32
    return %arg0, %arg1, %c0_i32 : i32, i32, i32
  }
  func.func @transform_1(%arg0: i32, %arg1: i32) -> i32 {
    %c0_i32 = arith.constant 0 : i32
    %c0_i32_0 = arith.constant 0 : i32
    return %c0_i32 : i32
  }
  func.func @transform_2(%arg0: i32, %arg1: i32) -> i32 {
    %c0_i32 = arith.constant 0 : i32
    %c0_i32_0 = arith.constant 0 : i32
    return %c0_i32 : i32
  }
  func.func @transform_3(%arg0: i32, %arg1: i32) -> (i32, i32, i32) {
    %c0_i32 = arith.constant 0 : i32
    %c0_i32_0 = arith.constant 0 : i32
    %c0_i32_1 = arith.constant 0 : i32
    return %arg0, %c0_i32, %c0_i32_0 : i32, i32, i32
  }
}

</mosaic_0001>

<llo_original>
// kernel: tpu_custom_call.1
$region0: #{tpu_custom_call.1}
  #allocation0 [shape = 'u32[]', space=smem, size = 0x4, offset = 0x4, fixed_abs, tag = 'smem constant byte address 0x4 - core index']
  #allocation1 [shape = 'u32[144,128]{1,0:T(1,128)}', space=vmem, size = 0x12000, scoped, tag = 'internal scratch']
  #allocation2 [shape = 'f32[2,256]{1,0:T(2,128)}', space=vmem, size = 0x800, scoped, tag = 'scratch operand']
  #allocation3 [shape = 'f32[2,256]{1,0:T(2,128)}', space=vmem, size = 0x800, scoped, tag = 'scratch operand']
  #allocation4 [shape = 'f32[2,7,2,22,16]{4,3,2,1,0:T(8,128)}', space=vmem, size = 0x54000, scoped, tag = 'scratch operand']
  #allocation5 [shape = 'f32[1]{0:T(128)S(6)}', space=smem, size = 0x200, scoped, tag = 'scoped memory for tpu_custom_call.1']
  %s0 = inlined_call_operand.hbm [shape: f32[2,4,256], index: 0, kind: input, shape index: {}]
  %s1 = inlined_call_operand.vmem [shape: f32[98], index: 1, kind: input, shape index: {}]
  %s2 = inlined_call_operand.<no memory space> [shape: f32[1], index: 2, kind: input, shape index: {}]
  %s3 = inlined_call_operand.hbm [shape: f32[2,1,256], index: 3, kind: output, shape index: {}]
  %s4 = sld [smem:[#allocation0]]
  $region38: #{tpu_custom_call.1} parent=0
    _
  %s6 = ssub.s32 1, %s4
  %s7 = scalar_select 0, %s6, %s4
  %8 = sst [smem:[#allocation5]] %s2
  $region1: #{tpu_custom_call.1} parent=0
    #allocation6 [shape = 'u8[8192]{0}', space=vmem, size = 0x2000, scoped, tag = 'input window, operand 0, single buffered']
    #allocation7 [shape = 's32[1]{0}', space=sflag, size = 0x4, scoped, tag = 'scoped memory for tpu_custom_call.1']
    #allocation8 [shape = 's32[1]{0}', space=sflag, size = 0x4, scoped, tag = 'scoped memory for tpu_custom_call.1']
    #allocation9 [shape = 's32[1]{0}', space=sflag, size = 0x4, scoped, tag = 'scoped memory for tpu_custom_call.1']
    #allocation10 [shape = 'u8[512]{0}', space=smem, size = 0x200, scoped, tag = 'input window, operand 1, single buffered']
    #allocation11 [shape = 'u8[2048]{0}', space=vmem, size = 0x800, scoped, tag = 'output window, operand 0, single buffered']
    %9 = vsyncpa [#allocation7], 0
    %10 = vsyncpa [#allocation9], 0
    %11 = vsyncpa [#allocation8], 0
    // Predicated region
    $region2: #{tpu_custom_call.1} parent=1 // pred_check
      _
    $region3: #{tpu_custom_call.1} parent=1 // pred_check_branch
      %13 = sbr.rel (0) target = $region5
    $region4: #{tpu_custom_call.1} parent=1 // pred_region
      %s15 = ssub.s32 256, 256
      %16 = vsyncadd [#allocation7], %s15
      %s17 = sshll.u32 [#allocation6], 4
      %s18 = int_to_ptr.vmem [resolvable:$true] %s17
      %23 = dma.hbm_to_vmem [thread:$0]  %s0, 256, %s18, [#allocation7], 128, 128, 8
    $region5: #{tpu_custom_call.1} parent=1 // pred_fallthru
      _
    // Predicated region
    $region6: #{tpu_custom_call.1} parent=1 // pred_check
      _
    $region7: #{tpu_custom_call.1} parent=1 // pred_check_branch
      %25 = sbr.rel (0) target = $region9
    $region8: #{tpu_custom_call.1} parent=1 // pred_region
      %s27 = ssub.s32 16, 16
      %28 = vsyncadd [#allocation9], %s27
      %s30 = sshll.u32 %s1, 4
      %s31 = int_to_ptr.vmem [resolvable:$true] %s30
      %33 = dma.vmem_to_smem %s31, 16, [#allocation10], [#allocation9]
    $region9: #{tpu_custom_call.1} parent=1 // pred_fallthru
      _
    // Predicated region
    $region10: #{tpu_custom_call.1} parent=1 // pred_check
      _
    $region11: #{tpu_custom_call.1} parent=1 // pred_check_branch
      %35 = sbr.rel (0) target = $region13
    $region12: #{tpu_custom_call.1} parent=1 // pred_region
      _
    $region13: #{tpu_custom_call.1} parent=1 // pred_fallthru
      _
    // Predicated region
    $region14: #{tpu_custom_call.1} parent=1 // pred_check
      _
    $region15: #{tpu_custom_call.1} parent=1 // pred_check_branch
      %37 = sbr.rel (0) target = $region17
    $region16: #{tpu_custom_call.1} parent=1 // pred_region
      %38 = dma.done [#allocation7], 256
    $region17: #{tpu_custom_call.1} parent=1 // pred_fallthru
      _
    // Predicated region
    $region18: #{tpu_custom_call.1} parent=1 // pred_check
      _
    $region19: #{tpu_custom_call.1} parent=1 // pred_check_branch
      %40 = sbr.rel (0) target = $region21
    $region20: #{tpu_custom_call.1} parent=1 // pred_region
      %41 = dma.done [#allocation9], 16
    $region21: #{tpu_custom_call.1} parent=1 // pred_fallthru
      _
    %42 = sfence
    %p43 = scmp.eq.s32.totalorder 0, 0
    // Predicated region
    $region22: #{tpu_custom_call.1} parent=1 // pred_check
      %p44 = pneg %p43
    $region23: #{tpu_custom_call.1} parent=1 // pred_check_branch
      %46 = sbr.rel (%p44) target = $region25
    $region24: #{tpu_custom_call.1} parent=1 // pred_region
      %47 = vst [vmem:[#allocation2] sm:$0xf] 0.0
      %48 = vst [vmem:[#allocation3] sm:$0xf] -inf
    $region25: #{tpu_custom_call.1} parent=1 // pred_fallthru
      _
    %v49 = vld [vmem:[#allocation2] sm:$0xf]
    %v50 = vld [vmem:[#allocation3] sm:$0xf]
    %v51 = vld [vmem:[#allocation6] sm:$0xff]
    %v52 = vld [vmem:[#allocation6 + $0x8] sm:$0xff]
    %v55 = vcombine.high %v51, %v51
    %v56 = vcombine.high %v52, %v52
    %vm59 = vcmask 1043456
    %v60 = vsel %vm59, %v51, 0.0
    %v61 = vrot.slane %v60, 4
    %v62 = vadd.f32 %v60, %v61
    %v63 = vrot.slane %v62, 2
    %v64 = vadd.f32 %v62, %v63
    %v65 = vrot.slane %v64, 1
    %v66 = vadd.f32 %v64, %v65
    %v67 = vsel %vm59, %v55, 0.0
    %v68 = vrot.slane %v67, 4
    %v69 = vadd.f32 %v67, %v68
    %v70 = vrot.slane %v69, 2
    %v71 = vadd.f32 %v69, %v70
    %v72 = vrot.slane %v71, 1
    %v73 = vadd.f32 %v71, %v72
    %v74 = vsel %vm59, %v52, 0.0
    %v75 = vrot.slane %v74, 4
    %v76 = vadd.f32 %v74, %v75
    %v77 = vrot.slane %v76, 2
    %v78 = vadd.f32 %v76, %v77
    %v79 = vrot.slane %v78, 1
    %v80 = vadd.f32 %v78, %v79
    %v81 = vsel %vm59, %v56, 0.0
    %v82 = vrot.slane %v81, 4
    %v83 = vadd.f32 %v81, %v82
    %v84 = vrot.slane %v83, 2
    %v85 = vadd.f32 %v83, %v84
    %v86 = vrot.slane %v85, 1
    %v87 = vadd.f32 %v85, %v86
    %v92 = vcombine.low %v66, %v73
    %v94 = vunpack.c.l.s4 1983009808
    %v95 = vunpack.c.0.s8 %v94
    %v96 = vlaneseq
    %v97 = vshrl.u32 %v96, 7
    %v98 = vsub.s32 %v95, %v97
    %v99 = vrot.slane %v92, %v98
    %v100 = vcombine.low %v80, %v87
    %v102 = vunpack.c.l.s4 1983009808
    %v103 = vunpack.c.0.s8 %v102
    %v104 = vlaneseq
    %v105 = vshrl.u32 %v104, 7
    %v106 = vsub.s32 %v103, %v105
    %v107 = vrot.slane %v100, %v106
    %vm108 = vcmask 1044484
    %v109 = vsel %vm108, %v99, %v99
    %vm110 = vcmask 1046534
    %v111 = vsel %vm110, %v99, %v109
    %v112 = vrot.slane %v107, 7
    %vm113 = vcmask 1041409
    %v114 = vsel %vm113, %v112, %v111
    %vm115 = vcmask 1043459
    %v116 = vsel %vm115, %v112, %v114
    %vm117 = vcmask 1045509
    %v118 = vsel %vm117, %v112, %v116
    %vm119 = vcmask 1047559
    %v120 = vsel %vm119, %v112, %v118
    %v122 = vadd.f32 %v49, %v120
    %v123 = vsel %vm59, %v51, -inf
    %v124 = vrot.slane %v123, 4
    %v125 = vmax.f32 %v123, %v124
    %v126 = vrot.slane %v125, 2
    %v127 = vmax.f32 %v125, %v126
    %v128 = vrot.slane %v127, 1
    %v129 = vmax.f32 %v127, %v128
    %v130 = vsel %vm59, %v55, -inf
    %v131 = vrot.slane %v130, 4
    %v132 = vmax.f32 %v130, %v131
    %v133 = vrot.slane %v132, 2
    %v134 = vmax.f32 %v132, %v133
    %v135 = vrot.slane %v134, 1
    %v136 = vmax.f32 %v134, %v135
    %v137 = vsel %vm59, %v52, -inf
    %v138 = vrot.slane %v137, 4
    %v139 = vmax.f32 %v137, %v138
    %v140 = vrot.slane %v139, 2
    %v141 = vmax.f32 %v139, %v140
    %v142 = vrot.slane %v141, 1
    %v143 = vmax.f32 %v141, %v142
    %v144 = vsel %vm59, %v56, -inf
    %v145 = vrot.slane %v144, 4
    %v146 = vmax.f32 %v144, %v145
    %v147 = vrot.slane %v146, 2
    %v148 = vmax.f32 %v146, %v147
    %v149 = vrot.slane %v148, 1
    %v150 = vmax.f32 %v148, %v149
    %v155 = vcombine.low %v129, %v136
    %v157 = vunpack.c.l.s4 1983009808
    %v158 = vunpack.c.0.s8 %v157
    %v159 = vlaneseq
    %v160 = vshrl.u32 %v159, 7
    %v161 = vsub.s32 %v158, %v160
    %v162 = vrot.slane %v155, %v161
    %v163 = vcombine.low %v143, %v150
    %v165 = vunpack.c.l.s4 1983009808
    %v166 = vunpack.c.0.s8 %v165
    %v167 = vlaneseq
    %v168 = vshrl.u32 %v167, 7
    %v169 = vsub.s32 %v166, %v168
    %v170 = vrot.slane %v163, %v169
    %v171 = vsel %vm108, %v162, %v162
    %v172 = vsel %vm110, %v162, %v171
    %v173 = vrot.slane %v170, 7
    %v174 = vsel %vm113, %v173, %v172
    %v175 = vsel %vm115, %v173, %v174
    %v176 = vsel %vm117, %v173, %v175
    %v177 = vsel %vm119, %v173, %v176
    %v179 = vmax.f32 %v50, %v177
    %180 = vst [vmem:[#allocation2] sm:$0xf] %v122
    %181 = vst [vmem:[#allocation3] sm:$0xf] %v179
    // Predicated region
    $region26: #{tpu_custom_call.1} parent=1 // pred_check
      %p182 = pneg %p43
    $region27: #{tpu_custom_call.1} parent=1 // pred_check_branch
      %184 = sbr.rel (%p182) target = $region29
    $region28: #{tpu_custom_call.1} parent=1 // pred_region
      %v185 = vmul.f32 %v122, 0.25
      %s186 = scalar_lea.vmem [#allocation4], 144
      %vm187 = vcmask 124928
      %188 = vst.msk [vmem:[%s186] sm:$0x7] %vm187, 0.0
      %189 = vst.msk [vmem:[%s186 + $0x18] sm:$0x7] %vm187, 0.0
      %190 = vst.msk [vmem:[%s186 + $0x13] sm:$0x7] %vm187, 0.0
      %191 = vst.msk [vmem:[%s186 + $0x2b] sm:$0x7] %vm187, 0.0
      %v194 = vunpack.c.l.s4 1966171168
      %v195 = vunpack.c.0.s8 %v194
      %v196 = vlaneseq
      %v197 = vshrl.u32 %v196, 7
      %v198 = vsub.s32 %v195, %v197
      %v199 = vrot.slane %v185, %v198
      %v200 = vcombine.high %v199, %v199
      %vm203 = vcmask 122880
      %204 = vst.msk [vmem:[%s186 + $0x3] sm:$0x1] %vm203, %v199
      %205 = vst.msk [vmem:[%s186 + $0x1b] sm:$0x1] %vm203, %v200
      %v206 = vlaneseq
      %v207 = vshrl.u32 %v206, 7
      %v208 = vsub.s32 0, %v207
      %v209 = vrot.slane %v199, %v208
      %v210 = vlaneseq
      %v211 = vshrl.u32 %v210, 7
      %v212 = vsub.s32 0, %v211
      %v213 = vrot.slane %v200, %v212
      %214 = vrot.lane.b32.xlu0 %v209, 112
      %v215 = vpop.permute.xlu0 %214
      %216 = vrot.lane.b32.xlu0 %v213, 112
      %v217 = vpop.permute.xlu0 %216
      %220 = vst.msk [vmem:[%s186 + $0x4] sm:$0x1] %vm203, %v215
      %221 = vst.msk [vmem:[%s186 + $0x1c] sm:$0x1] %vm203, %v217
      %222 = vrot.lane.b32.xlu0 %v209, 96
      %v223 = vpop.permute.xlu0 %222
      %224 = vrot.lane.b32.xlu0 %v213, 96
      %v225 = vpop.permute.xlu0 %224
      %228 = vst.msk [vmem:[%s186 + $0x5] sm:$0x1] %vm203, %v223
      %229 = vst.msk [vmem:[%s186 + $0x1d] sm:$0x1] %vm203, %v225
      %230 = vrot.lane.b32.xlu0 %v209, 80
      %v231 = vpop.permute.xlu0 %230
      %232 = vrot.lane.b32.xlu0 %v213, 80
      %v233 = vpop.permute.xlu0 %232
      %236 = vst.msk [vmem:[%s186 + $0x6] sm:$0x1] %vm203, %v231
      %237 = vst.msk [vmem:[%s186 + $0x1e] sm:$0x1] %vm203, %v233
      %238 = vrot.lane.b32.xlu0 %v209, 64
      %v239 = vpop.permute.xlu0 %238
      %240 = vrot.lane.b32.xlu0 %v213, 64
      %v241 = vpop.permute.xlu0 %240
      %244 = vst.msk [vmem:[%s186 + $0x7] sm:$0x1] %vm203, %v239
      %245 = vst.msk [vmem:[%s186 + $0x1f] sm:$0x1] %vm203, %v241
      %246 = vrot.lane.b32.xlu0 %v209, 48
      %v247 = vpop.permute.xlu0 %246
      %248 = vrot.lane.b32.xlu0 %v213, 48
      %v249 = vpop.permute.xlu0 %248
      %252 = vst.msk [vmem:[%s186 + $0x8] sm:$0x1] %vm203, %v247
      %253 = vst.msk [vmem:[%s186 + $0x20] sm:$0x1] %vm203, %v249
      %254 = vrot.lane.b32.xlu0 %v209, 32
      %v255 = vpop.permute.xlu0 %254
      %256 = vrot.lane.b32.xlu0 %v213, 32
      %v257 = vpop.permute.xlu0 %256
      %260 = vst.msk [vmem:[%s186 + $0x9] sm:$0x1] %vm203, %v255
      %261 = vst.msk [vmem:[%s186 + $0x21] sm:$0x1] %vm203, %v257
      %262 = vrot.lane.b32.xlu0 %v209, 16
      %v263 = vpop.permute.xlu0 %262
      %264 = vrot.lane.b32.xlu0 %v213, 16
      %v265 = vpop.permute.xlu0 %264
      %268 = vst.msk [vmem:[%s186 + $0xa] sm:$0x1] %vm203, %v263
      %269 = vst.msk [vmem:[%s186 + $0x22] sm:$0x1] %vm203, %v265
      %v270 = vrot.slane %v199, 1
      %v271 = vrot.slane %v200, 1
      %274 = vst.msk [vmem:[%s186 + $0xb] sm:$0x1] %vm203, %v270
      %275 = vst.msk [vmem:[%s186 + $0x23] sm:$0x1] %vm203, %v271
      %276 = vrot.lane.b32.xlu0 %v199, 112
      %v277 = vpop.permute.xlu0 %276
      %278 = vrot.lane.b32.xlu0 %v200, 112
      %v279 = vpop.permute.xlu0 %278
      %v280 = vrot.slane %v277, 1
      %v281 = vrot.slane %v279, 1
      %284 = vst.msk [vmem:[%s186 + $0xc] sm:$0x1] %vm203, %v280
      %285 = vst.msk [vmem:[%s186 + $0x24] sm:$0x1] %vm203, %v281
      %286 = vrot.lane.b32.xlu0 %v199, 96
      %v287 = vpop.permute.xlu0 %286
      %288 = vrot.lane.b32.xlu0 %v200, 96
      %v289 = vpop.permute.xlu0 %288
      %v290 = vrot.slane %v287, 1
      %v291 = vrot.slane %v289, 1
      %294 = vst.msk [vmem:[%s186 + $0xd] sm:$0x1] %vm203, %v290
      %295 = vst.msk [vmem:[%s186 + $0x25] sm:$0x1] %vm203, %v291
      %296 = vrot.lane.b32.xlu0 %v199, 80
      %v297 = vpop.permute.xlu0 %296
      %298 = vrot.lane.b32.xlu0 %v200, 80
      %v299 = vpop.permute.xlu0 %298
      %v300 = vrot.slane %v297, 1
      %v301 = vrot.slane %v299, 1
      %304 = vst.msk [vmem:[%s186 + $0xe] sm:$0x1] %vm203, %v300
      %305 = vst.msk [vmem:[%s186 + $0x26] sm:$0x1] %vm203, %v301
      %306 = vrot.lane.b32.xlu0 %v199, 64
      %v307 = vpop.permute.xlu0 %306
      %308 = vrot.lane.b32.xlu0 %v200, 64
      %v309 = vpop.permute.xlu0 %308
      %v310 = vrot.slane %v307, 1
      %v311 = vrot.slane %v309, 1
      %314 = vst.msk [vmem:[%s186 + $0xf] sm:$0x1] %vm203, %v310
      %315 = vst.msk [vmem:[%s186 + $0x27] sm:$0x1] %vm203, %v311
      %316 = vrot.lane.b32.xlu0 %v199, 48
      %v317 = vpop.permute.xlu0 %316
      %318 = vrot.lane.b32.xlu0 %v200, 48
      %v319 = vpop.permute.xlu0 %318
      %v320 = vrot.slane %v317, 1
      %v321 = vrot.slane %v319, 1
      %324 = vst.msk [vmem:[%s186 + $0x10] sm:$0x1] %vm203, %v320
      %325 = vst.msk [vmem:[%s186 + $0x28] sm:$0x1] %vm203, %v321
      %326 = vrot.lane.b32.xlu0 %v199, 32
      %v327 = vpop.permute.xlu0 %326
      %328 = vrot.lane.b32.xlu0 %v200, 32
      %v329 = vpop.permute.xlu0 %328
      %v330 = vrot.slane %v327, 1
      %v331 = vrot.slane %v329, 1
      %334 = vst.msk [vmem:[%s186 + $0x11] sm:$0x1] %vm203, %v330
      %335 = vst.msk [vmem:[%s186 + $0x29] sm:$0x1] %vm203, %v331
      %336 = vrot.lane.b32.xlu0 %v199, 16
      %v337 = vpop.permute.xlu0 %336
      %338 = vrot.lane.b32.xlu0 %v200, 16
      %v339 = vpop.permute.xlu0 %338
      %v340 = vrot.slane %v337, 1
      %v341 = vrot.slane %v339, 1
      %344 = vst.msk [vmem:[%s186 + $0x12] sm:$0x1] %vm203, %v340
      %345 = vst.msk [vmem:[%s186 + $0x2a] sm:$0x1] %vm203, %v341
      %s346 = scalar_lea.vmem [#allocation4], 480
      %347 = vst.msk [vmem:[%s346] sm:$0x7] %vm187, 0.0
      %348 = vst.msk [vmem:[%s346 + $0x18] sm:$0x7] %vm187, 0.0
      %349 = vst.msk [vmem:[%s346 + $0x13] sm:$0x7] %vm187, 0.0
      %350 = vst.msk [vmem:[%s346 + $0x2b] sm:$0x7] %vm187, 0.0
      %v353 = vunpack.c.l.s4 1966171168
      %v354 = vunpack.c.0.s8 %v353
      %v355 = vlaneseq
      %v356 = vshrl.u32 %v355, 7
      %v357 = vsub.s32 %v354, %v356
      %v358 = vrot.slane %v179, %v357
      %v359 = vcombine.high %v358, %v358
      %362 = vst.msk [vmem:[%s346 + $0x3] sm:$0x1] %vm203, %v358
      %363 = vst.msk [vmem:[%s346 + $0x1b] sm:$0x1] %vm203, %v359
      %v364 = vlaneseq
      %v365 = vshrl.u32 %v364, 7
      %v366 = vsub.s32 0, %v365
      %v367 = vrot.slane %v358, %v366
      %v368 = vlaneseq
      %v369 = vshrl.u32 %v368, 7
      %v370 = vsub.s32 0, %v369
      %v371 = vrot.slane %v359, %v370
      %372 = vrot.lane.b32.xlu0 %v367, 112
      %v373 = vpop.permute.xlu0 %372
      %374 = vrot.lane.b32.xlu0 %v371, 112
      %v375 = vpop.permute.xlu0 %374
      %378 = vst.msk [vmem:[%s346 + $0x4] sm:$0x1] %vm203, %v373
      %379 = vst.msk [vmem:[%s346 + $0x1c] sm:$0x1] %vm203, %v375
      %380 = vrot.lane.b32.xlu0 %v367, 96
      %v381 = vpop.permute.xlu0 %380
      %382 = vrot.lane.b32.xlu0 %v371, 96
      %v383 = vpop.permute.xlu0 %382
      %386 = vst.msk [vmem:[%s346 + $0x5] sm:$0x1] %vm203, %v381
      %387 = vst.msk [vmem:[%s346 + $0x1d] sm:$0x1] %vm203, %v383
      %388 = vrot.lane.b32.xlu0 %v367, 80
      %v389 = vpop.permute.xlu0 %388
      %390 = vrot.lane.b32.xlu0 %v371, 80
      %v391 = vpop.permute.xlu0 %390
      %394 = vst.msk [vmem:[%s346 + $0x6] sm:$0x1] %vm203, %v389
      %395 = vst.msk [vmem:[%s346 + $0x1e] sm:$0x1] %vm203, %v391
      %396 = vrot.lane.b32.xlu0 %v367, 64
      %v397 = vpop.permute.xlu0 %396
      %398 = vrot.lane.b32.xlu0 %v371, 64
      %v399 = vpop.permute.xlu0 %398
      %402 = vst.msk [vmem:[%s346 + $0x7] sm:$0x1] %vm203, %v397
      %403 = vst.msk [vmem:[%s346 + $0x1f] sm:$0x1] %vm203, %v399
      %404 = vrot.lane.b32.xlu0 %v367, 48
      %v405 = vpop.permute.xlu0 %404
      %406 = vrot.lane.b32.xlu0 %v371, 48
      %v407 = vpop.permute.xlu0 %406
      %410 = vst.msk [vmem:[%s346 + $0x8] sm:$0x1] %vm203, %v405
      %411 = vst.msk [vmem:[%s346 + $0x20] sm:$0x1] %vm203, %v407
      %412 = vrot.lane.b32.xlu0 %v367, 32
      %v413 = vpop.permute.xlu0 %412
      %414 = vrot.lane.b32.xlu0 %v371, 32
      %v415 = vpop.permute.xlu0 %414
      %418 = vst.msk [vmem:[%s346 + $0x9] sm:$0x1] %vm203, %v413
      %419 = vst.msk [vmem:[%s346 + $0x21] sm:$0x1] %vm203, %v415
      %420 = vrot.lane.b32.xlu0 %v367, 16
      %v421 = vpop.permute.xlu0 %420
      %422 = vrot.lane.b32.xlu0 %v371, 16
      %v423 = vpop.permute.xlu0 %422
      %426 = vst.msk [vmem:[%s346 + $0xa] sm:$0x1] %vm203, %v421
      %427 = vst.msk [vmem:[%s346 + $0x22] sm:$0x1] %vm203, %v423
      %v428 = vrot.slane %v358, 1
      %v429 = vrot.slane %v359, 1
      %432 = vst.msk [vmem:[%s346 + $0xb] sm:$0x1] %vm203, %v428
      %433 = vst.msk [vmem:[%s346 + $0x23] sm:$0x1] %vm203, %v429
      %434 = vrot.lane.b32.xlu0 %v358, 112
      %v435 = vpop.permute.xlu0 %434
      %436 = vrot.lane.b32.xlu0 %v359, 112
      %v437 = vpop.permute.xlu0 %436
      %v438 = vrot.slane %v435, 1
      %v439 = vrot.slane %v437, 1
      %442 = vst.msk [vmem:[%s346 + $0xc] sm:$0x1] %vm203, %v438
      %443 = vst.msk [vmem:[%s346 + $0x24] sm:$0x1] %vm203, %v439
      %444 = vrot.lane.b32.xlu0 %v358, 96
      %v445 = vpop.permute.xlu0 %444
      %446 = vrot.lane.b32.xlu0 %v359, 96
      %v447 = vpop.permute.xlu0 %446
      %v448 = vrot.slane %v445, 1
      %v449 = vrot.slane %v447, 1
      %452 = vst.msk [vmem:[%s346 + $0xd] sm:$0x1] %vm203, %v448
      %453 = vst.msk [vmem:[%s346 + $0x25] sm:$0x1] %vm203, %v449
      %454 = vrot.lane.b32.xlu0 %v358, 80
      %v455 = vpop.permute.xlu0 %454
      %456 = vrot.lane.b32.xlu0 %v359, 80
      %v457 = vpop.permute.xlu0 %456
      %v458 = vrot.slane %v455, 1
      %v459 = vrot.slane %v457, 1
      %462 = vst.msk [vmem:[%s346 + $0xe] sm:$0x1] %vm203, %v458
      %463 = vst.msk [vmem:[%s346 + $0x26] sm:$0x1] %vm203, %v459
      %464 = vrot.lane.b32.xlu0 %v358, 64
      %v465 = vpop.permute.xlu0 %464
      %466 = vrot.lane.b32.xlu0 %v359, 64
      %v467 = vpop.permute.xlu0 %466
      %v468 = vrot.slane %v465, 1
      %v469 = vrot.slane %v467, 1
      %472 = vst.msk [vmem:[%s346 + $0xf] sm:$0x1] %vm203, %v468
      %473 = vst.msk [vmem:[%s346 + $0x27] sm:$0x1] %vm203, %v469
      %474 = vrot.lane.b32.xlu0 %v358, 48
      %v475 = vpop.permute.xlu0 %474
      %476 = vrot.lane.b32.xlu0 %v359, 48
      %v477 = vpop.permute.xlu0 %476
      %v478 = vrot.slane %v475, 1
      %v479 = vrot.slane %v477, 1
      %482 = vst.msk [vmem:[%s346 + $0x10] sm:$0x1] %vm203, %v478
      %483 = vst.msk [vmem:[%s346 + $0x28] sm:$0x1] %vm203, %v479
      %484 = vrot.lane.b32.xlu0 %v358, 32
      %v485 = vpop.permute.xlu0 %484
      %486 = vrot.lane.b32.xlu0 %v359, 32
      %v487 = vpop.permute.xlu0 %486
      %v488 = vrot.slane %v485, 1
      %v489 = vrot.slane %v487, 1
      %492 = vst.msk [vmem:[%s346 + $0x11] sm:$0x1] %vm203, %v488
      %493 = vst.msk [vmem:[%s346 + $0x29] sm:$0x1] %vm203, %v489
      %494 = vrot.lane.b32.xlu0 %v358, 16
      %v495 = vpop.permute.xlu0 %494
      %496 = vrot.lane.b32.xlu0 %v359, 16
      %v497 = vpop.permute.xlu0 %496
      %v498 = vrot.slane %v495, 1
      %v499 = vrot.slane %v497, 1
      %502 = vst.msk [vmem:[%s346 + $0x12] sm:$0x1] %vm203, %v498
      %503 = vst.msk [vmem:[%s346 + $0x2a] sm:$0x1] %vm203, %v499
      %v504 = vld [vmem:[%s186] sm:$0xff]
      %v505 = vld [vmem:[%s186 + $0x8] sm:$0xff]
      %v506 = vld [vmem:[%s186 + $0x10] sm:$0x3f]
      %v507 = vld [vmem:[%s186 + $0x18] sm:$0xff]
      %v508 = vld [vmem:[%s186 + $0x20] sm:$0xff]
      %v509 = vld [vmem:[%s186 + $0x28] sm:$0x3f]
      %516 = vrot.lane.b32.xlu0 %v504, 3
      %v517 = vpop.permute.xlu0 %516
      %518 = vrot.lane.b32.xlu0 %v505, 3
      %v519 = vpop.permute.xlu0 %518
      %520 = vrot.lane.b32.xlu0 %v506, 3
      %v521 = vpop.permute.xlu0 %520
      %522 = vrot.lane.b32.xlu0 %v507, 3
      %v523 = vpop.permute.xlu0 %522
      %524 = vrot.lane.b32.xlu0 %v508, 3
      %v525 = vpop.permute.xlu0 %524
      %526 = vrot.lane.b32.xlu0 %v509, 3
      %v527 = vpop.permute.xlu0 %526
      %vm534 = vcmask 23552
      %v535 = vsel %vm534, 0.0, %v517
      %v536 = vsel %vm534, 0.0, %v519
      %v537 = vsel %vm534, 0.0, %v521
      %v538 = vsel %vm534, 0.0, %v523
      %v539 = vsel %vm534, 0.0, %v525
      %v540 = vsel %vm534, 0.0, %v527
      %vm541 = vcmask 130048
      %542 = vst.msk [vmem:[#allocation4] sm:$0xff] %vm541, %v535
      %543 = vst.msk [vmem:[#allocation4 + $0x8] sm:$0xff] %vm541, %v536
      %vm544 = vcmask 128000
      %545 = vst.msk [vmem:[#allocation4 + $0x10] sm:$0x3f] %vm544, %v537
      %546 = vst.msk [vmem:[#allocation4 + $0x18] sm:$0xff] %vm541, %v538
      %547 = vst.msk [vmem:[#allocation4 + $0x20] sm:$0xff] %vm541, %v539
      %548 = vst.msk [vmem:[#allocation4 + $0x28] sm:$0x3f] %vm544, %v540
      %549 = vrot.lane.b32.xlu0 %v504, 2
      %v550 = vpop.permute.xlu0 %549
      %551 = vrot.lane.b32.xlu0 %v505, 2
      %v552 = vpop.permute.xlu0 %551
      %553 = vrot.lane.b32.xlu0 %v506, 2
      %v554 = vpop.permute.xlu0 %553
      %555 = vrot.lane.b32.xlu0 %v507, 2
      %v556 = vpop.permute.xlu0 %555
      %557 = vrot.lane.b32.xlu0 %v508, 2
      %v558 = vpop.permute.xlu0 %557
      %559 = vrot.lane.b32.xlu0 %v509, 2
      %v560 = vpop.permute.xlu0 %559
      %vm567 = vcmask 15360
      %v568 = vsel %vm567, 0.0, %v550
      %v569 = vsel %vm567, 0.0, %v552
      %v570 = vsel %vm567, 0.0, %v554
      %v571 = vsel %vm567, 0.0, %v556
      %v572 = vsel %vm567, 0.0, %v558
      %v573 = vsel %vm567, 0.0, %v560
      %s574 = scalar_lea.vmem [#allocation4], 48
      %575 = vst.msk [vmem:[%s574] sm:$0xff] %vm541, %v568
      %576 = vst.msk [vmem:[%s574 + $0x8] sm:$0xff] %vm541, %v569
      %577 = vst.msk [vmem:[%s574 + $0x10] sm:$0x3f] %vm544, %v570
      %578 = vst.msk [vmem:[%s574 + $0x18] sm:$0xff] %vm541, %v571
      %579 = vst.msk [vmem:[%s574 + $0x20] sm:$0xff] %vm541, %v572
      %580 = vst.msk [vmem:[%s574 + $0x28] sm:$0x3f] %vm544, %v573
      %581 = vrot.lane.b32.xlu0 %v504, 1
      %v582 = vpop.permute.xlu0 %581
      %583 = vrot.lane.b32.xlu0 %v505, 1
      %v584 = vpop.permute.xlu0 %583
      %585 = vrot.lane.b32.xlu0 %v506, 1
      %v586 = vpop.permute.xlu0 %585
      %587 = vrot.lane.b32.xlu0 %v507, 1
      %v588 = vpop.permute.xlu0 %587
      %589 = vrot.lane.b32.xlu0 %v508, 1
      %v590 = vpop.permute.xlu0 %589
      %591 = vrot.lane.b32.xlu0 %v509, 1
      %v592 = vpop.permute.xlu0 %591
      %vm599 = vcmask 7168
      %v600 = vsel %vm599, 0.0, %v582
      %v601 = vsel %vm599, 0.0, %v584
      %v602 = vsel %vm599, 0.0, %v586
      %v603 = vsel %vm599, 0.0, %v588
      %v604 = vsel %vm599, 0.0, %v590
      %v605 = vsel %vm599, 0.0, %v592
      %s606 = scalar_lea.vmem [#allocation4], 96
      %607 = vst.msk [vmem:[%s606] sm:$0xff] %vm541, %v600
      %608 = vst.msk [vmem:[%s606 + $0x8] sm:$0xff] %vm541, %v601
      %609 = vst.msk [vmem:[%s606 + $0x10] sm:$0x3f] %vm544, %v602
      %610 = vst.msk [vmem:[%s606 + $0x18] sm:$0xff] %vm541, %v603
      %611 = vst.msk [vmem:[%s606 + $0x20] sm:$0xff] %vm541, %v604
      %612 = vst.msk [vmem:[%s606 + $0x28] sm:$0x3f] %vm544, %v605
      %613 = vrot.lane.b32.xlu0 %v504, 127
      %v614 = vpop.permute.xlu0 %613
      %615 = vrot.lane.b32.xlu0 %v505, 127
      %v616 = vpop.permute.xlu0 %615
      %617 = vrot.lane.b32.xlu0 %v506, 127
      %v618 = vpop.permute.xlu0 %617
      %619 = vrot.lane.b32.xlu0 %v507, 127
      %v620 = vpop.permute.xlu0 %619
      %621 = vrot.lane.b32.xlu0 %v508, 127
      %v622 = vpop.permute.xlu0 %621
      %623 = vrot.lane.b32.xlu0 %v509, 127
      %v624 = vpop.permute.xlu0 %623
      %vm631 = vcmask 121856
      %v632 = vsel %vm631, %v614, 0.0
      %v633 = vsel %vm631, %v616, 0.0
      %v634 = vsel %vm631, %v618, 0.0
      %v635 = vsel %vm631, %v620, 0.0
      %v636 = vsel %vm631, %v622, 0.0
      %v637 = vsel %vm631, %v624, 0.0
      %s638 = scalar_lea.vmem [#allocation4], 192
      %639 = vst.msk [vmem:[%s638] sm:$0xff] %vm541, %v632
      %640 = vst.msk [vmem:[%s638 + $0x8] sm:$0xff] %vm541, %v633
      %641 = vst.msk [vmem:[%s638 + $0x10] sm:$0x3f] %vm544, %v634
      %642 = vst.msk [vmem:[%s638 + $0x18] sm:$0xff] %vm541, %v635
      %643 = vst.msk [vmem:[%s638 + $0x20] sm:$0xff] %vm541, %v636
      %644 = vst.msk [vmem:[%s638 + $0x28] sm:$0x3f] %vm544, %v637
      %645 = vrot.lane.b32.xlu0 %v504, 126
      %v646 = vpop.permute.xlu0 %645
      %647 = vrot.lane.b32.xlu0 %v505, 126
      %v648 = vpop.permute.xlu0 %647
      %649 = vrot.lane.b32.xlu0 %v506, 126
      %v650 = vpop.permute.xlu0 %649
      %651 = vrot.lane.b32.xlu0 %v507, 126
      %v652 = vpop.permute.xlu0 %651
      %653 = vrot.lane.b32.xlu0 %v508, 126
      %v654 = vpop.permute.xlu0 %653
      %655 = vrot.lane.b32.xlu0 %v509, 126
      %v656 = vpop.permute.xlu0 %655
      %vm663 = vcmask 113664
      %v664 = vsel %vm663, %v646, 0.0
      %v665 = vsel %vm663, %v648, 0.0
      %v666 = vsel %vm663, %v650, 0.0
      %v667 = vsel %vm663, %v652, 0.0
      %v668 = vsel %vm663, %v654, 0.0
      %v669 = vsel %vm663, %v656, 0.0
      %s670 = scalar_lea.vmem [#allocation4], 240
      %671 = vst.msk [vmem:[%s670] sm:$0xff] %vm541, %v664
      %672 = vst.msk [vmem:[%s670 + $0x8] sm:$0xff] %vm541, %v665
      %673 = vst.msk [vmem:[%s670 + $0x10] sm:$0x3f] %vm544, %v666
      %674 = vst.msk [vmem:[%s670 + $0x18] sm:$0xff] %vm541, %v667
      %675 = vst.msk [vmem:[%s670 + $0x20] sm:$0xff] %vm541, %v668
      %676 = vst.msk [vmem:[%s670 + $0x28] sm:$0x3f] %vm544, %v669
      %677 = vrot.lane.b32.xlu0 %v504, 125
      %v678 = vpop.permute.xlu0 %677
      %679 = vrot.lane.b32.xlu0 %v505, 125
      %v680 = vpop.permute.xlu0 %679
      %681 = vrot.lane.b32.xlu0 %v506, 125
      %v682 = vpop.permute.xlu0 %681
      %683 = vrot.lane.b32.xlu0 %v507, 125
      %v684 = vpop.permute.xlu0 %683
      %685 = vrot.lane.b32.xlu0 %v508, 125
      %v686 = vpop.permute.xlu0 %685
      %687 = vrot.lane.b32.xlu0 %v509, 125
      %v688 = vpop.permute.xlu0 %687
      %vm695 = vcmask 105472
      %v696 = vsel %vm695, %v678, 0.0
      %v697 = vsel %vm695, %v680, 0.0
      %v698 = vsel %vm695, %v682, 0.0
      %v699 = vsel %vm695, %v684, 0.0
      %v700 = vsel %vm695, %v686, 0.0
      %v701 = vsel %vm695, %v688, 0.0
      %s702 = scalar_lea.vmem [#allocation4], 288
      %703 = vst.msk [vmem:[%s702] sm:$0xff] %vm541, %v696
      %704 = vst.msk [vmem:[%s702 + $0x8] sm:$0xff] %vm541, %v697
      %705 = vst.msk [vmem:[%s702 + $0x10] sm:$0x3f] %vm544, %v698
      %706 = vst.msk [vmem:[%s702 + $0x18] sm:$0xff] %vm541, %v699
      %707 = vst.msk [vmem:[%s702 + $0x20] sm:$0xff] %vm541, %v700
      %708 = vst.msk [vmem:[%s702 + $0x28] sm:$0x3f] %vm544, %v701
      %v709 = vld [vmem:[%s346] sm:$0xff]
      %v710 = vld [vmem:[%s346 + $0x8] sm:$0xff]
      %v711 = vld [vmem:[%s346 + $0x10] sm:$0x3f]
      %v712 = vld [vmem:[%s346 + $0x18] sm:$0xff]
      %v713 = vld [vmem:[%s346 + $0x20] sm:$0xff]
      %v714 = vld [vmem:[%s346 + $0x28] sm:$0x3f]
      %721 = vrot.lane.b32.xlu0 %v709, 3
      %v722 = vpop.permute.xlu0 %721
      %723 = vrot.lane.b32.xlu0 %v710, 3
      %v724 = vpop.permute.xlu0 %723
      %725 = vrot.lane.b32.xlu0 %v711, 3
      %v726 = vpop.permute.xlu0 %725
      %727 = vrot.lane.b32.xlu0 %v712, 3
      %v728 = vpop.permute.xlu0 %727
      %729 = vrot.lane.b32.xlu0 %v713, 3
      %v730 = vpop.permute.xlu0 %729
      %731 = vrot.lane.b32.xlu0 %v714, 3
      %v732 = vpop.permute.xlu0 %731
      %v739 = vsel %vm534, 0.0, %v722
      %v740 = vsel %vm534, 0.0, %v724
      %v741 = vsel %vm534, 0.0, %v726
      %v742 = vsel %vm534, 0.0, %v728
      %v743 = vsel %vm534, 0.0, %v730
      %v744 = vsel %vm534, 0.0, %v732
      %s745 = scalar_lea.vmem [#allocation4], 336
      %746 = vst.msk [vmem:[%s745] sm:$0xff] %vm541, %v739
      %747 = vst.msk [vmem:[%s745 + $0x8] sm:$0xff] %vm541, %v740
      %748 = vst.msk [vmem:[%s745 + $0x10] sm:$0x3f] %vm544, %v741
      %749 = vst.msk [vmem:[%s745 + $0x18] sm:$0xff] %vm541, %v742
      %750 = vst.msk [vmem:[%s745 + $0x20] sm:$0xff] %vm541, %v743
      %751 = vst.msk [vmem:[%s745 + $0x28] sm:$0x3f] %vm544, %v744
      %752 = vrot.lane.b32.xlu0 %v709, 2
      %v753 = vpop.permute.xlu0 %752
      %754 = vrot.lane.b32.xlu0 %v710, 2
      %v755 = vpop.permute.xlu0 %754
      %756 = vrot.lane.b32.xlu0 %v711, 2
      %v757 = vpop.permute.xlu0 %756
      %758 = vrot.lane.b32.xlu0 %v712, 2
      %v759 = vpop.permute.xlu0 %758
      %760 = vrot.lane.b32.xlu0 %v713, 2
      %v761 = vpop.permute.xlu0 %760
      %762 = vrot.lane.b32.xlu0 %v714, 2
      %v763 = vpop.permute.xlu0 %762
      %v770 = vsel %vm567, 0.0, %v753
      %v771 = vsel %vm567, 0.0, %v755
      %v772 = vsel %vm567, 0.0, %v757
      %v773 = vsel %vm567, 0.0, %v759
      %v774 = vsel %vm567, 0.0, %v761
      %v775 = vsel %vm567, 0.0, %v763
      %s776 = scalar_lea.vmem [#allocation4], 384
      %777 = vst.msk [vmem:[%s776] sm:$0xff] %vm541, %v770
      %778 = vst.msk [vmem:[%s776 + $0x8] sm:$0xff] %vm541, %v771
      %779 = vst.msk [vmem:[%s776 + $0x10] sm:$0x3f] %vm544, %v772
      %780 = vst.msk [vmem:[%s776 + $0x18] sm:$0xff] %vm541, %v773
      %781 = vst.msk [vmem:[%s776 + $0x20] sm:$0xff] %vm541, %v774
      %782 = vst.msk [vmem:[%s776 + $0x28] sm:$0x3f] %vm544, %v775
      %783 = vrot.lane.b32.xlu0 %v709, 1
      %v784 = vpop.permute.xlu0 %783
      %785 = vrot.lane.b32.xlu0 %v710, 1
      %v786 = vpop.permute.xlu0 %785
      %787 = vrot.lane.b32.xlu0 %v711, 1
      %v788 = vpop.permute.xlu0 %787
      %789 = vrot.lane.b32.xlu0 %v712, 1
      %v790 = vpop.permute.xlu0 %789
      %791 = vrot.lane.b32.xlu0 %v713, 1
      %v792 = vpop.permute.xlu0 %791
      %793 = vrot.lane.b32.xlu0 %v714, 1
      %v794 = vpop.permute.xlu0 %793
      %v801 = vsel %vm599, 0.0, %v784
      %v802 = vsel %vm599, 0.0, %v786
      %v803 = vsel %vm599, 0.0, %v788
      %v804 = vsel %vm599, 0.0, %v790
      %v805 = vsel %vm599, 0.0, %v792
      %v806 = vsel %vm599, 0.0, %v794
      %s807 = scalar_lea.vmem [#allocation4], 432
      %808 = vst.msk [vmem:[%s807] sm:$0xff] %vm541, %v801
      %809 = vst.msk [vmem:[%s807 + $0x8] sm:$0xff] %vm541, %v802
      %810 = vst.msk [vmem:[%s807 + $0x10] sm:$0x3f] %vm544, %v803
      %811 = vst.msk [vmem:[%s807 + $0x18] sm:$0xff] %vm541, %v804
      %812 = vst.msk [vmem:[%s807 + $0x20] sm:$0xff] %vm541, %v805
      %813 = vst.msk [vmem:[%s807 + $0x28] sm:$0x3f] %vm544, %v806
      %814 = vrot.lane.b32.xlu0 %v709, 127
      %v815 = vpop.permute.xlu0 %814
      %816 = vrot.lane.b32.xlu0 %v710, 127
      %v817 = vpop.permute.xlu0 %816
      %818 = vrot.lane.b32.xlu0 %v711, 127
      %v819 = vpop.permute.xlu0 %818
      %820 = vrot.lane.b32.xlu0 %v712, 127
      %v821 = vpop.permute.xlu0 %820
      %822 = vrot.lane.b32.xlu0 %v713, 127
      %v823 = vpop.permute.xlu0 %822
      %824 = vrot.lane.b32.xlu0 %v714, 127
      %v825 = vpop.permute.xlu0 %824
      %v832 = vsel %vm631, %v815, 0.0
      %v833 = vsel %vm631, %v817, 0.0
      %v834 = vsel %vm631, %v819, 0.0
      %v835 = vsel %vm631, %v821, 0.0
      %v836 = vsel %vm631, %v823, 0.0
      %v837 = vsel %vm631, %v825, 0.0
      %s838 = scalar_lea.vmem [#allocation4], 528
      %839 = vst.msk [vmem:[%s838] sm:$0xff] %vm541, %v832
      %840 = vst.msk [vmem:[%s838 + $0x8] sm:$0xff] %vm541, %v833
      %841 = vst.msk [vmem:[%s838 + $0x10] sm:$0x3f] %vm544, %v834
      %842 = vst.msk [vmem:[%s838 + $0x18] sm:$0xff] %vm541, %v835
      %843 = vst.msk [vmem:[%s838 + $0x20] sm:$0xff] %vm541, %v836
      %844 = vst.msk [vmem:[%s838 + $0x28] sm:$0x3f] %vm544, %v837
      %845 = vrot.lane.b32.xlu0 %v709, 126
      %v846 = vpop.permute.xlu0 %845
      %847 = vrot.lane.b32.xlu0 %v710, 126
      %v848 = vpop.permute.xlu0 %847
      %849 = vrot.lane.b32.xlu0 %v711, 126
      %v850 = vpop.permute.xlu0 %849
      %851 = vrot.lane.b32.xlu0 %v712, 126
      %v852 = vpop.permute.xlu0 %851
      %853 = vrot.lane.b32.xlu0 %v713, 126
      %v854 = vpop.permute.xlu0 %853
      %855 = vrot.lane.b32.xlu0 %v714, 126
      %v856 = vpop.permute.xlu0 %855
      %v863 = vsel %vm663, %v846, 0.0
      %v864 = vsel %vm663, %v848, 0.0
      %v865 = vsel %vm663, %v850, 0.0
      %v866 = vsel %vm663, %v852, 0.0
      %v867 = vsel %vm663, %v854, 0.0
      %v868 = vsel %vm663, %v856, 0.0
      %s869 = scalar_lea.vmem [#allocation4], 576
      %870 = vst.msk [vmem:[%s869] sm:$0xff] %vm541, %v863
      %871 = vst.msk [vmem:[%s869 + $0x8] sm:$0xff] %vm541, %v864
      %872 = vst.msk [vmem:[%s869 + $0x10] sm:$0x3f] %vm544, %v865
      %873 = vst.msk [vmem:[%s869 + $0x18] sm:$0xff] %vm541, %v866
      %874 = vst.msk [vmem:[%s869 + $0x20] sm:$0xff] %vm541, %v867
      %875 = vst.msk [vmem:[%s869 + $0x28] sm:$0x3f] %vm544, %v868
      %876 = vrot.lane.b32.xlu0 %v709, 125
      %v877 = vpop.permute.xlu0 %876
      %878 = vrot.lane.b32.xlu0 %v710, 125
      %v879 = vpop.permute.xlu0 %878
      %880 = vrot.lane.b32.xlu0 %v711, 125
      %v881 = vpop.permute.xlu0 %880
      %882 = vrot.lane.b32.xlu0 %v712, 125
      %v883 = vpop.permute.xlu0 %882
      %884 = vrot.lane.b32.xlu0 %v713, 125
      %v885 = vpop.permute.xlu0 %884
      %886 = vrot.lane.b32.xlu0 %v714, 125
      %v887 = vpop.permute.xlu0 %886
      %v894 = vsel %vm695, %v877, 0.0
      %v895 = vsel %vm695, %v879, 0.0
      %v896 = vsel %vm695, %v881, 0.0
      %v897 = vsel %vm695, %v883, 0.0
      %v898 = vsel %vm695, %v885, 0.0
      %v899 = vsel %vm695, %v887, 0.0
      %s900 = scalar_lea.vmem [#allocation4], 624
      %901 = vst.msk [vmem:[%s900] sm:$0xff] %vm541, %v894
      %902 = vst.msk [vmem:[%s900 + $0x8] sm:$0xff] %vm541, %v895
      %903 = vst.msk [vmem:[%s900 + $0x10] sm:$0x3f] %vm544, %v896
      %904 = vst.msk [vmem:[%s900 + $0x18] sm:$0xff] %vm541, %v897
      %905 = vst.msk [vmem:[%s900 + $0x20] sm:$0xff] %vm541, %v898
      %906 = vst.msk [vmem:[%s900 + $0x28] sm:$0x3f] %vm544, %v899
      %s907 = sld [smem:[#allocation10]]
      %s908 = sld [smem:[#allocation10 + $0x1]]
      %v909 = vld [vmem:[#allocation4] sm:$0xff]
      %v910 = vld [vmem:[#allocation4 + $0x8] sm:$0xff]
      %v911 = vld [vmem:[#allocation4 + $0x18] sm:$0xff]
      %v912 = vld [vmem:[#allocation4 + $0x20] sm:$0xff]
      %v913 = vstv %s907
      %v914 = vmul.f32 %v909, %v913
      %v915 = vmul.f32 %v910, %v913
      %v916 = vmul.f32 %v911, %v913
      %v917 = vmul.f32 %v912, %v913
      %v918 = vadd.f32 %v914, 0.0
      %v919 = vadd.f32 %v915, 0.0
      %v920 = vadd.f32 %v916, 0.0
      %v921 = vadd.f32 %v917, 0.0
      %v922 = vld [vmem:[%s745] sm:$0xff]
      %v923 = vld [vmem:[%s745 + $0x8] sm:$0xff]
      %v924 = vld [vmem:[%s745 + $0x18] sm:$0xff]
      %v925 = vld [vmem:[%s745 + $0x20] sm:$0xff]
      %v926 = vstv %s908
      %v927 = vmul.f32 %v922, %v926
      %v928 = vmul.f32 %v923, %v926
      %v929 = vmul.f32 %v924, %v926
      %v930 = vmul.f32 %v925, %v926
      %v931 = vadd.f32 %v918, %v927
      %v932 = vadd.f32 %v919, %v928
      %v933 = vadd.f32 %v920, %v929
      %v934 = vadd.f32 %v921, %v930
      %s935 = sld [smem:[#allocation10 + $0x2]]
      %s936 = sld [smem:[#allocation10 + $0x3]]
      %v937 = vld [vmem:[%s574] sm:$0xff]
      %v938 = vld [vmem:[%s574 + $0x8] sm:$0xff]
      %v939 = vld [vmem:[%s574 + $0x18] sm:$0xff]
      %v940 = vld [vmem:[%s574 + $0x20] sm:$0xff]
      %v941 = vstv %s935
      %v942 = vmul.f32 %v937, %v941
      %v943 = vmul.f32 %v938, %v941
      %v944 = vmul.f32 %v939, %v941
      %v945 = vmul.f32 %v940, %v941
      %v946 = vadd.f32 %v942, 0.0
      %v947 = vadd.f32 %v943, 0.0
      %v948 = vadd.f32 %v944, 0.0
      %v949 = vadd.f32 %v945, 0.0
      %v950 = vld [vmem:[%s776] sm:$0xff]
      %v951 = vld [vmem:[%s776 + $0x8] sm:$0xff]
      %v952 = vld [vmem:[%s776 + $0x18] sm:$0xff]
      %v953 = vld [vmem:[%s776 + $0x20] sm:$0xff]
      %v954 = vstv %s936
      %v955 = vmul.f32 %v950, %v954
      %v956 = vmul.f32 %v951, %v954
      %v957 = vmul.f32 %v952, %v954
      %v958 = vmul.f32 %v953, %v954
      %v959 = vadd.f32 %v946, %v955
      %v960 = vadd.f32 %v947, %v956
      %v961 = vadd.f32 %v948, %v957
      %v962 = vadd.f32 %v949, %v958
      %s963 = sld [smem:[#allocation10 + $0x4]]
      %s964 = sld [smem:[#allocation10 + $0x5]]
      %v965 = vld [vmem:[%s606] sm:$0xff]
      %v966 = vld [vmem:[%s606 + $0x8] sm:$0xff]
      %v967 = vld [vmem:[%s606 + $0x18] sm:$0xff]
      %v968 = vld [vmem:[%s606 + $0x20] sm:$0xff]
      %v969 = vstv %s963
      %v970 = vmul.f32 %v965, %v969
      %v971 = vmul.f32 %v966, %v969
      %v972 = vmul.f32 %v967, %v969
      %v973 = vmul.f32 %v968, %v969
      %v974 = vadd.f32 %v970, 0.0
      %v975 = vadd.f32 %v971, 0.0
      %v976 = vadd.f32 %v972, 0.0
      %v977 = vadd.f32 %v973, 0.0
      %v978 = vld [vmem:[%s807] sm:$0xff]
      %v979 = vld [vmem:[%s807 + $0x8] sm:$0xff]
      %v980 = vld [vmem:[%s807 + $0x18] sm:$0xff]
      %v981 = vld [vmem:[%s807 + $0x20] sm:$0xff]
      %v982 = vstv %s964
      %v983 = vmul.f32 %v978, %v982
      %v984 = vmul.f32 %v979, %v982
      %v985 = vmul.f32 %v980, %v982
      %v986 = vmul.f32 %v981, %v982
      %v987 = vadd.f32 %v974, %v983
      %v988 = vadd.f32 %v975, %v984
      %v989 = vadd.f32 %v976, %v985
      %v990 = vadd.f32 %v977, %v986
      %s991 = sld [smem:[#allocation10 + $0x6]]
      %s992 = sld [smem:[#allocation10 + $0x7]]
      %v993 = vld [vmem:[%s186] sm:$0xff]
      %v994 = vld [vmem:[%s186 + $0x8] sm:$0xff]
      %v995 = vld [vmem:[%s186 + $0x18] sm:$0xff]
      %v996 = vld [vmem:[%s186 + $0x20] sm:$0xff]
      %v997 = vstv %s991
      %v998 = vmul.f32 %v993, %v997
      %v999 = vmul.f32 %v994, %v997
      %v1000 = vmul.f32 %v995, %v997
      %v1001 = vmul.f32 %v996, %v997
      %v1002 = vadd.f32 %v998, 0.0
      %v1003 = vadd.f32 %v999, 0.0
      %v1004 = vadd.f32 %v1000, 0.0
      %v1005 = vadd.f32 %v1001, 0.0
      %v1006 = vld [vmem:[%s346] sm:$0xff]
      %v1007 = vld [vmem:[%s346 + $0x8] sm:$0xff]
      %v1008 = vld [vmem:[%s346 + $0x18] sm:$0xff]
      %v1009 = vld [vmem:[%s346 + $0x20] sm:$0xff]
      %v1010 = vstv %s992
      %v1011 = vmul.f32 %v1006, %v1010
      %v1012 = vmul.f32 %v1007, %v1010
      %v1013 = vmul.f32 %v1008, %v1010
      %v1014 = vmul.f32 %v1009, %v1010
      %v1015 = vadd.f32 %v1002, %v1011
      %v1016 = vadd.f32 %v1003, %v1012
      %v1017 = vadd.f32 %v1004, %v1013
      %v1018 = vadd.f32 %v1005, %v1014
      %s1019 = sld [smem:[#allocation10 + $0x8]]
      %s1020 = sld [smem:[#allocation10 + $0x9]]
      %v1021 = vld [vmem:[%s638] sm:$0xff]
      %v1022 = vld [vmem:[%s638 + $0x8] sm:$0xff]
      %v1023 = vld [vmem:[%s638 + $0x18] sm:$0xff]
      %v1024 = vld [vmem:[%s638 + $0x20] sm:$0xff]
      %v1025 = vstv %s1019
      %v1026 = vmul.f32 %v1021, %v1025
      %v1027 = vmul.f32 %v1022, %v1025
      %v1028 = vmul.f32 %v1023, %v1025
      %v1029 = vmul.f32 %v1024, %v1025
      %v1030 = vadd.f32 %v931, %v1026
      %v1031 = vadd.f32 %v932, %v1027
      %v1032 = vadd.f32 %v933, %v1028
      %v1033 = vadd.f32 %v934, %v1029
      %v1034 = vld [vmem:[%s838] sm:$0xff]
      %v1035 = vld [vmem:[%s838 + $0x8] sm:$0xff]
      %v1036 = vld [vmem:[%s838 + $0x18] sm:$0xff]
      %v1037 = vld [vmem:[%s838 + $0x20] sm:$0xff]
      %v1038 = vstv %s1020
      %v1039 = vmul.f32 %v1034, %v1038
      %v1040 = vmul.f32 %v1035, %v1038
      %v1041 = vmul.f32 %v1036, %v1038
      %v1042 = vmul.f32 %v1037, %v1038
      %v1043 = vadd.f32 %v1030, %v1039
      %v1044 = vadd.f32 %v1031, %v1040
      %v1045 = vadd.f32 %v1032, %v1041
      %v1046 = vadd.f32 %v1033, %v1042
      %s1047 = sld [smem:[#allocation10 + $0xa]]
      %s1048 = sld [smem:[#allocation10 + $0xb]]
      %v1049 = vld [vmem:[%s670] sm:$0xff]
      %v1050 = vld [vmem:[%s670 + $0x8] sm:$0xff]
      %v1051 = vld [vmem:[%s670 + $0x18] sm:$0xff]
      %v1052 = vld [vmem:[%s670 + $0x20] sm:$0xff]
      %v1053 = vstv %s1047
      %v1054 = vmul.f32 %v1049, %v1053
      %v1055 = vmul.f32 %v1050, %v1053
      %v1056 = vmul.f32 %v1051, %v1053
      %v1057 = vmul.f32 %v1052, %v1053
      %v1058 = vadd.f32 %v959, %v1054
      %v1059 = vadd.f32 %v960, %v1055
      %v1060 = vadd.f32 %v961, %v1056
      %v1061 = vadd.f32 %v962, %v1057
      %v1062 = vld [vmem:[%s869] sm:$0xff]
      %v1063 = vld [vmem:[%s869 + $0x8] sm:$0xff]
      %v1064 = vld [vmem:[%s869 + $0x18] sm:$0xff]
      %v1065 = vld [vmem:[%s869 + $0x20] sm:$0xff]
      %v1066 = vstv %s1048
      %v1067 = vmul.f32 %v1062, %v1066
      %v1068 = vmul.f32 %v1063, %v1066
      %v1069 = vmul.f32 %v1064, %v1066
      %v1070 = vmul.f32 %v1065, %v1066
      %v1071 = vadd.f32 %v1058, %v1067
      %v1072 = vadd.f32 %v1059, %v1068
      %v1073 = vadd.f32 %v1060, %v1069
      %v1074 = vadd.f32 %v1061, %v1070
      %s1075 = sld [smem:[#allocation10 + $0xc]]
      %s1076 = sld [smem:[#allocation10 + $0xd]]
      %v1077 = vld [vmem:[%s702] sm:$0xff]
      %v1078 = vld [vmem:[%s702 + $0x8] sm:$0xff]
      %v1079 = vld [vmem:[%s702 + $0x18] sm:$0xff]
      %v1080 = vld [vmem:[%s702 + $0x20] sm:$0xff]
      %v1081 = vstv %s1075
      %v1082 = vmul.f32 %v1077, %v1081
      %v1083 = vmul.f32 %v1078, %v1081
      %v1084 = vmul.f32 %v1079, %v1081
      %v1085 = vmul.f32 %v1080, %v1081
      %v1086 = vadd.f32 %v987, %v1082
      %v1087 = vadd.f32 %v988, %v1083
      %v1088 = vadd.f32 %v989, %v1084
      %v1089 = vadd.f32 %v990, %v1085
      %v1090 = vld [vmem:[%s900] sm:$0xff]
      %v1091 = vld [vmem:[%s900 + $0x8] sm:$0xff]
      %v1092 = vld [vmem:[%s900 + $0x18] sm:$0xff]
      %v1093 = vld [vmem:[%s900 + $0x20] sm:$0xff]
      %v1094 = vstv %s1076
      %v1095 = vmul.f32 %v1090, %v1094
      %v1096 = vmul.f32 %v1091, %v1094
      %v1097 = vmul.f32 %v1092, %v1094
      %v1098 = vmul.f32 %v1093, %v1094
      %v1099 = vadd.f32 %v1086, %v1095
      %v1100 = vadd.f32 %v1087, %v1096
      %v1101 = vadd.f32 %v1088, %v1097
      %v1102 = vadd.f32 %v1089, %v1098
      %s1103 = sld [smem:[#allocation10 + $0xe]]
      %s1104 = sld [smem:[#allocation10 + $0xf]]
      %v1105 = vld [vmem:[#allocation4 + $0x1] sm:$0xff]
      %v1106 = vld [vmem:[#allocation4 + $0x9] sm:$0xff]
      %v1107 = vld [vmem:[#allocation4 + $0x19] sm:$0xff]
      %v1108 = vld [vmem:[#allocation4 + $0x21] sm:$0xff]
      %v1109 = vstv %s1103
      %v1110 = vmul.f32 %v1105, %v1109
      %v1111 = vmul.f32 %v1106, %v1109
      %v1112 = vmul.f32 %v1107, %v1109
      %v1113 = vmul.f32 %v1108, %v1109
      %v1114 = vadd.f32 %v1015, %v1110
      %v1115 = vadd.f32 %v1016, %v1111
      %v1116 = vadd.f32 %v1017, %v1112
      %v1117 = vadd.f32 %v1018, %v1113
      %v1118 = vld [vmem:[%s745 + $0x1] sm:$0xff]
      %v1119 = vld [vmem:[%s745 + $0x9] sm:$0xff]
      %v1120 = vld [vmem:[%s745 + $0x19] sm:$0xff]
      %v1121 = vld [vmem:[%s745 + $0x21] sm:$0xff]
      %v1122 = vstv %s1104
      %v1123 = vmul.f32 %v1118, %v1122
      %v1124 = vmul.f32 %v1119, %v1122
      %v1125 = vmul.f32 %v1120, %v1122
      %v1126 = vmul.f32 %v1121, %v1122
      %v1127 = vadd.f32 %v1114, %v1123
      %v1128 = vadd.f32 %v1115, %v1124
      %v1129 = vadd.f32 %v1116, %v1125
      %v1130 = vadd.f32 %v1117, %v1126
      %s1131 = sld [smem:[#allocation10 + $0x10]]
      %s1132 = sld [smem:[#allocation10 + $0x11]]
      %v1133 = vld [vmem:[%s574 + $0x1] sm:$0xff]
      %v1134 = vld [vmem:[%s574 + $0x9] sm:$0xff]
      %v1135 = vld [vmem:[%s574 + $0x19] sm:$0xff]
      %v1136 = vld [vmem:[%s574 + $0x21] sm:$0xff]
      %v1137 = vstv %s1131
      %v1138 = vmul.f32 %v1133, %v1137
      %v1139 = vmul.f32 %v1134, %v1137
      %v1140 = vmul.f32 %v1135, %v1137
      %v1141 = vmul.f32 %v1136, %v1137
      %v1142 = vadd.f32 %v1043, %v1138
      %v1143 = vadd.f32 %v1044, %v1139
      %v1144 = vadd.f32 %v1045, %v1140
      %v1145 = vadd.f32 %v1046, %v1141
      %v1146 = vld [vmem:[%s776 + $0x1] sm:$0xff]
      %v1147 = vld [vmem:[%s776 + $0x9] sm:$0xff]
      %v1148 = vld [vmem:[%s776 + $0x19] sm:$0xff]
      %v1149 = vld [vmem:[%s776 + $0x21] sm:$0xff]
      %v1150 = vstv %s1132
      %v1151 = vmul.f32 %v1146, %v1150
      %v1152 = vmul.f32 %v1147, %v1150
      %v1153 = vmul.f32 %v1148, %v1150
      %v1154 = vmul.f32 %v1149, %v1150
      %v1155 = vadd.f32 %v1142, %v1151
      %v1156 = vadd.f32 %v1143, %v1152
      %v1157 = vadd.f32 %v1144, %v1153
      %v1158 = vadd.f32 %v1145, %v1154
      %s1159 = sld [smem:[#allocation10 + $0x12]]
      %s1160 = sld [smem:[#allocation10 + $0x13]]
      %v1161 = vld [vmem:[%s606 + $0x1] sm:$0xff]
      %v1162 = vld [vmem:[%s606 + $0x9] sm:$0xff]
      %v1163 = vld [vmem:[%s606 + $0x19] sm:$0xff]
      %v1164 = vld [vmem:[%s606 + $0x21] sm:$0xff]
      %v1165 = vstv %s1159
      %v1166 = vmul.f32 %v1161, %v1165
      %v1167 = vmul.f32 %v1162, %v1165
      %v1168 = vmul.f32 %v1163, %v1165
      %v1169 = vmul.f32 %v1164, %v1165
      %v1170 = vadd.f32 %v1071, %v1166
      %v1171 = vadd.f32 %v1072, %v1167
      %v1172 = vadd.f32 %v1073, %v1168
      %v1173 = vadd.f32 %v1074, %v1169
      %v1174 = vld [vmem:[%s807 + $0x1] sm:$0xff]
      %v1175 = vld [vmem:[%s807 + $0x9] sm:$0xff]
      %v1176 = vld [vmem:[%s807 + $0x19] sm:$0xff]
      %v1177 = vld [vmem:[%s807 + $0x21] sm:$0xff]
      %v1178 = vstv %s1160
      %v1179 = vmul.f32 %v1174, %v1178
      %v1180 = vmul.f32 %v1175, %v1178
      %v1181 = vmul.f32 %v1176, %v1178
      %v1182 = vmul.f32 %v1177, %v1178
      %v1183 = vadd.f32 %v1170, %v1179
      %v1184 = vadd.f32 %v1171, %v1180
      %v1185 = vadd.f32 %v1172, %v1181
      %v1186 = vadd.f32 %v1173, %v1182
      %s1187 = sld [smem:[#allocation10 + $0x14]]
      %s1188 = sld [smem:[#allocation10 + $0x15]]
      %v1189 = vld [vmem:[%s186 + $0x1] sm:$0xff]
      %v1190 = vld [vmem:[%s186 + $0x9] sm:$0xff]
      %v1191 = vld [vmem:[%s186 + $0x19] sm:$0xff]
      %v1192 = vld [vmem:[%s186 + $0x21] sm:$0xff]
      %v1193 = vstv %s1187
      %v1194 = vmul.f32 %v1189, %v1193
      %v1195 = vmul.f32 %v1190, %v1193
      %v1196 = vmul.f32 %v1191, %v1193
      %v1197 = vmul.f32 %v1192, %v1193
      %v1198 = vadd.f32 %v1099, %v1194
      %v1199 = vadd.f32 %v1100, %v1195
      %v1200 = vadd.f32 %v1101, %v1196
      %v1201 = vadd.f32 %v1102, %v1197
      %v1202 = vld [vmem:[%s346 + $0x1] sm:$0xff]
      %v1203 = vld [vmem:[%s346 + $0x9] sm:$0xff]
      %v1204 = vld [vmem:[%s346 + $0x19] sm:$0xff]
      %v1205 = vld [vmem:[%s346 + $0x21] sm:$0xff]
      %v1206 = vstv %s1188
      %v1207 = vmul.f32 %v1202, %v1206
      %v1208 = vmul.f32 %v1203, %v1206
      %v1209 = vmul.f32 %v1204, %v1206
      %v1210 = vmul.f32 %v1205, %v1206
      %v1211 = vadd.f32 %v1198, %v1207
      %v1212 = vadd.f32 %v1199, %v1208
      %v1213 = vadd.f32 %v1200, %v1209
      %v1214 = vadd.f32 %v1201, %v1210
      %s1215 = sld [smem:[#allocation10 + $0x16]]
      %s1216 = sld [smem:[#allocation10 + $0x17]]
      %v1217 = vld [vmem:[%s638 + $0x1] sm:$0xff]
      %v1218 = vld [vmem:[%s638 + $0x9] sm:$0xff]
      %v1219 = vld [vmem:[%s638 + $0x19] sm:$0xff]
      %v1220 = vld [vmem:[%s638 + $0x21] sm:$0xff]
      %v1221 = vstv %s1215
      %v1222 = vmul.f32 %v1217, %v1221
      %v1223 = vmul.f32 %v1218, %v1221
      %v1224 = vmul.f32 %v1219, %v1221
      %v1225 = vmul.f32 %v1220, %v1221
      %v1226 = vadd.f32 %v1127, %v1222
      %v1227 = vadd.f32 %v1128, %v1223
      %v1228 = vadd.f32 %v1129, %v1224
      %v1229 = vadd.f32 %v1130, %v1225
      %v1230 = vld [vmem:[%s838 + $0x1] sm:$0xff]
      %v1231 = vld [vmem:[%s838 + $0x9] sm:$0xff]
      %v1232 = vld [vmem:[%s838 + $0x19] sm:$0xff]
      %v1233 = vld [vmem:[%s838 + $0x21] sm:$0xff]
      %v1234 = vstv %s1216
      %v1235 = vmul.f32 %v1230, %v1234
      %v1236 = vmul.f32 %v1231, %v1234
      %v1237 = vmul.f32 %v1232, %v1234
      %v1238 = vmul.f32 %v1233, %v1234
      %v1239 = vadd.f32 %v1226, %v1235
      %v1240 = vadd.f32 %v1227, %v1236
      %v1241 = vadd.f32 %v1228, %v1237
      %v1242 = vadd.f32 %v1229, %v1238
      %s1243 = sld [smem:[#allocation10 + $0x18]]
      %s1244 = sld [smem:[#allocation10 + $0x19]]
      %v1245 = vld [vmem:[%s670 + $0x1] sm:$0xff]
      %v1246 = vld [vmem:[%s670 + $0x9] sm:$0xff]
      %v1247 = vld [vmem:[%s670 + $0x19] sm:$0xff]
      %v1248 = vld [vmem:[%s670 + $0x21] sm:$0xff]
      %v1249 = vstv %s1243
      %v1250 = vmul.f32 %v1245, %v1249
      %v1251 = vmul.f32 %v1246, %v1249
      %v1252 = vmul.f32 %v1247, %v1249
      %v1253 = vmul.f32 %v1248, %v1249
      %v1254 = vadd.f32 %v1155, %v1250
      %v1255 = vadd.f32 %v1156, %v1251
      %v1256 = vadd.f32 %v1157, %v1252
      %v1257 = vadd.f32 %v1158, %v1253
      %v1258 = vld [vmem:[%s869 + $0x1] sm:$0xff]
      %v1259 = vld [vmem:[%s869 + $0x9] sm:$0xff]
      %v1260 = vld [vmem:[%s869 + $0x19] sm:$0xff]
      %v1261 = vld [vmem:[%s869 + $0x21] sm:$0xff]
      %v1262 = vstv %s1244
      %v1263 = vmul.f32 %v1258, %v1262
      %v1264 = vmul.f32 %v1259, %v1262
      %v1265 = vmul.f32 %v1260, %v1262
      %v1266 = vmul.f32 %v1261, %v1262
      %v1267 = vadd.f32 %v1254, %v1263
      %v1268 = vadd.f32 %v1255, %v1264
      %v1269 = vadd.f32 %v1256, %v1265
      %v1270 = vadd.f32 %v1257, %v1266
      %s1271 = sld [smem:[#allocation10 + $0x1a]]
      %s1272 = sld [smem:[#allocation10 + $0x1b]]
      %v1273 = vld [vmem:[%s702 + $0x1] sm:$0xff]
      %v1274 = vld [vmem:[%s702 + $0x9] sm:$0xff]
      %v1275 = vld [vmem:[%s702 + $0x19] sm:$0xff]
      %v1276 = vld [vmem:[%s702 + $0x21] sm:$0xff]
      %v1277 = vstv %s1271
      %v1278 = vmul.f32 %v1273, %v1277
      %v1279 = vmul.f32 %v1274, %v1277
      %v1280 = vmul.f32 %v1275, %v1277
      %v1281 = vmul.f32 %v1276, %v1277
      %v1282 = vadd.f32 %v1183, %v1278
      %v1283 = vadd.f32 %v1184, %v1279
      %v1284 = vadd.f32 %v1185, %v1280
      %v1285 = vadd.f32 %v1186, %v1281
      %v1286 = vld [vmem:[%s900 + $0x1] sm:$0xff]
      %v1287 = vld [vmem:[%s900 + $0x9] sm:$0xff]
      %v1288 = vld [vmem:[%s900 + $0x19] sm:$0xff]
      %v1289 = vld [vmem:[%s900 + $0x21] sm:$0xff]
      %v1290 = vstv %s1272
      %v1291 = vmul.f32 %v1286, %v1290
      %v1292 = vmul.f32 %v1287, %v1290
      %v1293 = vmul.f32 %v1288, %v1290
      %v1294 = vmul.f32 %v1289, %v1290
      %v1295 = vadd.f32 %v1282, %v1291
      %v1296 = vadd.f32 %v1283, %v1292
      %v1297 = vadd.f32 %v1284, %v1293
      %v1298 = vadd.f32 %v1285, %v1294
      %s1299 = sld [smem:[#allocation10 + $0x1c]]
      %s1300 = sld [smem:[#allocation10 + $0x1d]]
      %v1301 = vld [vmem:[#allocation4 + $0x2] sm:$0xff]
      %v1302 = vld [vmem:[#allocation4 + $0xa] sm:$0xff]
      %v1303 = vld [vmem:[#allocation4 + $0x1a] sm:$0xff]
      %v1304 = vld [vmem:[#allocation4 + $0x22] sm:$0xff]
      %v1305 = vstv %s1299
      %v1306 = vmul.f32 %v1301, %v1305
      %v1307 = vmul.f32 %v1302, %v1305
      %v1308 = vmul.f32 %v1303, %v1305
      %v1309 = vmul.f32 %v1304, %v1305
      %v1310 = vadd.f32 %v1211, %v1306
      %v1311 = vadd.f32 %v1212, %v1307
      %v1312 = vadd.f32 %v1213, %v1308
      %v1313 = vadd.f32 %v1214, %v1309
      %v1314 = vld [vmem:[%s745 + $0x2] sm:$0xff]
      %v1315 = vld [vmem:[%s745 + $0xa] sm:$0xff]
      %v1316 = vld [vmem:[%s745 + $0x1a] sm:$0xff]
      %v1317 = vld [vmem:[%s745 + $0x22] sm:$0xff]
      %v1318 = vstv %s1300
      %v1319 = vmul.f32 %v1314, %v1318
      %v1320 = vmul.f32 %v1315, %v1318
      %v1321 = vmul.f32 %v1316, %v1318
      %v1322 = vmul.f32 %v1317, %v1318
      %v1323 = vadd.f32 %v1310, %v1319
      %v1324 = vadd.f32 %v1311, %v1320
      %v1325 = vadd.f32 %v1312, %v1321
      %v1326 = vadd.f32 %v1313, %v1322
      %s1327 = sld [smem:[#allocation10 + $0x1e]]
      %s1328 = sld [smem:[#allocation10 + $0x1f]]
      %v1329 = vld [vmem:[%s574 + $0x2] sm:$0xff]
      %v1330 = vld [vmem:[%s574 + $0xa] sm:$0xff]
      %v1331 = vld [vmem:[%s574 + $0x1a] sm:$0xff]
      %v1332 = vld [vmem:[%s574 + $0x22] sm:$0xff]
      %v1333 = vstv %s1327
      %v1334 = vmul.f32 %v1329, %v1333
      %v1335 = vmul.f32 %v1330, %v1333
      %v1336 = vmul.f32 %v1331, %v1333
      %v1337 = vmul.f32 %v1332, %v1333
      %v1338 = vadd.f32 %v1239, %v1334
      %v1339 = vadd.f32 %v1240, %v1335
      %v1340 = vadd.f32 %v1241, %v1336
      %v1341 = vadd.f32 %v1242, %v1337
      %v1342 = vld [vmem:[%s776 + $0x2] sm:$0xff]
      %v1343 = vld [vmem:[%s776 + $0xa] sm:$0xff]
      %v1344 = vld [vmem:[%s776 + $0x1a] sm:$0xff]
      %v1345 = vld [vmem:[%s776 + $0x22] sm:$0xff]
      %v1346 = vstv %s1328
      %v1347 = vmul.f32 %v1342, %v1346
      %v1348 = vmul.f32 %v1343, %v1346
      %v1349 = vmul.f32 %v1344, %v1346
      %v1350 = vmul.f32 %v1345, %v1346
      %v1351 = vadd.f32 %v1338, %v1347
      %v1352 = vadd.f32 %v1339, %v1348
      %v1353 = vadd.f32 %v1340, %v1349
      %v1354 = vadd.f32 %v1341, %v1350
      %s1355 = sld [smem:[#allocation10 + $0x20]]
      %s1356 = sld [smem:[#allocation10 + $0x21]]
      %v1357 = vld [vmem:[%s606 + $0x2] sm:$0xff]
      %v1358 = vld [vmem:[%s606 + $0xa] sm:$0xff]
      %v1359 = vld [vmem:[%s606 + $0x1a] sm:$0xff]
      %v1360 = vld [vmem:[%s606 + $0x22] sm:$0xff]
      %v1361 = vstv %s1355
      %v1362 = vmul.f32 %v1357, %v1361
      %v1363 = vmul.f32 %v1358, %v1361
      %v1364 = vmul.f32 %v1359, %v1361
      %v1365 = vmul.f32 %v1360, %v1361
      %v1366 = vadd.f32 %v1267, %v1362
      %v1367 = vadd.f32 %v1268, %v1363
      %v1368 = vadd.f32 %v1269, %v1364
      %v1369 = vadd.f32 %v1270, %v1365
      %v1370 = vld [vmem:[%s807 + $0x2] sm:$0xff]
      %v1371 = vld [vmem:[%s807 + $0xa] sm:$0xff]
      %v1372 = vld [vmem:[%s807 + $0x1a] sm:$0xff]
      %v1373 = vld [vmem:[%s807 + $0x22] sm:$0xff]
      %v1374 = vstv %s1356
      %v1375 = vmul.f32 %v1370, %v1374
      %v1376 = vmul.f32 %v1371, %v1374
      %v1377 = vmul.f32 %v1372, %v1374
      %v1378 = vmul.f32 %v1373, %v1374
      %v1379 = vadd.f32 %v1366, %v1375
      %v1380 = vadd.f32 %v1367, %v1376
      %v1381 = vadd.f32 %v1368, %v1377
      %v1382 = vadd.f32 %v1369, %v1378
      %s1383 = sld [smem:[#allocation10 + $0x22]]
      %s1384 = sld [smem:[#allocation10 + $0x23]]
      %v1385 = vld [vmem:[%s186 + $0x2] sm:$0xff]
      %v1386 = vld [vmem:[%s186 + $0xa] sm:$0xff]
      %v1387 = vld [vmem:[%s186 + $0x1a] sm:$0xff]
      %v1388 = vld [vmem:[%s186 + $0x22] sm:$0xff]
      %v1389 = vstv %s1383
      %v1390 = vmul.f32 %v1385, %v1389
      %v1391 = vmul.f32 %v1386, %v1389
      %v1392 = vmul.f32 %v1387, %v1389
      %v1393 = vmul.f32 %v1388, %v1389
      %v1394 = vadd.f32 %v1295, %v1390
      %v1395 = vadd.f32 %v1296, %v1391
      %v1396 = vadd.f32 %v1297, %v1392
      %v1397 = vadd.f32 %v1298, %v1393
      %v1398 = vld [vmem:[%s346 + $0x2] sm:$0xff]
      %v1399 = vld [vmem:[%s346 + $0xa] sm:$0xff]
      %v1400 = vld [vmem:[%s346 + $0x1a] sm:$0xff]
      %v1401 = vld [vmem:[%s346 + $0x22] sm:$0xff]
      %v1402 = vstv %s1384
      %v1403 = vmul.f32 %v1398, %v1402
      %v1404 = vmul.f32 %v1399, %v1402
      %v1405 = vmul.f32 %v1400, %v1402
      %v1406 = vmul.f32 %v1401, %v1402
      %v1407 = vadd.f32 %v1394, %v1403
      %v1408 = vadd.f32 %v1395, %v1404
      %v1409 = vadd.f32 %v1396, %v1405
      %v1410 = vadd.f32 %v1397, %v1406
      %s1411 = sld [smem:[#allocation10 + $0x24]]
      %s1412 = sld [smem:[#allocation10 + $0x25]]
      %v1413 = vld [vmem:[%s638 + $0x2] sm:$0xff]
      %v1414 = vld [vmem:[%s638 + $0xa] sm:$0xff]
      %v1415 = vld [vmem:[%s638 + $0x1a] sm:$0xff]
      %v1416 = vld [vmem:[%s638 + $0x22] sm:$0xff]
      %v1417 = vstv %s1411
      %v1418 = vmul.f32 %v1413, %v1417
      %v1419 = vmul.f32 %v1414, %v1417
      %v1420 = vmul.f32 %v1415, %v1417
      %v1421 = vmul.f32 %v1416, %v1417
      %v1422 = vadd.f32 %v1323, %v1418
      %v1423 = vadd.f32 %v1324, %v1419
      %v1424 = vadd.f32 %v1325, %v1420
      %v1425 = vadd.f32 %v1326, %v1421
      %v1426 = vld [vmem:[%s838 + $0x2] sm:$0xff]
      %v1427 = vld [vmem:[%s838 + $0xa] sm:$0xff]
      %v1428 = vld [vmem:[%s838 + $0x1a] sm:$0xff]
      %v1429 = vld [vmem:[%s838 + $0x22] sm:$0xff]
      %v1430 = vstv %s1412
      %v1431 = vmul.f32 %v1426, %v1430
      %v1432 = vmul.f32 %v1427, %v1430
      %v1433 = vmul.f32 %v1428, %v1430
      %v1434 = vmul.f32 %v1429, %v1430
      %v1435 = vadd.f32 %v1422, %v1431
      %v1436 = vadd.f32 %v1423, %v1432
      %v1437 = vadd.f32 %v1424, %v1433
      %v1438 = vadd.f32 %v1425, %v1434
      %s1439 = sld [smem:[#allocation10 + $0x26]]
      %s1440 = sld [smem:[#allocation10 + $0x27]]
      %v1441 = vld [vmem:[%s670 + $0x2] sm:$0xff]
      %v1442 = vld [vmem:[%s670 + $0xa] sm:$0xff]
      %v1443 = vld [vmem:[%s670 + $0x1a] sm:$0xff]
      %v1444 = vld [vmem:[%s670 + $0x22] sm:$0xff]
      %v1445 = vstv %s1439
      %v1446 = vmul.f32 %v1441, %v1445
      %v1447 = vmul.f32 %v1442, %v1445
      %v1448 = vmul.f32 %v1443, %v1445
      %v1449 = vmul.f32 %v1444, %v1445
      %v1450 = vadd.f32 %v1351, %v1446
      %v1451 = vadd.f32 %v1352, %v1447
      %v1452 = vadd.f32 %v1353, %v1448
      %v1453 = vadd.f32 %v1354, %v1449
      %v1454 = vld [vmem:[%s869 + $0x2] sm:$0xff]
      %v1455 = vld [vmem:[%s869 + $0xa] sm:$0xff]
      %v1456 = vld [vmem:[%s869 + $0x1a] sm:$0xff]
      %v1457 = vld [vmem:[%s869 + $0x22] sm:$0xff]
      %v1458 = vstv %s1440
      %v1459 = vmul.f32 %v1454, %v1458
      %v1460 = vmul.f32 %v1455, %v1458
      %v1461 = vmul.f32 %v1456, %v1458
      %v1462 = vmul.f32 %v1457, %v1458
      %v1463 = vadd.f32 %v1450, %v1459
      %v1464 = vadd.f32 %v1451, %v1460
      %v1465 = vadd.f32 %v1452, %v1461
      %v1466 = vadd.f32 %v1453, %v1462
      %s1467 = sld [smem:[#allocation10 + $0x28]]
      %s1468 = sld [smem:[#allocation10 + $0x29]]
      %v1469 = vld [vmem:[%s702 + $0x2] sm:$0xff]
      %v1470 = vld [vmem:[%s702 + $0xa] sm:$0xff]
      %v1471 = vld [vmem:[%s702 + $0x1a] sm:$0xff]
      %v1472 = vld [vmem:[%s702 + $0x22] sm:$0xff]
      %v1473 = vstv %s1467
      %v1474 = vmul.f32 %v1469, %v1473
      %v1475 = vmul.f32 %v1470, %v1473
      %v1476 = vmul.f32 %v1471, %v1473
      %v1477 = vmul.f32 %v1472, %v1473
      %v1478 = vadd.f32 %v1379, %v1474
      %v1479 = vadd.f32 %v1380, %v1475
      %v1480 = vadd.f32 %v1381, %v1476
      %v1481 = vadd.f32 %v1382, %v1477
      %v1482 = vld [vmem:[%s900 + $0x2] sm:$0xff]
      %v1483 = vld [vmem:[%s900 + $0xa] sm:$0xff]
      %v1484 = vld [vmem:[%s900 + $0x1a] sm:$0xff]
      %v1485 = vld [vmem:[%s900 + $0x22] sm:$0xff]
      %v1486 = vstv %s1468
      %v1487 = vmul.f32 %v1482, %v1486
      %v1488 = vmul.f32 %v1483, %v1486
      %v1489 = vmul.f32 %v1484, %v1486
      %v1490 = vmul.f32 %v1485, %v1486
      %v1491 = vadd.f32 %v1478, %v1487
      %v1492 = vadd.f32 %v1479, %v1488
      %v1493 = vadd.f32 %v1480, %v1489
      %v1494 = vadd.f32 %v1481, %v1490
      %s1495 = sld [smem:[#allocation10 + $0x2a]]
      %s1496 = sld [smem:[#allocation10 + $0x2b]]
      %v1497 = vld [vmem:[#allocation4 + $0x3] sm:$0xff]
      %v1498 = vld [vmem:[#allocation4 + $0xb] sm:$0xff]
      %v1499 = vld [vmem:[#allocation4 + $0x1b] sm:$0xff]
      %v1500 = vld [vmem:[#allocation4 + $0x23] sm:$0xff]
      %v1501 = vstv %s1495
      %v1502 = vmul.f32 %v1497, %v1501
      %v1503 = vmul.f32 %v1498, %v1501
      %v1504 = vmul.f32 %v1499, %v1501
      %v1505 = vmul.f32 %v1500, %v1501
      %v1506 = vadd.f32 %v1407, %v1502
      %v1507 = vadd.f32 %v1408, %v1503
      %v1508 = vadd.f32 %v1409, %v1504
      %v1509 = vadd.f32 %v1410, %v1505
      %v1510 = vld [vmem:[%s745 + $0x3] sm:$0xff]
      %v1511 = vld [vmem:[%s745 + $0xb] sm:$0xff]
      %v1512 = vld [vmem:[%s745 + $0x1b] sm:$0xff]
      %v1513 = vld [vmem:[%s745 + $0x23] sm:$0xff]
      %v1514 = vstv %s1496
      %v1515 = vmul.f32 %v1510, %v1514
      %v1516 = vmul.f32 %v1511, %v1514
      %v1517 = vmul.f32 %v1512, %v1514
      %v1518 = vmul.f32 %v1513, %v1514
      %v1519 = vadd.f32 %v1506, %v1515
      %v1520 = vadd.f32 %v1507, %v1516
      %v1521 = vadd.f32 %v1508, %v1517
      %v1522 = vadd.f32 %v1509, %v1518
      %s1523 = sld [smem:[#allocation10 + $0x2c]]
      %s1524 = sld [smem:[#allocation10 + $0x2d]]
      %v1525 = vld [vmem:[%s574 + $0x3] sm:$0xff]
      %v1526 = vld [vmem:[%s574 + $0xb] sm:$0xff]
      %v1527 = vld [vmem:[%s574 + $0x1b] sm:$0xff]
      %v1528 = vld [vmem:[%s574 + $0x23] sm:$0xff]
      %v1529 = vstv %s1523
      %v1530 = vmul.f32 %v1525, %v1529
      %v1531 = vmul.f32 %v1526, %v1529
      %v1532 = vmul.f32 %v1527, %v1529
      %v1533 = vmul.f32 %v1528, %v1529
      %v1534 = vadd.f32 %v1435, %v1530
      %v1535 = vadd.f32 %v1436, %v1531
      %v1536 = vadd.f32 %v1437, %v1532
      %v1537 = vadd.f32 %v1438, %v1533
      %v1538 = vld [vmem:[%s776 + $0x3] sm:$0xff]
      %v1539 = vld [vmem:[%s776 + $0xb] sm:$0xff]
      %v1540 = vld [vmem:[%s776 + $0x1b] sm:$0xff]
      %v1541 = vld [vmem:[%s776 + $0x23] sm:$0xff]
      %v1542 = vstv %s1524
      %v1543 = vmul.f32 %v1538, %v1542
      %v1544 = vmul.f32 %v1539, %v1542
      %v1545 = vmul.f32 %v1540, %v1542
      %v1546 = vmul.f32 %v1541, %v1542
      %v1547 = vadd.f32 %v1534, %v1543
      %v1548 = vadd.f32 %v1535, %v1544
      %v1549 = vadd.f32 %v1536, %v1545
      %v1550 = vadd.f32 %v1537, %v1546
      %s1551 = sld [smem:[#allocation10 + $0x2e]]
      %s1552 = sld [smem:[#allocation10 + $0x2f]]
      %v1553 = vld [vmem:[%s606 + $0x3] sm:$0xff]
      %v1554 = vld [vmem:[%s606 + $0xb] sm:$0xff]
      %v1555 = vld [vmem:[%s606 + $0x1b] sm:$0xff]
      %v1556 = vld [vmem:[%s606 + $0x23] sm:$0xff]
      %v1557 = vstv %s1551
      %v1558 = vmul.f32 %v1553, %v1557
      %v1559 = vmul.f32 %v1554, %v1557
      %v1560 = vmul.f32 %v1555, %v1557
      %v1561 = vmul.f32 %v1556, %v1557
      %v1562 = vadd.f32 %v1463, %v1558
      %v1563 = vadd.f32 %v1464, %v1559
      %v1564 = vadd.f32 %v1465, %v1560
      %v1565 = vadd.f32 %v1466, %v1561
      %v1566 = vld [vmem:[%s807 + $0x3] sm:$0xff]
      %v1567 = vld [vmem:[%s807 + $0xb] sm:$0xff]
      %v1568 = vld [vmem:[%s807 + $0x1b] sm:$0xff]
      %v1569 = vld [vmem:[%s807 + $0x23] sm:$0xff]
      %v1570 = vstv %s1552
      %v1571 = vmul.f32 %v1566, %v1570
      %v1572 = vmul.f32 %v1567, %v1570
      %v1573 = vmul.f32 %v1568, %v1570
      %v1574 = vmul.f32 %v1569, %v1570
      %v1575 = vadd.f32 %v1562, %v1571
      %v1576 = vadd.f32 %v1563, %v1572
      %v1577 = vadd.f32 %v1564, %v1573
      %v1578 = vadd.f32 %v1565, %v1574
      %s1579 = sld [smem:[#allocation10 + $0x30]]
      %s1580 = sld [smem:[#allocation10 + $0x31]]
      %v1581 = vld [vmem:[%s186 + $0x3] sm:$0xff]
      %v1582 = vld [vmem:[%s186 + $0xb] sm:$0xff]
      %v1583 = vld [vmem:[%s186 + $0x1b] sm:$0xff]
      %v1584 = vld [vmem:[%s186 + $0x23] sm:$0xff]
      %v1585 = vstv %s1579
      %v1586 = vmul.f32 %v1581, %v1585
      %v1587 = vmul.f32 %v1582, %v1585
      %v1588 = vmul.f32 %v1583, %v1585
      %v1589 = vmul.f32 %v1584, %v1585
      %v1590 = vadd.f32 %v1491, %v1586
      %v1591 = vadd.f32 %v1492, %v1587
      %v1592 = vadd.f32 %v1493, %v1588
      %v1593 = vadd.f32 %v1494, %v1589
      %v1594 = vld [vmem:[%s346 + $0x3] sm:$0xff]
      %v1595 = vld [vmem:[%s346 + $0xb] sm:$0xff]
      %v1596 = vld [vmem:[%s346 + $0x1b] sm:$0xff]
      %v1597 = vld [vmem:[%s346 + $0x23] sm:$0xff]
      %v1598 = vstv %s1580
      %v1599 = vmul.f32 %v1594, %v1598
      %v1600 = vmul.f32 %v1595, %v1598
      %v1601 = vmul.f32 %v1596, %v1598
      %v1602 = vmul.f32 %v1597, %v1598
      %v1603 = vadd.f32 %v1590, %v1599
      %v1604 = vadd.f32 %v1591, %v1600
      %v1605 = vadd.f32 %v1592, %v1601
      %v1606 = vadd.f32 %v1593, %v1602
      %s1607 = sld [smem:[#allocation10 + $0x32]]
      %s1608 = sld [smem:[#allocation10 + $0x33]]
      %v1609 = vld [vmem:[%s638 + $0x3] sm:$0xff]
      %v1610 = vld [vmem:[%s638 + $0xb] sm:$0xff]
      %v1611 = vld [vmem:[%s638 + $0x1b] sm:$0xff]
      %v1612 = vld [vmem:[%s638 + $0x23] sm:$0xff]
      %v1613 = vstv %s1607
      %v1614 = vmul.f32 %v1609, %v1613
      %v1615 = vmul.f32 %v1610, %v1613
      %v1616 = vmul.f32 %v1611, %v1613
      %v1617 = vmul.f32 %v1612, %v1613
      %v1618 = vadd.f32 %v1519, %v1614
      %v1619 = vadd.f32 %v1520, %v1615
      %v1620 = vadd.f32 %v1521, %v1616
      %v1621 = vadd.f32 %v1522, %v1617
      %v1622 = vld [vmem:[%s838 + $0x3] sm:$0xff]
      %v1623 = vld [vmem:[%s838 + $0xb] sm:$0xff]
      %v1624 = vld [vmem:[%s838 + $0x1b] sm:$0xff]
      %v1625 = vld [vmem:[%s838 + $0x23] sm:$0xff]
      %v1626 = vstv %s1608
      %v1627 = vmul.f32 %v1622, %v1626
      %v1628 = vmul.f32 %v1623, %v1626
      %v1629 = vmul.f32 %v1624, %v1626
      %v1630 = vmul.f32 %v1625, %v1626
      %v1631 = vadd.f32 %v1618, %v1627
      %v1632 = vadd.f32 %v1619, %v1628
      %v1633 = vadd.f32 %v1620, %v1629
      %v1634 = vadd.f32 %v1621, %v1630
      %s1635 = sld [smem:[#allocation10 + $0x34]]
      %s1636 = sld [smem:[#allocation10 + $0x35]]
      %v1637 = vld [vmem:[%s670 + $0x3] sm:$0xff]
      %v1638 = vld [vmem:[%s670 + $0xb] sm:$0xff]
      %v1639 = vld [vmem:[%s670 + $0x1b] sm:$0xff]
      %v1640 = vld [vmem:[%s670 + $0x23] sm:$0xff]
      %v1641 = vstv %s1635
      %v1642 = vmul.f32 %v1637, %v1641
      %v1643 = vmul.f32 %v1638, %v1641
      %v1644 = vmul.f32 %v1639, %v1641
      %v1645 = vmul.f32 %v1640, %v1641
      %v1646 = vadd.f32 %v1547, %v1642
      %v1647 = vadd.f32 %v1548, %v1643
      %v1648 = vadd.f32 %v1549, %v1644
      %v1649 = vadd.f32 %v1550, %v1645
      %v1650 = vld [vmem:[%s869 + $0x3] sm:$0xff]
      %v1651 = vld [vmem:[%s869 + $0xb] sm:$0xff]
      %v1652 = vld [vmem:[%s869 + $0x1b] sm:$0xff]
      %v1653 = vld [vmem:[%s869 + $0x23] sm:$0xff]
      %v1654 = vstv %s1636
      %v1655 = vmul.f32 %v1650, %v1654
      %v1656 = vmul.f32 %v1651, %v1654
      %v1657 = vmul.f32 %v1652, %v1654
      %v1658 = vmul.f32 %v1653, %v1654
      %v1659 = vadd.f32 %v1646, %v1655
      %v1660 = vadd.f32 %v1647, %v1656
      %v1661 = vadd.f32 %v1648, %v1657
      %v1662 = vadd.f32 %v1649, %v1658
      %s1663 = sld [smem:[#allocation10 + $0x36]]
      %s1664 = sld [smem:[#allocation10 + $0x37]]
      %v1665 = vld [vmem:[%s702 + $0x3] sm:$0xff]
      %v1666 = vld [vmem:[%s702 + $0xb] sm:$0xff]
      %v1667 = vld [vmem:[%s702 + $0x1b] sm:$0xff]
      %v1668 = vld [vmem:[%s702 + $0x23] sm:$0xff]
      %v1669 = vstv %s1663
      %v1670 = vmul.f32 %v1665, %v1669
      %v1671 = vmul.f32 %v1666, %v1669
      %v1672 = vmul.f32 %v1667, %v1669
      %v1673 = vmul.f32 %v1668, %v1669
      %v1674 = vadd.f32 %v1575, %v1670
      %v1675 = vadd.f32 %v1576, %v1671
      %v1676 = vadd.f32 %v1577, %v1672
      %v1677 = vadd.f32 %v1578, %v1673
      %v1678 = vld [vmem:[%s900 + $0x3] sm:$0xff]
      %v1679 = vld [vmem:[%s900 + $0xb] sm:$0xff]
      %v1680 = vld [vmem:[%s900 + $0x1b] sm:$0xff]
      %v1681 = vld [vmem:[%s900 + $0x23] sm:$0xff]
      %v1682 = vstv %s1664
      %v1683 = vmul.f32 %v1678, %v1682
      %v1684 = vmul.f32 %v1679, %v1682
      %v1685 = vmul.f32 %v1680, %v1682
      %v1686 = vmul.f32 %v1681, %v1682
      %v1687 = vadd.f32 %v1674, %v1683
      %v1688 = vadd.f32 %v1675, %v1684
      %v1689 = vadd.f32 %v1676, %v1685
      %v1690 = vadd.f32 %v1677, %v1686
      %s1691 = sld [smem:[#allocation10 + $0x38]]
      %s1692 = sld [smem:[#allocation10 + $0x39]]
      %v1693 = vld [vmem:[#allocation4 + $0x4] sm:$0xff]
      %v1694 = vld [vmem:[#allocation4 + $0xc] sm:$0xff]
      %v1695 = vld [vmem:[#allocation4 + $0x1c] sm:$0xff]
      %v1696 = vld [vmem:[#allocation4 + $0x24] sm:$0xff]
      %v1697 = vstv %s1691
      %v1698 = vmul.f32 %v1693, %v1697
      %v1699 = vmul.f32 %v1694, %v1697
      %v1700 = vmul.f32 %v1695, %v1697
      %v1701 = vmul.f32 %v1696, %v1697
      %v1702 = vadd.f32 %v1603, %v1698
      %v1703 = vadd.f32 %v1604, %v1699
      %v1704 = vadd.f32 %v1605, %v1700
      %v1705 = vadd.f32 %v1606, %v1701
      %v1706 = vld [vmem:[%s745 + $0x4] sm:$0xff]
      %v1707 = vld [vmem:[%s745 + $0xc] sm:$0xff]
      %v1708 = vld [vmem:[%s745 + $0x1c] sm:$0xff]
      %v1709 = vld [vmem:[%s745 + $0x24] sm:$0xff]
      %v1710 = vstv %s1692
      %v1711 = vmul.f32 %v1706, %v1710
      %v1712 = vmul.f32 %v1707, %v1710
      %v1713 = vmul.f32 %v1708, %v1710
      %v1714 = vmul.f32 %v1709, %v1710
      %v1715 = vadd.f32 %v1702, %v1711
      %v1716 = vadd.f32 %v1703, %v1712
      %v1717 = vadd.f32 %v1704, %v1713
      %v1718 = vadd.f32 %v1705, %v1714
      %s1719 = sld [smem:[#allocation10 + $0x3a]]
      %s1720 = sld [smem:[#allocation10 + $0x3b]]
      %v1721 = vld [vmem:[%s574 + $0x4] sm:$0xff]
      %v1722 = vld [vmem:[%s574 + $0xc] sm:$0xff]
      %v1723 = vld [vmem:[%s574 + $0x1c] sm:$0xff]
      %v1724 = vld [vmem:[%s574 + $0x24] sm:$0xff]
      %v1725 = vstv %s1719
      %v1726 = vmul.f32 %v1721, %v1725
      %v1727 = vmul.f32 %v1722, %v1725
      %v1728 = vmul.f32 %v1723, %v1725
      %v1729 = vmul.f32 %v1724, %v1725
      %v1730 = vadd.f32 %v1631, %v1726
      %v1731 = vadd.f32 %v1632, %v1727
      %v1732 = vadd.f32 %v1633, %v1728
      %v1733 = vadd.f32 %v1634, %v1729
      %v1734 = vld [vmem:[%s776 + $0x4] sm:$0xff]
      %v1735 = vld [vmem:[%s776 + $0xc] sm:$0xff]
      %v1736 = vld [vmem:[%s776 + $0x1c] sm:$0xff]
      %v1737 = vld [vmem:[%s776 + $0x24] sm:$0xff]
      %v1738 = vstv %s1720
      %v1739 = vmul.f32 %v1734, %v1738
      %v1740 = vmul.f32 %v1735, %v1738
      %v1741 = vmul.f32 %v1736, %v1738
      %v1742 = vmul.f32 %v1737, %v1738
      %v1743 = vadd.f32 %v1730, %v1739
      %v1744 = vadd.f32 %v1731, %v1740
      %v1745 = vadd.f32 %v1732, %v1741
      %v1746 = vadd.f32 %v1733, %v1742
      %s1747 = sld [smem:[#allocation10 + $0x3c]]
      %s1748 = sld [smem:[#allocation10 + $0x3d]]
      %v1749 = vld [vmem:[%s606 + $0x4] sm:$0xff]
      %v1750 = vld [vmem:[%s606 + $0xc] sm:$0xff]
      %v1751 = vld [vmem:[%s606 + $0x1c] sm:$0xff]
      %v1752 = vld [vmem:[%s606 + $0x24] sm:$0xff]
      %v1753 = vstv %s1747
      %v1754 = vmul.f32 %v1749, %v1753
      %v1755 = vmul.f32 %v1750, %v1753
      %v1756 = vmul.f32 %v1751, %v1753
      %v1757 = vmul.f32 %v1752, %v1753
      %v1758 = vadd.f32 %v1659, %v1754
      %v1759 = vadd.f32 %v1660, %v1755
      %v1760 = vadd.f32 %v1661, %v1756
      %v1761 = vadd.f32 %v1662, %v1757
      %v1762 = vld [vmem:[%s807 + $0x4] sm:$0xff]
      %v1763 = vld [vmem:[%s807 + $0xc] sm:$0xff]
      %v1764 = vld [vmem:[%s807 + $0x1c] sm:$0xff]
      %v1765 = vld [vmem:[%s807 + $0x24] sm:$0xff]
      %v1766 = vstv %s1748
      %v1767 = vmul.f32 %v1762, %v1766
      %v1768 = vmul.f32 %v1763, %v1766
      %v1769 = vmul.f32 %v1764, %v1766
      %v1770 = vmul.f32 %v1765, %v1766
      %v1771 = vadd.f32 %v1758, %v1767
      %v1772 = vadd.f32 %v1759, %v1768
      %v1773 = vadd.f32 %v1760, %v1769
      %v1774 = vadd.f32 %v1761, %v1770
      %s1775 = sld [smem:[#allocation10 + $0x3e]]
      %s1776 = sld [smem:[#allocation10 + $0x3f]]
      %v1777 = vld [vmem:[%s186 + $0x4] sm:$0xff]
      %v1778 = vld [vmem:[%s186 + $0xc] sm:$0xff]
      %v1779 = vld [vmem:[%s186 + $0x1c] sm:$0xff]
      %v1780 = vld [vmem:[%s186 + $0x24] sm:$0xff]
      %v1781 = vstv %s1775
      %v1782 = vmul.f32 %v1777, %v1781
      %v1783 = vmul.f32 %v1778, %v1781
      %v1784 = vmul.f32 %v1779, %v1781
      %v1785 = vmul.f32 %v1780, %v1781
      %v1786 = vadd.f32 %v1687, %v1782
      %v1787 = vadd.f32 %v1688, %v1783
      %v1788 = vadd.f32 %v1689, %v1784
      %v1789 = vadd.f32 %v1690, %v1785
      %v1790 = vld [vmem:[%s346 + $0x4] sm:$0xff]
      %v1791 = vld [vmem:[%s346 + $0xc] sm:$0xff]
      %v1792 = vld [vmem:[%s346 + $0x1c] sm:$0xff]
      %v1793 = vld [vmem:[%s346 + $0x24] sm:$0xff]
      %v1794 = vstv %s1776
      %v1795 = vmul.f32 %v1790, %v1794
      %v1796 = vmul.f32 %v1791, %v1794
      %v1797 = vmul.f32 %v1792, %v1794
      %v1798 = vmul.f32 %v1793, %v1794
      %v1799 = vadd.f32 %v1786, %v1795
      %v1800 = vadd.f32 %v1787, %v1796
      %v1801 = vadd.f32 %v1788, %v1797
      %v1802 = vadd.f32 %v1789, %v1798
      %s1803 = sld [smem:[#allocation10 + $0x40]]
      %s1804 = sld [smem:[#allocation10 + $0x41]]
      %v1805 = vld [vmem:[%s638 + $0x4] sm:$0xff]
      %v1806 = vld [vmem:[%s638 + $0xc] sm:$0xff]
      %v1807 = vld [vmem:[%s638 + $0x1c] sm:$0xff]
      %v1808 = vld [vmem:[%s638 + $0x24] sm:$0xff]
      %v1809 = vstv %s1803
      %v1810 = vmul.f32 %v1805, %v1809
      %v1811 = vmul.f32 %v1806, %v1809
      %v1812 = vmul.f32 %v1807, %v1809
      %v1813 = vmul.f32 %v1808, %v1809
      %v1814 = vadd.f32 %v1715, %v1810
      %v1815 = vadd.f32 %v1716, %v1811
      %v1816 = vadd.f32 %v1717, %v1812
      %v1817 = vadd.f32 %v1718, %v1813
      %v1818 = vld [vmem:[%s838 + $0x4] sm:$0xff]
      %v1819 = vld [vmem:[%s838 + $0xc] sm:$0xff]
      %v1820 = vld [vmem:[%s838 + $0x1c] sm:$0xff]
      %v1821 = vld [vmem:[%s838 + $0x24] sm:$0xff]
      %v1822 = vstv %s1804
      %v1823 = vmul.f32 %v1818, %v1822
      %v1824 = vmul.f32 %v1819, %v1822
      %v1825 = vmul.f32 %v1820, %v1822
      %v1826 = vmul.f32 %v1821, %v1822
      %v1827 = vadd.f32 %v1814, %v1823
      %v1828 = vadd.f32 %v1815, %v1824
      %v1829 = vadd.f32 %v1816, %v1825
      %v1830 = vadd.f32 %v1817, %v1826
      %s1831 = sld [smem:[#allocation10 + $0x42]]
      %s1832 = sld [smem:[#allocation10 + $0x43]]
      %v1833 = vld [vmem:[%s670 + $0x4] sm:$0xff]
      %v1834 = vld [vmem:[%s670 + $0xc] sm:$0xff]
      %v1835 = vld [vmem:[%s670 + $0x1c] sm:$0xff]
      %v1836 = vld [vmem:[%s670 + $0x24] sm:$0xff]
      %v1837 = vstv %s1831
      %v1838 = vmul.f32 %v1833, %v1837
      %v1839 = vmul.f32 %v1834, %v1837
      %v1840 = vmul.f32 %v1835, %v1837
      %v1841 = vmul.f32 %v1836, %v1837
      %v1842 = vadd.f32 %v1743, %v1838
      %v1843 = vadd.f32 %v1744, %v1839
      %v1844 = vadd.f32 %v1745, %v1840
      %v1845 = vadd.f32 %v1746, %v1841
      %v1846 = vld [vmem:[%s869 + $0x4] sm:$0xff]
      %v1847 = vld [vmem:[%s869 + $0xc] sm:$0xff]
      %v1848 = vld [vmem:[%s869 + $0x1c] sm:$0xff]
      %v1849 = vld [vmem:[%s869 + $0x24] sm:$0xff]
      %v1850 = vstv %s1832
      %v1851 = vmul.f32 %v1846, %v1850
      %v1852 = vmul.f32 %v1847, %v1850
      %v1853 = vmul.f32 %v1848, %v1850
      %v1854 = vmul.f32 %v1849, %v1850
      %v1855 = vadd.f32 %v1842, %v1851
      %v1856 = vadd.f32 %v1843, %v1852
      %v1857 = vadd.f32 %v1844, %v1853
      %v1858 = vadd.f32 %v1845, %v1854
      %s1859 = sld [smem:[#allocation10 + $0x44]]
      %s1860 = sld [smem:[#allocation10 + $0x45]]
      %v1861 = vld [vmem:[%s702 + $0x4] sm:$0xff]
      %v1862 = vld [vmem:[%s702 + $0xc] sm:$0xff]
      %v1863 = vld [vmem:[%s702 + $0x1c] sm:$0xff]
      %v1864 = vld [vmem:[%s702 + $0x24] sm:$0xff]
      %v1865 = vstv %s1859
      %v1866 = vmul.f32 %v1861, %v1865
      %v1867 = vmul.f32 %v1862, %v1865
      %v1868 = vmul.f32 %v1863, %v1865
      %v1869 = vmul.f32 %v1864, %v1865
      %v1870 = vadd.f32 %v1771, %v1866
      %v1871 = vadd.f32 %v1772, %v1867
      %v1872 = vadd.f32 %v1773, %v1868
      %v1873 = vadd.f32 %v1774, %v1869
      %v1874 = vld [vmem:[%s900 + $0x4] sm:$0xff]
      %v1875 = vld [vmem:[%s900 + $0xc] sm:$0xff]
      %v1876 = vld [vmem:[%s900 + $0x1c] sm:$0xff]
      %v1877 = vld [vmem:[%s900 + $0x24] sm:$0xff]
      %v1878 = vstv %s1860
      %v1879 = vmul.f32 %v1874, %v1878
      %v1880 = vmul.f32 %v1875, %v1878
      %v1881 = vmul.f32 %v1876, %v1878
      %v1882 = vmul.f32 %v1877, %v1878
      %v1883 = vadd.f32 %v1870, %v1879
      %v1884 = vadd.f32 %v1871, %v1880
      %v1885 = vadd.f32 %v1872, %v1881
      %v1886 = vadd.f32 %v1873, %v1882
      %s1887 = sld [smem:[#allocation10 + $0x46]]
      %s1888 = sld [smem:[#allocation10 + $0x47]]
      %v1889 = vld [vmem:[#allocation4 + $0x5] sm:$0xff]
      %v1890 = vld [vmem:[#allocation4 + $0xd] sm:$0xff]
      %v1891 = vld [vmem:[#allocation4 + $0x1d] sm:$0xff]
      %v1892 = vld [vmem:[#allocation4 + $0x25] sm:$0xff]
      %v1893 = vstv %s1887
      %v1894 = vmul.f32 %v1889, %v1893
      %v1895 = vmul.f32 %v1890, %v1893
      %v1896 = vmul.f32 %v1891, %v1893
      %v1897 = vmul.f32 %v1892, %v1893
      %v1898 = vadd.f32 %v1799, %v1894
      %v1899 = vadd.f32 %v1800, %v1895
      %v1900 = vadd.f32 %v1801, %v1896
      %v1901 = vadd.f32 %v1802, %v1897
      %v1902 = vld [vmem:[%s745 + $0x5] sm:$0xff]
      %v1903 = vld [vmem:[%s745 + $0xd] sm:$0xff]
      %v1904 = vld [vmem:[%s745 + $0x1d] sm:$0xff]
      %v1905 = vld [vmem:[%s745 + $0x25] sm:$0xff]
      %v1906 = vstv %s1888
      %v1907 = vmul.f32 %v1902, %v1906
      %v1908 = vmul.f32 %v1903, %v1906
      %v1909 = vmul.f32 %v1904, %v1906
      %v1910 = vmul.f32 %v1905, %v1906
      %v1911 = vadd.f32 %v1898, %v1907
      %v1912 = vadd.f32 %v1899, %v1908
      %v1913 = vadd.f32 %v1900, %v1909
      %v1914 = vadd.f32 %v1901, %v1910
      %s1915 = sld [smem:[#allocation10 + $0x48]]
      %s1916 = sld [smem:[#allocation10 + $0x49]]
      %v1917 = vld [vmem:[%s574 + $0x5] sm:$0xff]
      %v1918 = vld [vmem:[%s574 + $0xd] sm:$0xff]
      %v1919 = vld [vmem:[%s574 + $0x1d] sm:$0xff]
      %v1920 = vld [vmem:[%s574 + $0x25] sm:$0xff]
      %v1921 = vstv %s1915
      %v1922 = vmul.f32 %v1917, %v1921
      %v1923 = vmul.f32 %v1918, %v1921
      %v1924 = vmul.f32 %v1919, %v1921
      %v1925 = vmul.f32 %v1920, %v1921
      %v1926 = vadd.f32 %v1827, %v1922
      %v1927 = vadd.f32 %v1828, %v1923
      %v1928 = vadd.f32 %v1829, %v1924
      %v1929 = vadd.f32 %v1830, %v1925
      %v1930 = vld [vmem:[%s776 + $0x5] sm:$0xff]
      %v1931 = vld [vmem:[%s776 + $0xd] sm:$0xff]
      %v1932 = vld [vmem:[%s776 + $0x1d] sm:$0xff]
      %v1933 = vld [vmem:[%s776 + $0x25] sm:$0xff]
      %v1934 = vstv %s1916
      %v1935 = vmul.f32 %v1930, %v1934
      %v1936 = vmul.f32 %v1931, %v1934
      %v1937 = vmul.f32 %v1932, %v1934
      %v1938 = vmul.f32 %v1933, %v1934
      %v1939 = vadd.f32 %v1926, %v1935
      %v1940 = vadd.f32 %v1927, %v1936
      %v1941 = vadd.f32 %v1928, %v1937
      %v1942 = vadd.f32 %v1929, %v1938
      %s1943 = sld [smem:[#allocation10 + $0x4a]]
      %s1944 = sld [smem:[#allocation10 + $0x4b]]
      %v1945 = vld [vmem:[%s606 + $0x5] sm:$0xff]
      %v1946 = vld [vmem:[%s606 + $0xd] sm:$0xff]
      %v1947 = vld [vmem:[%s606 + $0x1d] sm:$0xff]
      %v1948 = vld [vmem:[%s606 + $0x25] sm:$0xff]
      %v1949 = vstv %s1943
      %v1950 = vmul.f32 %v1945, %v1949
      %v1951 = vmul.f32 %v1946, %v1949
      %v1952 = vmul.f32 %v1947, %v1949
      %v1953 = vmul.f32 %v1948, %v1949
      %v1954 = vadd.f32 %v1855, %v1950
      %v1955 = vadd.f32 %v1856, %v1951
      %v1956 = vadd.f32 %v1857, %v1952
      %v1957 = vadd.f32 %v1858, %v1953
      %v1958 = vld [vmem:[%s807 + $0x5] sm:$0xff]
      %v1959 = vld [vmem:[%s807 + $0xd] sm:$0xff]
      %v1960 = vld [vmem:[%s807 + $0x1d] sm:$0xff]
      %v1961 = vld [vmem:[%s807 + $0x25] sm:$0xff]
      %v1962 = vstv %s1944
      %v1963 = vmul.f32 %v1958, %v1962
      %v1964 = vmul.f32 %v1959, %v1962
      %v1965 = vmul.f32 %v1960, %v1962
      %v1966 = vmul.f32 %v1961, %v1962
      %v1967 = vadd.f32 %v1954, %v1963
      %v1968 = vadd.f32 %v1955, %v1964
      %v1969 = vadd.f32 %v1956, %v1965
      %v1970 = vadd.f32 %v1957, %v1966
      %s1971 = sld [smem:[#allocation10 + $0x4c]]
      %s1972 = sld [smem:[#allocation10 + $0x4d]]
      %v1973 = vld [vmem:[%s186 + $0x5] sm:$0xff]
      %v1974 = vld [vmem:[%s186 + $0xd] sm:$0xff]
      %v1975 = vld [vmem:[%s186 + $0x1d] sm:$0xff]
      %v1976 = vld [vmem:[%s186 + $0x25] sm:$0xff]
      %v1977 = vstv %s1971
      %v1978 = vmul.f32 %v1973, %v1977
      %v1979 = vmul.f32 %v1974, %v1977
      %v1980 = vmul.f32 %v1975, %v1977
      %v1981 = vmul.f32 %v1976, %v1977
      %v1982 = vadd.f32 %v1883, %v1978
      %v1983 = vadd.f32 %v1884, %v1979
      %v1984 = vadd.f32 %v1885, %v1980
      %v1985 = vadd.f32 %v1886, %v1981
      %v1986 = vld [vmem:[%s346 + $0x5] sm:$0xff]
      %v1987 = vld [vmem:[%s346 + $0xd] sm:$0xff]
      %v1988 = vld [vmem:[%s346 + $0x1d] sm:$0xff]
      %v1989 = vld [vmem:[%s346 + $0x25] sm:$0xff]
      %v1990 = vstv %s1972
      %v1991 = vmul.f32 %v1986, %v1990
      %v1992 = vmul.f32 %v1987, %v1990
      %v1993 = vmul.f32 %v1988, %v1990
      %v1994 = vmul.f32 %v1989, %v1990
      %v1995 = vadd.f32 %v1982, %v1991
      %v1996 = vadd.f32 %v1983, %v1992
      %v1997 = vadd.f32 %v1984, %v1993
      %v1998 = vadd.f32 %v1985, %v1994
      %s1999 = sld [smem:[#allocation10 + $0x4e]]
      %s2000 = sld [smem:[#allocation10 + $0x4f]]
      %v2001 = vld [vmem:[%s638 + $0x5] sm:$0xff]
      %v2002 = vld [vmem:[%s638 + $0xd] sm:$0xff]
      %v2003 = vld [vmem:[%s638 + $0x1d] sm:$0xff]
      %v2004 = vld [vmem:[%s638 + $0x25] sm:$0xff]
      %v2005 = vstv %s1999
      %v2006 = vmul.f32 %v2001, %v2005
      %v2007 = vmul.f32 %v2002, %v2005
      %v2008 = vmul.f32 %v2003, %v2005
      %v2009 = vmul.f32 %v2004, %v2005
      %v2010 = vadd.f32 %v1911, %v2006
      %v2011 = vadd.f32 %v1912, %v2007
      %v2012 = vadd.f32 %v1913, %v2008
      %v2013 = vadd.f32 %v1914, %v2009
      %v2014 = vld [vmem:[%s838 + $0x5] sm:$0xff]
      %v2015 = vld [vmem:[%s838 + $0xd] sm:$0xff]
      %v2016 = vld [vmem:[%s838 + $0x1d] sm:$0xff]
      %v2017 = vld [vmem:[%s838 + $0x25] sm:$0xff]
      %v2018 = vstv %s2000
      %v2019 = vmul.f32 %v2014, %v2018
      %v2020 = vmul.f32 %v2015, %v2018
      %v2021 = vmul.f32 %v2016, %v2018
      %v2022 = vmul.f32 %v2017, %v2018
      %v2023 = vadd.f32 %v2010, %v2019
      %v2024 = vadd.f32 %v2011, %v2020
      %v2025 = vadd.f32 %v2012, %v2021
      %v2026 = vadd.f32 %v2013, %v2022
      %s2027 = sld [smem:[#allocation10 + $0x50]]
      %s2028 = sld [smem:[#allocation10 + $0x51]]
      %v2029 = vld [vmem:[%s670 + $0x5] sm:$0xff]
      %v2030 = vld [vmem:[%s670 + $0xd] sm:$0xff]
      %v2031 = vld [vmem:[%s670 + $0x1d] sm:$0xff]
      %v2032 = vld [vmem:[%s670 + $0x25] sm:$0xff]
      %v2033 = vstv %s2027
      %v2034 = vmul.f32 %v2029, %v2033
      %v2035 = vmul.f32 %v2030, %v2033
      %v2036 = vmul.f32 %v2031, %v2033
      %v2037 = vmul.f32 %v2032, %v2033
      %v2038 = vadd.f32 %v1939, %v2034
      %v2039 = vadd.f32 %v1940, %v2035
      %v2040 = vadd.f32 %v1941, %v2036
      %v2041 = vadd.f32 %v1942, %v2037
      %v2042 = vld [vmem:[%s869 + $0x5] sm:$0xff]
      %v2043 = vld [vmem:[%s869 + $0xd] sm:$0xff]
      %v2044 = vld [vmem:[%s869 + $0x1d] sm:$0xff]
      %v2045 = vld [vmem:[%s869 + $0x25] sm:$0xff]
      %v2046 = vstv %s2028
      %v2047 = vmul.f32 %v2042, %v2046
      %v2048 = vmul.f32 %v2043, %v2046
      %v2049 = vmul.f32 %v2044, %v2046
      %v2050 = vmul.f32 %v2045, %v2046
      %v2051 = vadd.f32 %v2038, %v2047
      %v2052 = vadd.f32 %v2039, %v2048
      %v2053 = vadd.f32 %v2040, %v2049
      %v2054 = vadd.f32 %v2041, %v2050
      %s2055 = sld [smem:[#allocation10 + $0x52]]
      %s2056 = sld [smem:[#allocation10 + $0x53]]
      %v2057 = vld [vmem:[%s702 + $0x5] sm:$0xff]
      %v2058 = vld [vmem:[%s702 + $0xd] sm:$0xff]
      %v2059 = vld [vmem:[%s702 + $0x1d] sm:$0xff]
      %v2060 = vld [vmem:[%s702 + $0x25] sm:$0xff]
      %v2061 = vstv %s2055
      %v2062 = vmul.f32 %v2057, %v2061
      %v2063 = vmul.f32 %v2058, %v2061
      %v2064 = vmul.f32 %v2059, %v2061
      %v2065 = vmul.f32 %v2060, %v2061
      %v2066 = vadd.f32 %v1967, %v2062
      %v2067 = vadd.f32 %v1968, %v2063
      %v2068 = vadd.f32 %v1969, %v2064
      %v2069 = vadd.f32 %v1970, %v2065
      %v2070 = vld [vmem:[%s900 + $0x5] sm:$0xff]
      %v2071 = vld [vmem:[%s900 + $0xd] sm:$0xff]
      %v2072 = vld [vmem:[%s900 + $0x1d] sm:$0xff]
      %v2073 = vld [vmem:[%s900 + $0x25] sm:$0xff]
      %v2074 = vstv %s2056
      %v2075 = vmul.f32 %v2070, %v2074
      %v2076 = vmul.f32 %v2071, %v2074
      %v2077 = vmul.f32 %v2072, %v2074
      %v2078 = vmul.f32 %v2073, %v2074
      %v2079 = vadd.f32 %v2066, %v2075
      %v2080 = vadd.f32 %v2067, %v2076
      %v2081 = vadd.f32 %v2068, %v2077
      %v2082 = vadd.f32 %v2069, %v2078
      %s2083 = sld [smem:[#allocation10 + $0x54]]
      %s2084 = sld [smem:[#allocation10 + $0x55]]
      %v2085 = vld [vmem:[#allocation4 + $0x6] sm:$0xff]
      %v2086 = vld [vmem:[#allocation4 + $0xe] sm:$0xff]
      %v2087 = vld [vmem:[#allocation4 + $0x1e] sm:$0xff]
      %v2088 = vld [vmem:[#allocation4 + $0x26] sm:$0xff]
      %v2089 = vstv %s2083
      %v2090 = vmul.f32 %v2085, %v2089
      %v2091 = vmul.f32 %v2086, %v2089
      %v2092 = vmul.f32 %v2087, %v2089
      %v2093 = vmul.f32 %v2088, %v2089
      %v2094 = vadd.f32 %v1995, %v2090
      %v2095 = vadd.f32 %v1996, %v2091
      %v2096 = vadd.f32 %v1997, %v2092
      %v2097 = vadd.f32 %v1998, %v2093
      %v2098 = vld [vmem:[%s745 + $0x6] sm:$0xff]
      %v2099 = vld [vmem:[%s745 + $0xe] sm:$0xff]
      %v2100 = vld [vmem:[%s745 + $0x1e] sm:$0xff]
      %v2101 = vld [vmem:[%s745 + $0x26] sm:$0xff]
      %v2102 = vstv %s2084
      %v2103 = vmul.f32 %v2098, %v2102
      %v2104 = vmul.f32 %v2099, %v2102
      %v2105 = vmul.f32 %v2100, %v2102
      %v2106 = vmul.f32 %v2101, %v2102
      %v2107 = vadd.f32 %v2094, %v2103
      %v2108 = vadd.f32 %v2095, %v2104
      %v2109 = vadd.f32 %v2096, %v2105
      %v2110 = vadd.f32 %v2097, %v2106
      %s2111 = sld [smem:[#allocation10 + $0x56]]
      %s2112 = sld [smem:[#allocation10 + $0x57]]
      %v2113 = vld [vmem:[%s574 + $0x6] sm:$0xff]
      %v2114 = vld [vmem:[%s574 + $0xe] sm:$0xff]
      %v2115 = vld [vmem:[%s574 + $0x1e] sm:$0xff]
      %v2116 = vld [vmem:[%s574 + $0x26] sm:$0xff]
      %v2117 = vstv %s2111
      %v2118 = vmul.f32 %v2113, %v2117
      %v2119 = vmul.f32 %v2114, %v2117
      %v2120 = vmul.f32 %v2115, %v2117
      %v2121 = vmul.f32 %v2116, %v2117
      %v2122 = vadd.f32 %v2023, %v2118
      %v2123 = vadd.f32 %v2024, %v2119
      %v2124 = vadd.f32 %v2025, %v2120
      %v2125 = vadd.f32 %v2026, %v2121
      %v2126 = vld [vmem:[%s776 + $0x6] sm:$0xff]
      %v2127 = vld [vmem:[%s776 + $0xe] sm:$0xff]
      %v2128 = vld [vmem:[%s776 + $0x1e] sm:$0xff]
      %v2129 = vld [vmem:[%s776 + $0x26] sm:$0xff]
      %v2130 = vstv %s2112
      %v2131 = vmul.f32 %v2126, %v2130
      %v2132 = vmul.f32 %v2127, %v2130
      %v2133 = vmul.f32 %v2128, %v2130
      %v2134 = vmul.f32 %v2129, %v2130
      %v2135 = vadd.f32 %v2122, %v2131
      %v2136 = vadd.f32 %v2123, %v2132
      %v2137 = vadd.f32 %v2124, %v2133
      %v2138 = vadd.f32 %v2125, %v2134
      %s2139 = sld [smem:[#allocation10 + $0x58]]
      %s2140 = sld [smem:[#allocation10 + $0x59]]
      %v2141 = vld [vmem:[%s606 + $0x6] sm:$0xff]
      %v2142 = vld [vmem:[%s606 + $0xe] sm:$0xff]
      %v2143 = vld [vmem:[%s606 + $0x1e] sm:$0xff]
      %v2144 = vld [vmem:[%s606 + $0x26] sm:$0xff]
      %v2145 = vstv %s2139
      %v2146 = vmul.f32 %v2141, %v2145
      %v2147 = vmul.f32 %v2142, %v2145
      %v2148 = vmul.f32 %v2143, %v2145
      %v2149 = vmul.f32 %v2144, %v2145
      %v2150 = vadd.f32 %v2051, %v2146
      %v2151 = vadd.f32 %v2052, %v2147
      %v2152 = vadd.f32 %v2053, %v2148
      %v2153 = vadd.f32 %v2054, %v2149
      %v2154 = vld [vmem:[%s807 + $0x6] sm:$0xff]
      %v2155 = vld [vmem:[%s807 + $0xe] sm:$0xff]
      %v2156 = vld [vmem:[%s807 + $0x1e] sm:$0xff]
      %v2157 = vld [vmem:[%s807 + $0x26] sm:$0xff]
      %v2158 = vstv %s2140
      %v2159 = vmul.f32 %v2154, %v2158
      %v2160 = vmul.f32 %v2155, %v2158
      %v2161 = vmul.f32 %v2156, %v2158
      %v2162 = vmul.f32 %v2157, %v2158
      %v2163 = vadd.f32 %v2150, %v2159
      %v2164 = vadd.f32 %v2151, %v2160
      %v2165 = vadd.f32 %v2152, %v2161
      %v2166 = vadd.f32 %v2153, %v2162
      %s2167 = sld [smem:[#allocation10 + $0x5a]]
      %s2168 = sld [smem:[#allocation10 + $0x5b]]
      %v2169 = vld [vmem:[%s186 + $0x6] sm:$0xff]
      %v2170 = vld [vmem:[%s186 + $0xe] sm:$0xff]
      %v2171 = vld [vmem:[%s186 + $0x1e] sm:$0xff]
      %v2172 = vld [vmem:[%s186 + $0x26] sm:$0xff]
      %v2173 = vstv %s2167
      %v2174 = vmul.f32 %v2169, %v2173
      %v2175 = vmul.f32 %v2170, %v2173
      %v2176 = vmul.f32 %v2171, %v2173
      %v2177 = vmul.f32 %v2172, %v2173
      %v2178 = vadd.f32 %v2079, %v2174
      %v2179 = vadd.f32 %v2080, %v2175
      %v2180 = vadd.f32 %v2081, %v2176
      %v2181 = vadd.f32 %v2082, %v2177
      %v2182 = vld [vmem:[%s346 + $0x6] sm:$0xff]
      %v2183 = vld [vmem:[%s346 + $0xe] sm:$0xff]
      %v2184 = vld [vmem:[%s346 + $0x1e] sm:$0xff]
      %v2185 = vld [vmem:[%s346 + $0x26] sm:$0xff]
      %v2186 = vstv %s2168
      %v2187 = vmul.f32 %v2182, %v2186
      %v2188 = vmul.f32 %v2183, %v2186
      %v2189 = vmul.f32 %v2184, %v2186
      %v2190 = vmul.f32 %v2185, %v2186
      %v2191 = vadd.f32 %v2178, %v2187
      %v2192 = vadd.f32 %v2179, %v2188
      %v2193 = vadd.f32 %v2180, %v2189
      %v2194 = vadd.f32 %v2181, %v2190
      %s2195 = sld [smem:[#allocation10 + $0x5c]]
      %s2196 = sld [smem:[#allocation10 + $0x5d]]
      %v2197 = vld [vmem:[%s638 + $0x6] sm:$0xff]
      %v2198 = vld [vmem:[%s638 + $0xe] sm:$0xff]
      %v2199 = vld [vmem:[%s638 + $0x1e] sm:$0xff]
      %v2200 = vld [vmem:[%s638 + $0x26] sm:$0xff]
      %v2201 = vstv %s2195
      %v2202 = vmul.f32 %v2197, %v2201
      %v2203 = vmul.f32 %v2198, %v2201
      %v2204 = vmul.f32 %v2199, %v2201
      %v2205 = vmul.f32 %v2200, %v2201
      %v2206 = vadd.f32 %v2107, %v2202
      %v2207 = vadd.f32 %v2108, %v2203
      %v2208 = vadd.f32 %v2109, %v2204
      %v2209 = vadd.f32 %v2110, %v2205
      %v2210 = vld [vmem:[%s838 + $0x6] sm:$0xff]
      %v2211 = vld [vmem:[%s838 + $0xe] sm:$0xff]
      %v2212 = vld [vmem:[%s838 + $0x1e] sm:$0xff]
      %v2213 = vld [vmem:[%s838 + $0x26] sm:$0xff]
      %v2214 = vstv %s2196
      %v2215 = vmul.f32 %v2210, %v2214
      %v2216 = vmul.f32 %v2211, %v2214
      %v2217 = vmul.f32 %v2212, %v2214
      %v2218 = vmul.f32 %v2213, %v2214
      %v2219 = vadd.f32 %v2206, %v2215
      %v2220 = vadd.f32 %v2207, %v2216
      %v2221 = vadd.f32 %v2208, %v2217
      %v2222 = vadd.f32 %v2209, %v2218
      %s2223 = sld [smem:[#allocation10 + $0x5e]]
      %s2224 = sld [smem:[#allocation10 + $0x5f]]
      %v2225 = vld [vmem:[%s670 + $0x6] sm:$0xff]
      %v2226 = vld [vmem:[%s670 + $0xe] sm:$0xff]
      %v2227 = vld [vmem:[%s670 + $0x1e] sm:$0xff]
      %v2228 = vld [vmem:[%s670 + $0x26] sm:$0xff]
      %v2229 = vstv %s2223
      %v2230 = vmul.f32 %v2225, %v2229
      %v2231 = vmul.f32 %v2226, %v2229
      %v2232 = vmul.f32 %v2227, %v2229
      %v2233 = vmul.f32 %v2228, %v2229
      %v2234 = vadd.f32 %v2135, %v2230
      %v2235 = vadd.f32 %v2136, %v2231
      %v2236 = vadd.f32 %v2137, %v2232
      %v2237 = vadd.f32 %v2138, %v2233
      %v2238 = vld [vmem:[%s869 + $0x6] sm:$0xff]
      %v2239 = vld [vmem:[%s869 + $0xe] sm:$0xff]
      %v2240 = vld [vmem:[%s869 + $0x1e] sm:$0xff]
      %v2241 = vld [vmem:[%s869 + $0x26] sm:$0xff]
      %v2242 = vstv %s2224
      %v2243 = vmul.f32 %v2238, %v2242
      %v2244 = vmul.f32 %v2239, %v2242
      %v2245 = vmul.f32 %v2240, %v2242
      %v2246 = vmul.f32 %v2241, %v2242
      %v2247 = vadd.f32 %v2234, %v2243
      %v2248 = vadd.f32 %v2235, %v2244
      %v2249 = vadd.f32 %v2236, %v2245
      %v2250 = vadd.f32 %v2237, %v2246
      %s2251 = sld [smem:[#allocation10 + $0x60]]
      %s2252 = sld [smem:[#allocation10 + $0x61]]
      %v2253 = vld [vmem:[%s702 + $0x6] sm:$0xff]
      %v2254 = vld [vmem:[%s702 + $0xe] sm:$0xff]
      %v2255 = vld [vmem:[%s702 + $0x1e] sm:$0xff]
      %v2256 = vld [vmem:[%s702 + $0x26] sm:$0xff]
      %v2257 = vstv %s2251
      %v2258 = vmul.f32 %v2253, %v2257
      %v2259 = vmul.f32 %v2254, %v2257
      %v2260 = vmul.f32 %v2255, %v2257
      %v2261 = vmul.f32 %v2256, %v2257
      %v2262 = vadd.f32 %v2163, %v2258
      %v2263 = vadd.f32 %v2164, %v2259
      %v2264 = vadd.f32 %v2165, %v2260
      %v2265 = vadd.f32 %v2166, %v2261
      %v2266 = vld [vmem:[%s900 + $0x6] sm:$0xff]
      %v2267 = vld [vmem:[%s900 + $0xe] sm:$0xff]
      %v2268 = vld [vmem:[%s900 + $0x1e] sm:$0xff]
      %v2269 = vld [vmem:[%s900 + $0x26] sm:$0xff]
      %v2270 = vstv %s2252
      %v2271 = vmul.f32 %v2266, %v2270
      %v2272 = vmul.f32 %v2267, %v2270
      %v2273 = vmul.f32 %v2268, %v2270
      %v2274 = vmul.f32 %v2269, %v2270
      %v2275 = vadd.f32 %v2262, %v2271
      %v2276 = vadd.f32 %v2263, %v2272
      %v2277 = vadd.f32 %v2264, %v2273
      %v2278 = vadd.f32 %v2265, %v2274
      %v2279 = vadd.f32 %v2275, %v2191
      %v2280 = vadd.f32 %v2276, %v2192
      %v2281 = vadd.f32 %v2277, %v2193
      %v2282 = vadd.f32 %v2278, %v2194
      %v2283 = vadd.f32 %v2219, %v2247
      %v2284 = vadd.f32 %v2220, %v2248
      %v2285 = vadd.f32 %v2221, %v2249
      %v2286 = vadd.f32 %v2222, %v2250
      %v2287 = vadd.f32 %v2279, %v2283
      %v2288 = vadd.f32 %v2280, %v2284
      %v2289 = vadd.f32 %v2281, %v2285
      %v2290 = vadd.f32 %v2282, %v2286
      %s2291 = sld [smem:[#allocation5]]
      %v2292 = vstv %s2291
      %v2293 = vadd.f32 %v2287, %v2292
      %v2294 = vadd.f32 %v2288, %v2292
      %v2295 = vadd.f32 %v2289, %v2292
      %v2296 = vadd.f32 %v2290, %v2292
      %v2297 = vxor.u32 %v2293, 2147483648
      %v2298 = vxor.u32 %v2294, 2147483648
      %v2299 = vxor.u32 %v2295, 2147483648
      %v2300 = vxor.u32 %v2296, 2147483648
      %v2301 = vmul.f32 %v2297, 1.442695
      %v2302 = vpow.pop %v2301
      %v2303 = vmul.f32 %v2298, 1.442695
      %v2304 = vpow.pop %v2303
      %v2305 = vmul.f32 %v2299, 1.442695
      %v2306 = vpow.pop %v2305
      %v2307 = vmul.f32 %v2300, 1.442695
      %v2308 = vpow.pop %v2307
      %v2309 = vadd.f32 %v2302, 1.0
      %v2310 = vadd.f32 %v2304, 1.0
      %v2311 = vadd.f32 %v2306, 1.0
      %v2312 = vadd.f32 %v2308, 1.0
      %v2313 = vrcp.pop %v2309
      %v2314 = vmul.f32 1.0, %v2313
      %v2315 = vrcp.pop %v2310
      %v2316 = vmul.f32 1.0, %v2315
      %v2317 = vrcp.pop %v2311
      %v2318 = vmul.f32 1.0, %v2317
      %v2319 = vrcp.pop %v2312
      %v2320 = vmul.f32 1.0, %v2319
      %v2321 = vlaneseq
      %vm2322 = vcmp.ge.s32.totalorder %v2321, 0
      %vm2323 = vcmp.lt.s32.totalorder %v2321, 16
      %vm2324 = vmand %vm2322, %vm2323
      %2325 = vst.msk [vmem:[#allocation11] sm:$0x1] %vm2324, %v2314
      %2326 = vst.msk [vmem:[#allocation11 + $0x2] sm:$0x1] %vm2324, %v2318
      %v2330 = vunpack.c.l.s4 1966171168
      %v2331 = vunpack.c.0.s8 %v2330
      %v2332 = vlaneseq
      %v2333 = vshrl.u32 %v2332, 7
      %v2334 = vsub.s32 %v2331, %v2333
      %v2335 = vrot.slane %v2314, %v2334
      %v2336 = vcombine.high %v2335, %v2335
      %v2338 = vunpack.c.l.s4 1966171168
      %v2339 = vunpack.c.0.s8 %v2338
      %v2340 = vlaneseq
      %v2341 = vshrl.u32 %v2340, 7
      %v2342 = vsub.s32 %v2339, %v2341
      %v2343 = vrot.slane %v2335, %v2342
      %v2345 = vunpack.c.l.s4 1966171168
      %v2346 = vunpack.c.0.s8 %v2345
      %v2347 = vlaneseq
      %v2348 = vshrl.u32 %v2347, 7
      %v2349 = vsub.s32 %v2346, %v2348
      %v2350 = vrot.slane %v2336, %v2349
      %v2352 = vunpack.c.l.s4 1966171168
      %v2353 = vunpack.c.0.s8 %v2352
      %v2354 = vlaneseq
      %v2355 = vshrl.u32 %v2354, 7
      %v2356 = vsub.s32 %v2353, %v2355
      %v2357 = vrot.slane %v2318, %v2356
      %v2358 = vcombine.high %v2357, %v2357
      %v2360 = vunpack.c.l.s4 1966171168
      %v2361 = vunpack.c.0.s8 %v2360
      %v2362 = vlaneseq
      %v2363 = vshrl.u32 %v2362, 7
      %v2364 = vsub.s32 %v2361, %v2363
      %v2365 = vrot.slane %v2357, %v2364
      %v2367 = vunpack.c.l.s4 1966171168
      %v2368 = vunpack.c.0.s8 %v2367
      %v2369 = vlaneseq
      %v2370 = vshrl.u32 %v2369, 7
      %v2371 = vsub.s32 %v2368, %v2370
      %v2372 = vrot.slane %v2358, %v2371
      %2373 = vrot.lane.b32.xlu0 %v2350, 16
      %v2374 = vpop.permute.xlu0 %2373
      %2375 = vrot.lane.b32.xlu0 %v2372, 16
      %v2376 = vpop.permute.xlu0 %2375
      %vm2379 = vcmp.ge.s32.totalorder %v2321, 16
      %vm2380 = vcmp.lt.s32.totalorder %v2321, 32
      %vm2381 = vmand %vm2379, %vm2380
      %2382 = vst.msk [vmem:[#allocation11] sm:$0x1] %vm2381, %v2374
      %2383 = vst.msk [vmem:[#allocation11 + $0x2] sm:$0x1] %vm2381, %v2376
      %v2384 = vcombine.high %v2343, %v2343
      %v2385 = vcombine.high %v2365, %v2365
      %2386 = vrot.lane.b32.xlu0 %v2384, 32
      %v2387 = vpop.permute.xlu0 %2386
      %2388 = vrot.lane.b32.xlu0 %v2385, 32
      %v2389 = vpop.permute.xlu0 %2388
      %vm2392 = vcmp.ge.s32.totalorder %v2321, 32
      %vm2393 = vcmp.lt.s32.totalorder %v2321, 48
      %vm2394 = vmand %vm2392, %vm2393
      %2395 = vst.msk [vmem:[#allocation11] sm:$0x1] %vm2394, %v2387
      %2396 = vst.msk [vmem:[#allocation11 + $0x2] sm:$0x1] %vm2394, %v2389
      %v2397 = vcombine.high %v2350, %v2350
      %v2398 = vcombine.high %v2372, %v2372
      %2399 = vrot.lane.b32.xlu0 %v2397, 48
      %v2400 = vpop.permute.xlu0 %2399
      %2401 = vrot.lane.b32.xlu0 %v2398, 48
      %v2402 = vpop.permute.xlu0 %2401
      %vm2405 = vcmp.ge.s32.totalorder %v2321, 48
      %vm2406 = vcmp.lt.s32.totalorder %v2321, 64
      %vm2407 = vmand %vm2405, %vm2406
      %2408 = vst.msk [vmem:[#allocation11] sm:$0x1] %vm2407, %v2400
      %2409 = vst.msk [vmem:[#allocation11 + $0x2] sm:$0x1] %vm2407, %v2402
      %v2410 = vcombine.high %v2314, %v2314
      %v2412 = vunpack.c.l.s4 1966171168
      %v2413 = vunpack.c.0.s8 %v2412
      %v2414 = vlaneseq
      %v2415 = vshrl.u32 %v2414, 7
      %v2416 = vsub.s32 %v2413, %v2415
      %v2417 = vrot.slane %v2410, %v2416
      %v2419 = vunpack.c.l.s4 1966171168
      %v2420 = vunpack.c.0.s8 %v2419
      %v2421 = vlaneseq
      %v2422 = vshrl.u32 %v2421, 7
      %v2423 = vsub.s32 %v2420, %v2422
      %v2424 = vrot.slane %v2417, %v2423
      %v2425 = vcombine.high %v2318, %v2318
      %v2427 = vunpack.c.l.s4 1966171168
      %v2428 = vunpack.c.0.s8 %v2427
      %v2429 = vlaneseq
      %v2430 = vshrl.u32 %v2429, 7
      %v2431 = vsub.s32 %v2428, %v2430
      %v2432 = vrot.slane %v2425, %v2431
      %v2434 = vunpack.c.l.s4 1966171168
      %v2435 = vunpack.c.0.s8 %v2434
      %v2436 = vlaneseq
      %v2437 = vshrl.u32 %v2436, 7
      %v2438 = vsub.s32 %v2435, %v2437
      %v2439 = vrot.slane %v2432, %v2438
      %2440 = vrot.lane.b32.xlu0 %v2424, 64
      %v2441 = vpop.permute.xlu0 %2440
      %2442 = vrot.lane.b32.xlu0 %v2439, 64
      %v2443 = vpop.permute.xlu0 %2442
      %vm2446 = vcmp.ge.s32.totalorder %v2321, 64
      %vm2447 = vcmp.lt.s32.totalorder %v2321, 80
      %vm2448 = vmand %vm2446, %vm2447
      %2449 = vst.msk [vmem:[#allocation11] sm:$0x1] %vm2448, %v2441
      %2450 = vst.msk [vmem:[#allocation11 + $0x2] sm:$0x1] %vm2448, %v2443
      %v2451 = vcombine.high %v2417, %v2417
      %v2453 = vunpack.c.l.s4 1966171168
      %v2454 = vunpack.c.0.s8 %v2453
      %v2455 = vlaneseq
      %v2456 = vshrl.u32 %v2455, 7
      %v2457 = vsub.s32 %v2454, %v2456
      %v2458 = vrot.slane %v2451, %v2457
      %v2459 = vcombine.high %v2432, %v2432
      %v2461 = vunpack.c.l.s4 1966171168
      %v2462 = vunpack.c.0.s8 %v2461
      %v2463 = vlaneseq
      %v2464 = vshrl.u32 %v2463, 7
      %v2465 = vsub.s32 %v2462, %v2464
      %v2466 = vrot.slane %v2459, %v2465
      %2467 = vrot.lane.b32.xlu0 %v2458, 80
      %v2468 = vpop.permute.xlu0 %2467
      %2469 = vrot.lane.b32.xlu0 %v2466, 80
      %v2470 = vpop.permute.xlu0 %2469
      %vm2473 = vcmp.ge.s32.totalorder %v2321, 80
      %vm2474 = vcmp.lt.s32.totalorder %v2321, 96
      %vm2475 = vmand %vm2473, %vm2474
      %2476 = vst.msk [vmem:[#allocation11] sm:$0x1] %vm2475, %v2468
      %2477 = vst.msk [vmem:[#allocation11 + $0x2] sm:$0x1] %vm2475, %v2470
      %v2478 = vcombine.high %v2424, %v2424
      %v2479 = vcombine.high %v2439, %v2439
      %2480 = vrot.lane.b32.xlu0 %v2478, 96
      %v2481 = vpop.permute.xlu0 %2480
      %2482 = vrot.lane.b32.xlu0 %v2479, 96
      %v2483 = vpop.permute.xlu0 %2482
      %vm2486 = vcmp.ge.s32.totalorder %v2321, 96
      %vm2487 = vcmp.lt.s32.totalorder %v2321, 112
      %vm2488 = vmand %vm2486, %vm2487
      %2489 = vst.msk [vmem:[#allocation11] sm:$0x1] %vm2488, %v2481
      %2490 = vst.msk [vmem:[#allocation11 + $0x2] sm:$0x1] %vm2488, %v2483
      %v2491 = vcombine.high %v2458, %v2458
      %v2492 = vcombine.high %v2466, %v2466
      %2493 = vrot.lane.b32.xlu0 %v2491, 112
      %v2494 = vpop.permute.xlu0 %2493
      %2495 = vrot.lane.b32.xlu0 %v2492, 112
      %v2496 = vpop.permute.xlu0 %2495
      %vm2499 = vcmp.ge.s32.totalorder %v2321, 112
      %vm2500 = vcmp.lt.s32.totalorder %v2321, 128
      %vm2501 = vmand %vm2499, %vm2500
      %2502 = vst.msk [vmem:[#allocation11] sm:$0x1] %vm2501, %v2494
      %2503 = vst.msk [vmem:[#allocation11 + $0x2] sm:$0x1] %vm2501, %v2496
      %2504 = vst.msk [vmem:[#allocation11 + $0x1] sm:$0x1] %vm2324, %v2316
      %2505 = vst.msk [vmem:[#allocation11 + $0x3] sm:$0x1] %vm2324, %v2320
      %v2509 = vunpack.c.l.s4 1966171168
      %v2510 = vunpack.c.0.s8 %v2509
      %v2511 = vlaneseq
      %v2512 = vshrl.u32 %v2511, 7
      %v2513 = vsub.s32 %v2510, %v2512
      %v2514 = vrot.slane %v2316, %v2513
      %v2515 = vcombine.high %v2514, %v2514
      %v2517 = vunpack.c.l.s4 1966171168
      %v2518 = vunpack.c.0.s8 %v2517
      %v2519 = vlaneseq
      %v2520 = vshrl.u32 %v2519, 7
      %v2521 = vsub.s32 %v2518, %v2520
      %v2522 = vrot.slane %v2514, %v2521
      %v2524 = vunpack.c.l.s4 1966171168
      %v2525 = vunpack.c.0.s8 %v2524
      %v2526 = vlaneseq
      %v2527 = vshrl.u32 %v2526, 7
      %v2528 = vsub.s32 %v2525, %v2527
      %v2529 = vrot.slane %v2515, %v2528
      %v2531 = vunpack.c.l.s4 1966171168
      %v2532 = vunpack.c.0.s8 %v2531
      %v2533 = vlaneseq
      %v2534 = vshrl.u32 %v2533, 7
      %v2535 = vsub.s32 %v2532, %v2534
      %v2536 = vrot.slane %v2320, %v2535
      %v2537 = vcombine.high %v2536, %v2536
      %v2539 = vunpack.c.l.s4 1966171168
      %v2540 = vunpack.c.0.s8 %v2539
      %v2541 = vlaneseq
      %v2542 = vshrl.u32 %v2541, 7
      %v2543 = vsub.s32 %v2540, %v2542
      %v2544 = vrot.slane %v2536, %v2543
      %v2546 = vunpack.c.l.s4 1966171168
      %v2547 = vunpack.c.0.s8 %v2546
      %v2548 = vlaneseq
      %v2549 = vshrl.u32 %v2548, 7
      %v2550 = vsub.s32 %v2547, %v2549
      %v2551 = vrot.slane %v2537, %v2550
      %2552 = vrot.lane.b32.xlu0 %v2529, 16
      %v2553 = vpop.permute.xlu0 %2552
      %2554 = vrot.lane.b32.xlu0 %v2551, 16
      %v2555 = vpop.permute.xlu0 %2554
      %2558 = vst.msk [vmem:[#allocation11 + $0x1] sm:$0x1] %vm2381, %v2553
      %2559 = vst.msk [vmem:[#allocation11 + $0x3] sm:$0x1] %vm2381, %v2555
      %v2560 = vcombine.high %v2522, %v2522
      %v2561 = vcombine.high %v2544, %v2544
      %2562 = vrot.lane.b32.xlu0 %v2560, 32
      %v2563 = vpop.permute.xlu0 %2562
      %2564 = vrot.lane.b32.xlu0 %v2561, 32
      %v2565 = vpop.permute.xlu0 %2564
      %2568 = vst.msk [vmem:[#allocation11 + $0x1] sm:$0x1] %vm2394, %v2563
      %2569 = vst.msk [vmem:[#allocation11 + $0x3] sm:$0x1] %vm2394, %v2565
      %v2570 = vcombine.high %v2529, %v2529
      %v2571 = vcombine.high %v2551, %v2551
      %2572 = vrot.lane.b32.xlu0 %v2570, 48
      %v2573 = vpop.permute.xlu0 %2572
      %2574 = vrot.lane.b32.xlu0 %v2571, 48
      %v2575 = vpop.permute.xlu0 %2574
      %2578 = vst.msk [vmem:[#allocation11 + $0x1] sm:$0x1] %vm2407, %v2573
      %2579 = vst.msk [vmem:[#allocation11 + $0x3] sm:$0x1] %vm2407, %v2575
      %v2580 = vcombine.high %v2316, %v2316
      %v2582 = vunpack.c.l.s4 1966171168
      %v2583 = vunpack.c.0.s8 %v2582
      %v2584 = vlaneseq
      %v2585 = vshrl.u32 %v2584, 7
      %v2586 = vsub.s32 %v2583, %v2585
      %v2587 = vrot.slane %v2580, %v2586
      %v2589 = vunpack.c.l.s4 1966171168
      %v2590 = vunpack.c.0.s8 %v2589
      %v2591 = vlaneseq
      %v2592 = vshrl.u32 %v2591, 7
      %v2593 = vsub.s32 %v2590, %v2592
      %v2594 = vrot.slane %v2587, %v2593
      %v2595 = vcombine.high %v2320, %v2320
      %v2597 = vunpack.c.l.s4 1966171168
      %v2598 = vunpack.c.0.s8 %v2597
      %v2599 = vlaneseq
      %v2600 = vshrl.u32 %v2599, 7
      %v2601 = vsub.s32 %v2598, %v2600
      %v2602 = vrot.slane %v2595, %v2601
      %v2604 = vunpack.c.l.s4 1966171168
      %v2605 = vunpack.c.0.s8 %v2604
      %v2606 = vlaneseq
      %v2607 = vshrl.u32 %v2606, 7
      %v2608 = vsub.s32 %v2605, %v2607
      %v2609 = vrot.slane %v2602, %v2608
      %2610 = vrot.lane.b32.xlu0 %v2594, 64
      %v2611 = vpop.permute.xlu0 %2610
      %2612 = vrot.lane.b32.xlu0 %v2609, 64
      %v2613 = vpop.permute.xlu0 %2612
      %2616 = vst.msk [vmem:[#allocation11 + $0x1] sm:$0x1] %vm2448, %v2611
      %2617 = vst.msk [vmem:[#allocation11 + $0x3] sm:$0x1] %vm2448, %v2613
      %v2618 = vcombine.high %v2587, %v2587
      %v2620 = vunpack.c.l.s4 1966171168
      %v2621 = vunpack.c.0.s8 %v2620
      %v2622 = vlaneseq
      %v2623 = vshrl.u32 %v2622, 7
      %v2624 = vsub.s32 %v2621, %v2623
      %v2625 = vrot.slane %v2618, %v2624
      %v2626 = vcombine.high %v2602, %v2602
      %v2628 = vunpack.c.l.s4 1966171168
      %v2629 = vunpack.c.0.s8 %v2628
      %v2630 = vlaneseq
      %v2631 = vshrl.u32 %v2630, 7
      %v2632 = vsub.s32 %v2629, %v2631
      %v2633 = vrot.slane %v2626, %v2632
      %2634 = vrot.lane.b32.xlu0 %v2625, 80
      %v2635 = vpop.permute.xlu0 %2634
      %2636 = vrot.lane.b32.xlu0 %v2633, 80
      %v2637 = vpop.permute.xlu0 %2636
      %2640 = vst.msk [vmem:[#allocation11 + $0x1] sm:$0x1] %vm2475, %v2635
      %2641 = vst.msk [vmem:[#allocation11 + $0x3] sm:$0x1] %vm2475, %v2637
      %v2642 = vcombine.high %v2594, %v2594
      %v2643 = vcombine.high %v2609, %v2609
      %2644 = vrot.lane.b32.xlu0 %v2642, 96
      %v2645 = vpop.permute.xlu0 %2644
      %2646 = vrot.lane.b32.xlu0 %v2643, 96
      %v2647 = vpop.permute.xlu0 %2646
      %2650 = vst.msk [vmem:[#allocation11 + $0x1] sm:$0x1] %vm2488, %v2645
      %2651 = vst.msk [vmem:[#allocation11 + $0x3] sm:$0x1] %vm2488, %v2647
      %v2652 = vcombine.high %v2625, %v2625
      %v2653 = vcombine.high %v2633, %v2633
      %2654 = vrot.lane.b32.xlu0 %v2652, 112
      %v2655 = vpop.permute.xlu0 %2654
      %2656 = vrot.lane.b32.xlu0 %v2653, 112
      %v2657 = vpop.permute.xlu0 %2656
      %2660 = vst.msk [vmem:[#allocation11 + $0x1] sm:$0x1] %vm2501, %v2655
      %2661 = vst.msk [vmem:[#allocation11 + $0x3] sm:$0x1] %vm2501, %v2657
    $region29: #{tpu_custom_call.1} parent=1 // pred_fallthru
      _
    // Predicated region
    $region30: #{tpu_custom_call.1} parent=1 // pred_check
      _
    $region31: #{tpu_custom_call.1} parent=1 // pred_check_branch
      %2663 = sbr.rel (0) target = $region33
    $region32: #{tpu_custom_call.1} parent=1 // pred_region
      %s2665 = ssub.s32 64, 64
      %2666 = vsyncadd [#allocation8], %s2665
      %s2667 = sshll.u32 [#allocation11], 4
      %s2668 = int_to_ptr.vmem [resolvable:$true] %s2667
      %2673 = dma.vmem_to_hbm [thread:$0]  %s2668, 64, %s3, [#allocation8], 32, 32, 2
    $region33: #{tpu_custom_call.1} parent=1 // pred_fallthru
      _
    // Predicated region
    $region34: #{tpu_custom_call.1} parent=1 // pred_check
      _
    $region35: #{tpu_custom_call.1} parent=1 // pred_check_branch
      %2675 = sbr.rel (0) target = $region37
    $region36: #{tpu_custom_call.1} parent=1 // pred_region
      %2676 = dma.done [#allocation8], 64
    $region37: #{tpu_custom_call.1} parent=1 // pred_fallthru
      _
    %2677 = vsyncpa [#allocation7], 1
    %2678 = vsyncpa [#allocation8], 1
    %2679 = vsyncpa [#allocation9], 1

</llo_original>
